<compile_context>
chip_gen: v7x
topology: tpu7x:2x2x1
jax: 0.10.0
libtpu: 0.0.40
codegen_flags: <defaults>
</compile_context>

<pallas_src>
import functools

import jax
import jax.numpy as jnp
from jax.experimental import pallas as pl
from jax.experimental.pallas import tpu as pltpu

NEG_INF = -1e30

# ---- backend / generation detection (dtype + VMEM budget selection) ----------------
_DEV = jax.devices()[0]
_ON_TPU = _DEV.platform == "tpu"
_KIND = _DEV.device_kind.lower()
# MXU matmuls in bf16 only on TPU; f32 elsewhere (CPU dot thunk has no bf16 path).
_MXU_DT = jnp.bfloat16 if _ON_TPU else jnp.float32
# bf16 VPU/EUP exists on v6e and newer; keep the elementwise chain f32 on v5e-/CPU.
_BF16_VPU = _ON_TPU and not any(g in _KIND for g in ("v2", "v3", "v4", "v5"))
_COMPUTE_DT = jnp.bfloat16 if _BF16_VPU else jnp.float32
_IS_V7 = _ON_TPU and "v7" in _KIND
# v7x has only 64 MiB physical VMEM per TC -> leave headroom; v5e/v6e have 128 MiB.
_VMEM_LIMIT = (48 if _IS_V7 else 96) * 1024 * 1024


def _round_up(v, m):
    return ((v + m - 1) // m) * m


# ---- kernel 1: linear projection + per-head attention scores (all on the MXU) ------
def _project_kernel(x_ref, w_ref, asrc_ref, adst_ref, xw_ref, ssrc_ref, sdst_ref):
    """xw = x @ W;  scores = xw @ A with A block-diagonal [H*C, H], so the per-head
    <xw_h, a_h> reductions are one matmul instead of cross-lane reductions."""
    xw = jnp.dot(x_ref[...], w_ref[...], preferred_element_type=jnp.float32)
    xw_m = xw.astype(xw_ref.dtype)
    xw_ref[...] = xw_m
    ssrc_ref[...] = jnp.dot(xw_m, asrc_ref[...], preferred_element_type=jnp.float32)
    sdst_ref[...] = jnp.dot(xw_m, adst_ref[...], preferred_element_type=jnp.float32)


# ---- kernel 2: masked softmax attention + aggregation -------------------------------
# grid = (dst_tiles, heads); heads is the inner "arbitrary" (accumulation) axis, so
# the adjacency tile is fetched once per dst tile and reused for all heads.
def _attend_kernel(sdst_ref, ssrc_ref, rhs_ref, bias_ref, adj_ref, out_ref, acc_ref,
                   *, heads, mean_factor, apply_elu, compute_dt, mxu_dt,
                   negative_slope=0.2):
    h = pl.program_id(1)

    @pl.when(h == 0)
    def _init():
        acc_ref[...] = jnp.zeros_like(acc_ref)

    # logits[d, s] = LeakyReLU(sdst[d] + ssrc[s]) + mask[d, s]
    e = sdst_ref[...].astype(compute_dt) + ssrc_ref[...].astype(compute_dt)  # [TD, N]
    e = jnp.maximum(e, negative_slope * e)            # LeakyReLU: mul + max
    e = e + adj_ref[...].astype(compute_dt)           # additive mask (0 / -1e30)
    e = e - jnp.max(e, axis=-1, keepdims=True)        # safe exp (self-loops exist)
    p = jnp.exp(e).astype(mxu_dt)                     # unnormalized attention

    # One wide MXU pass: feature columns aggregate xw_h (placed block-diagonally in
    # the output lanes), the reserved all-ones column yields the softmax denominator,
    # so only the [TD, 128] result (not the [TD, N] slab) needs rescaling.
    contrib = jnp.dot(p, rhs_ref[...], preferred_element_type=jnp.float32)  # [TD, HP]
    denom = contrib[:, -1:]                           # row-sum of p (>= 1)
    acc_ref[...] += contrib * pl.reciprocal(denom, approx=True)
    # TODO(synk): attention dropout (p=0.6) omitted -> inference semantics.

    @pl.when(h == heads - 1)
    def _finalize():
        out = acc_ref[...] * mean_factor + bias_ref[...]
        if apply_elu:                                  # fused F.elu
            out = jnp.where(out > 0, out, jnp.exp(out) - 1.0)
        out_ref[...] = out.astype(out_ref.dtype)


def _pick_tile_dst(n, hp):
    """Destination-node tile sized from the true per-grid-step VMEM working set."""
    cb = jnp.dtype(_COMPUTE_DT).itemsize          # logits / exp slabs
    mb = jnp.dtype(_MXU_DT).itemsize              # p fed to the MXU
    # Dominant TD*N-scaled live buffers per step:
    #   adjacency tile (bf16, double-buffered): 4*TD*N
    #   logits/exp slabs (~3 live)            : 3*cb*TD*N
    #   unnormalized p for the MXU            : mb*TD*N
    per_row = (4 + 3 * cb + mb) * n
    # TD-scaled lane-padded blocks: acc + out (x2 buf) + sdst (x2 buf, padded lanes).
    per_row += (4 + 2 * 4 + 2 * 4) * hp
    fixed = 2 * n * hp * mb + 2 * 8 * n * 4       # rhs double-buffer + ssrc blocks
    budget = _VMEM_LIMIT // 2 - fixed
    tile = max(128, (budget // per_row) // 128 * 128)
    tile = min(tile, n)
    if n >= 256:        # guarantee >= 2 dst steps so "parallel" splits across v7x TCs
        tile = min(tile, (n // 2) // 128 * 128)
    while tile > 128 and n % tile:
        tile -= 128
    return max(tile, 128)


def gat_conv(x, adj_bias, w, a_src, a_dst, bias, *, heads, out_per_head,
             concat, apply_elu):
    n = x.shape[0]                       # padded node count (multiple of 128)
    c = out_per_head
    hc = heads * c
    hout = hc if concat else c
    hp = _round_up(hout + 1, 128)        # lane-dense output; last lane = denominator
    tile_dst = _pick_tile_dst(n, hp)

    # Block-diagonal score matrices: column h holds head h's attention vector.
    eye = jnp.eye(heads, dtype=jnp.float32)
    a_src_m = (a_src[:, :, None] * eye[:, None, :]).reshape(hc, heads).astype(_MXU_DT)
    a_dst_m = (a_dst[:, :, None] * eye[:, None, :]).reshape(hc, heads).astype(_MXU_DT)

    # Kernel 1: projection + scores (small, single shot, fully resident in VMEM).
    # TODO(synk): row-tile this call for very large N (low priority at these sizes).
    xw, ssrc, sdst = pl.pallas_call(
        _project_kernel,
        out_shape=(jax.ShapeDtypeStruct((n, hc), _MXU_DT),
                   jax.ShapeDtypeStruct((n, heads), jnp.float32),
                   jax.ShapeDtypeStruct((n, heads), jnp.float32)),
        in_specs=[pl.BlockSpec(memory_space=pltpu.MemorySpace.VMEM)] * 4,
        out_specs=(pl.BlockSpec(memory_space=pltpu.MemorySpace.VMEM),) * 3,
    )(x.astype(_MXU_DT), w.astype(_MXU_DT), a_src_m, a_dst_m)

    # Wrapper-side layout plumbing (plain XLA): per-head aggregation RHS packed along
    # the output lanes (block-diagonal for concat) + an all-ones denominator column.
    xw3 = xw.reshape(n, heads, c)
    rhs = jnp.zeros((heads, n, hp), _MXU_DT)
    for hh in range(heads):
        col = hh * c if concat else 0
        rhs = rhs.at[hh, :, col:col + c].set(xw3[:, hh, :])
    rhs = rhs.at[:, :, hp - 1].set(jnp.asarray(1.0, _MXU_DT))

    sdst3 = sdst.T.reshape(heads, n, 1)             # [H, N, 1] f32
    ssrc3 = ssrc.T.reshape(heads, 1, n)             # [H, 1, N] f32
    bias_p = jnp.zeros((1, hp), jnp.float32).at[0, :hout].set(bias.astype(jnp.float32))
    mean_factor = 1.0 if concat else 1.0 / heads

    kernel = functools.partial(
        _attend_kernel, heads=heads, mean_factor=mean_factor, apply_elu=apply_elu,
        compute_dt=_COMPUTE_DT, mxu_dt=_MXU_DT)

    out = pl.pallas_call(
        kernel,
        out_shape=jax.ShapeDtypeStruct((n, hp), jnp.float32),
        grid=(n // tile_dst, heads),
        in_specs=[
            pl.BlockSpec((None, tile_dst, 1), lambda i, h: (h, i, 0)),   # sdst tile
            pl.BlockSpec((None, 1, n), lambda i, h: (h, 0, 0)),          # ssrc (head h)
            pl.BlockSpec((None, n, hp), lambda i, h: (h, 0, 0)),         # packed xw_h
            pl.BlockSpec((1, hp), lambda i, h: (0, 0)),                  # bias
            pl.BlockSpec((tile_dst, n), lambda i, h: (i, 0)),            # adjacency
        ],
        out_specs=pl.BlockSpec((tile_dst, hp), lambda i, h: (i, 0)),
        scratch_shapes=[pltpu.VMEM((tile_dst, hp), jnp.float32)],
        compiler_params=pltpu.CompilerParams(
            dimension_semantics=("parallel", "arbitrary"),
            vmem_limit_bytes=_VMEM_LIMIT),
        cost_estimate=pl.CostEstimate(
            flops=int(2 * heads * n * n * hp + 6 * heads * n * n),
            transcendentals=int(heads * n * n),
            bytes_accessed=int(2 * n * n + 2 * heads * n * hp + 4 * n * hp)),
    )(sdst3, ssrc3, rhs, bias_p, adj_bias)
    return out[:, :hout]


def gat_forward(params, x, adj_bias, *, hidden, heads, out_channels):
    # F.dropout(p=0.6) -> identity in eval mode.
    h = gat_conv(x, adj_bias, params["w1"], params["asrc1"], params["adst1"],
                 params["b1"], heads=heads, out_per_head=hidden,
                 concat=True, apply_elu=True)
    # F.dropout(p=0.6) -> identity in eval mode.
    # TODO(synk): fusing both layers / projection+attend into one pallas_call (keeps
    # adj resident, saves launches) and a CSR scalar-prefetch path for sparse graphs
    # are left as follow-ups; the dense mask is re-read by the second layer.
    out = gat_conv(h, adj_bias, params["w2"], params["asrc2"], params["adst2"],
                   params["b2"], heads=1, out_per_head=out_channels,
                   concat=False, apply_elu=False)
    return out


def init_params(key, in_channels, hidden, heads, out_channels):
    ks = jax.random.split(key, 6)
    scale1 = 1.0 / jnp.sqrt(in_channels)
    scale2 = 1.0 / jnp.sqrt(hidden * heads)
    return {
        "w1": jax.random.normal(ks[0], (in_channels, heads * hidden),
                                jnp.float32) * scale1,
        "asrc1": jax.random.normal(ks[1], (heads, hidden), jnp.float32) * 0.1,
        "adst1": jax.random.normal(ks[2], (heads, hidden), jnp.float32) * 0.1,
        "b1": jnp.zeros((heads * hidden,), jnp.float32),
        "w2": jax.random.normal(ks[3], (heads * hidden, out_channels),
                                jnp.float32) * scale2,
        "asrc2": jax.random.normal(ks[4], (1, out_channels), jnp.float32) * 0.1,
        "adst2": jax.random.normal(ks[5], (1, out_channels), jnp.float32) * 0.1,
        "b2": jnp.zeros((out_channels,), jnp.float32),
    }


if __name__ == "__main__":
    N = 32            # nodes
    IN_CH = 16
    HIDDEN = 8
    HEADS = 8
    OUT_CH = 4
    E = 64            # edges

    key = jax.random.PRNGKey(0)
    kx, ksrc, kdst, kp = jax.random.split(key, 4)

    x = jax.random.normal(kx, (N, IN_CH), jnp.float32)
    src = jax.random.randint(ksrc, (E,), 0, N)
    dst = jax.random.randint(kdst, (E,), 0, N)

    # Pad node count to a multiple of 128 (lane width); padded rows keep a self-loop
    # so masked softmax rows are never empty, and padded columns stay masked out.
    NP = _round_up(N, 128)
    x_pad = jnp.zeros((NP, IN_CH), jnp.float32).at[:N].set(x)

    # Additive adjacency bias: 0 for edges/self-loops, -1e30 otherwise; stored bf16
    # (halves the O(N^2) HBM/VMEM traffic) and shared by both layers.
    adj_bias = jnp.full((NP, NP), NEG_INF, jnp.float32)
    adj_bias = adj_bias.at[dst, src].set(0.0)                     # adj[dst, src]
    adj_bias = adj_bias.at[jnp.arange(NP), jnp.arange(NP)].set(0.0)
    adj_bias = adj_bias.astype(jnp.bfloat16)

    params = init_params(kp, IN_CH, HIDDEN, HEADS, OUT_CH)

    fwd = jax.jit(functools.partial(gat_forward, hidden=HIDDEN, heads=HEADS,
                                    out_channels=OUT_CH))
    out_pad = fwd(params, x_pad, adj_bias)
    out = jax.block_until_ready(out_pad)[:N]

    assert out.shape == (N, OUT_CH), out.shape
    assert bool(jnp.all(jnp.isfinite(out)))
    print("KERNEL_OK")
</pallas_src>

<mosaic_0001>
module attributes {stable_mosaic.version = 11 : i64} {
  func.func @_project_kernel(%arg0: memref<128x16xf32, #tpu.memory_space<vmem>>, %arg1: memref<16x64xf32, #tpu.memory_space<vmem>>, %arg2: memref<64x8xf32, #tpu.memory_space<vmem>>, %arg3: memref<64x8xf32, #tpu.memory_space<vmem>>, %arg4: memref<128x64xf32, #tpu.memory_space<vmem>>, %arg5: memref<128x8xf32, #tpu.memory_space<vmem>>, %arg6: memref<128x8xf32, #tpu.memory_space<vmem>>) attributes {dimension_semantics = [], scalar_prefetch = 0 : i64, scratch_operands = 0 : i64, tpu.core_type = #tpu.core_type<tc>} {
    %c0 = arith.constant 0 : index
    %c0_0 = arith.constant 0 : index
    %0 = vector.load %arg0[%c0, %c0_0] : memref<128x16xf32, #tpu.memory_space<vmem>>, vector<128x16xf32>
    %c0_1 = arith.constant 0 : index
    %c0_2 = arith.constant 0 : index
    %1 = vector.load %arg1[%c0_1, %c0_2] : memref<16x64xf32, #tpu.memory_space<vmem>>, vector<16x64xf32>
    %cst = arith.constant dense<0.000000e+00> : vector<128x64xf32>
    %2 = tpu.matmul %0, %1, %cst {dimension_numbers = #tpu.dot_dimension_numbers<[1], [0], [0], [1], [0, 0, 1, 1], [], []>} : vector<128x16xf32>, vector<16x64xf32>, vector<128x64xf32> -> vector<128x64xf32>
    %c0_3 = arith.constant 0 : index
    %c0_4 = arith.constant 0 : index
    %3 = vector.load %arg4[%c0_3, %c0_4] : memref<128x64xf32, #tpu.memory_space<vmem>>, vector<128x64xf32>
    tpu.vector_store %arg4[%c0_3, %c0_4], %2 {strides = array<i32>} : memref<128x64xf32, #tpu.memory_space<vmem>>, vector<128x64xf32>,
    %c0_5 = arith.constant 0 : index
    %c0_6 = arith.constant 0 : index
    %4 = vector.load %arg2[%c0_5, %c0_6] : memref<64x8xf32, #tpu.memory_space<vmem>>, vector<64x8xf32>
    %cst_7 = arith.constant dense<0.000000e+00> : vector<128x8xf32>
    %5 = tpu.matmul %2, %4, %cst_7 {dimension_numbers = #tpu.dot_dimension_numbers<[1], [0], [0], [1], [0, 0, 1, 1], [], []>} : vector<128x64xf32>, vector<64x8xf32>, vector<128x8xf32> -> vector<128x8xf32>
    %c0_8 = arith.constant 0 : index
    %c0_9 = arith.constant 0 : index
    %6 = vector.load %arg5[%c0_8, %c0_9] : memref<128x8xf32, #tpu.memory_space<vmem>>, vector<128x8xf32>
    tpu.vector_store %arg5[%c0_8, %c0_9], %5 {strides = array<i32>} : memref<128x8xf32, #tpu.memory_space<vmem>>, vector<128x8xf32>,
    %c0_10 = arith.constant 0 : index
    %c0_11 = arith.constant 0 : index
    %7 = vector.load %arg3[%c0_10, %c0_11] : memref<64x8xf32, #tpu.memory_space<vmem>>, vector<64x8xf32>
    %cst_12 = arith.constant dense<0.000000e+00> : vector<128x8xf32>
    %8 = tpu.matmul %2, %7, %cst_12 {dimension_numbers = #tpu.dot_dimension_numbers<[1], [0], [0], [1], [0, 0, 1, 1], [], []>} : vector<128x64xf32>, vector<64x8xf32>, vector<128x8xf32> -> vector<128x8xf32>
    %c0_13 = arith.constant 0 : index
    %c0_14 = arith.constant 0 : index
    %9 = vector.load %arg6[%c0_13, %c0_14] : memref<128x8xf32, #tpu.memory_space<vmem>>, vector<128x8xf32>
    tpu.vector_store %arg6[%c0_13, %c0_14], %8 {strides = array<i32>} : memref<128x8xf32, #tpu.memory_space<vmem>>, vector<128x8xf32>,
    return
  }
}

module attributes {stable_mosaic.version = 11 : i64} {
  func.func @_attend_kernel(%arg0: i32, %arg1: i32, %arg2: memref<1x128x1xf32, #tpu.memory_space<vmem>>, %arg3: memref<1x1x128xf32, #tpu.memory_space<vmem>>, %arg4: memref<1x128x128xf32, #tpu.memory_space<vmem>>, %arg5: memref<1x128xf32, #tpu.memory_space<vmem>>, %arg6: memref<128x128xbf16, #tpu.memory_space<vmem>>, %arg7: memref<128x128xf32, #tpu.memory_space<vmem>>, %arg8: memref<128x128xf32, #tpu.memory_space<vmem>>) attributes {dimension_semantics = [#tpu.dimension_semantics<parallel>, #tpu.dimension_semantics<arbitrary>], iteration_bounds = array<i64: 1, 8>, scalar_prefetch = 0 : i64, scratch_operands = 1 : i64, tpu.core_type = #tpu.core_type<tc>, window_params = [{transform_indices = @transform_0, window_bounds = array<i64: 1, 128, 1>}, {transform_indices = @transform_1, window_bounds = array<i64: 1, 1, 128>}, {transform_indices = @transform_2, window_bounds = array<i64: 1, 128, 128>}, {pipeline_mode = #tpu.pipeline_mode<synchronous>, transform_indices = @transform_3, window_bounds = array<i64: 1, 128>}, {transform_indices = @transform_4, window_bounds = array<i64: 128, 128>}, {transform_indices = @transform_5, window_bounds = array<i64: 128, 128>}]} {
    %c0_i32 = arith.constant 0 : i32
    %0 = arith.cmpi eq, %arg1, %c0_i32 : i32
    %1 = arith.extui %0 : i1 to i32
    %c0_i32_0 = arith.constant 0 : i32
    %2 = arith.cmpi ne, %1, %c0_i32_0 : i32
    scf.if %2 {
      %cst_18 = arith.constant 0.000000e+00 : f32
      %34 = vector.broadcast %cst_18 : f32 to vector<128x128xf32>
      %c0_19 = arith.constant 0 : index
      %c0_20 = arith.constant 0 : index
      %35 = vector.load %arg8[%c0_19, %c0_20] : memref<128x128xf32, #tpu.memory_space<vmem>>, vector<128x128xf32>
      tpu.vector_store %arg8[%c0_19, %c0_20], %34 {strides = array<i32>} : memref<128x128xf32, #tpu.memory_space<vmem>>, vector<128x128xf32>,
    } else {
    }
    %c0 = arith.constant 0 : index
    %c0_1 = arith.constant 0 : index
    %c0_2 = arith.constant 0 : index
    %3 = vector.load %arg2[%c0, %c0_1, %c0_2] : memref<1x128x1xf32, #tpu.memory_space<vmem>>, vector<1x128x1xf32>
    %4 = vector.shape_cast %3 : vector<1x128x1xf32> to vector<128x1xf32>
    %c0_3 = arith.constant 0 : index
    %c0_4 = arith.constant 0 : index
    %c0_5 = arith.constant 0 : index
    %5 = vector.load %arg3[%c0_3, %c0_4, %c0_5] : memref<1x1x128xf32, #tpu.memory_space<vmem>>, vector<1x1x128xf32>
    %6 = vector.shape_cast %5 : vector<1x1x128xf32> to vector<1x128xf32>
    %7 = vector.broadcast %4 : vector<128x1xf32> to vector<128x128xf32>
    %8 = vector.broadcast %6 : vector<1x128xf32> to vector<128x128xf32>
    %9 = arith.addf %7, %8 : vector<128x128xf32>
    %cst = arith.constant 2.000000e-01 : f32
    %10 = vector.broadcast %cst : f32 to vector<128x128xf32>
    %11 = arith.mulf %10, %9 : vector<128x128xf32>
    %12 = arith.maximumf %9, %11 : vector<128x128xf32>
    %c0_6 = arith.constant 0 : index
    %c0_7 = arith.constant 0 : index
    %13 = vector.load %arg6[%c0_6, %c0_7] : memref<128x128xbf16, #tpu.memory_space<vmem>>, vector<128x128xbf16>
    %14 = arith.extf %13 : vector<128x128xbf16> to vector<128x128xf32>
    %15 = arith.addf %12, %14 : vector<128x128xf32>
    %cst_8 = arith.constant dense<0xFF800000> : vector<128xf32>
    %16 = vector.multi_reduction <maximumf>, %15, %cst_8 [1] : vector<128x128xf32> to vector<128xf32>
    %17 = vector.shape_cast %16 : vector<128xf32> to vector<128x1xf32>
    %18 = vector.broadcast %17 : vector<128x1xf32> to vector<128x128xf32>
    %19 = arith.subf %15, %18 : vector<128x128xf32>
    %20 = math.exp %19 : vector<128x128xf32>
    %c0_9 = arith.constant 0 : index
    %c0_10 = arith.constant 0 : index
    %c0_11 = arith.constant 0 : index
    %21 = vector.load %arg4[%c0_9, %c0_10, %c0_11] : memref<1x128x128xf32, #tpu.memory_space<vmem>>, vector<1x128x128xf32>
    %22 = vector.shape_cast %21 : vector<1x128x128xf32> to vector<128x128xf32>
    %cst_12 = arith.constant dense<0.000000e+00> : vector<128x128xf32>
    %23 = tpu.matmul %20, %22, %cst_12 {dimension_numbers = #tpu.dot_dimension_numbers<[1], [0], [0], [1], [0, 0, 1, 1], [], []>} : vector<128x128xf32>, vector<128x128xf32>, vector<128x128xf32> -> vector<128x128xf32>
    %24 = vector.extract_strided_slice %23 {offsets = [0, 127], sizes = [128, 1], strides = [1, 1]} : vector<128x128xf32> to vector<128x1xf32>
    %c0_13 = arith.constant 0 : index
    %c0_14 = arith.constant 0 : index
    %25 = vector.load %arg8[%c0_13, %c0_14] : memref<128x128xf32, #tpu.memory_space<vmem>>, vector<128x128xf32>
    %26 = tpu.reciprocal %24 {approx = true} : vector<128x1xf32> -> vector<128x1xf32>
    %27 = vector.broadcast %26 : vector<128x1xf32> to vector<128x128xf32>
    %28 = arith.mulf %23, %27 : vector<128x128xf32>
    %29 = arith.addf %25, %28 : vector<128x128xf32>
    %c0_15 = arith.constant 0 : index
    %c0_16 = arith.constant 0 : index
    %30 = vector.load %arg8[%c0_15, %c0_16] : memref<128x128xf32, #tpu.memory_space<vmem>>, vector<128x128xf32>
    tpu.vector_store %arg8[%c0_15, %c0_16], %29 {strides = array<i32>} : memref<128x128xf32, #tpu.memory_space<vmem>>, vector<128x128xf32>,
    %c7_i32 = arith.constant 7 : i32
    %31 = arith.cmpi eq, %arg1, %c7_i32 : i32
    %32 = arith.extui %31 : i1 to i32
    %c0_i32_17 = arith.constant 0 : i32
    %33 = arith.cmpi ne, %32, %c0_i32_17 : i32
    scf.if %33 {
      %c0_18 = arith.constant 0 : index
      %c0_19 = arith.constant 0 : index
      %34 = vector.load %arg8[%c0_18, %c0_19] : memref<128x128xf32, #tpu.memory_space<vmem>>, vector<128x128xf32>
      %cst_20 = arith.constant 1.000000e+00 : f32
      %35 = vector.broadcast %cst_20 : f32 to vector<128x128xf32>
      %36 = arith.mulf %34, %35 : vector<128x128xf32>
      %c0_21 = arith.constant 0 : index
      %c0_22 = arith.constant 0 : index
      %37 = vector.load %arg5[%c0_21, %c0_22] : memref<1x128xf32, #tpu.memory_space<vmem>>, vector<1x128xf32>
      %38 = vector.broadcast %37 : vector<1x128xf32> to vector<128x128xf32>
      %39 = arith.addf %36, %38 : vector<128x128xf32>
      %cst_23 = arith.constant 0.000000e+00 : f32
      %40 = vector.broadcast %cst_23 : f32 to vector<128x128xf32>
      %41 = arith.cmpf ogt, %39, %40 : vector<128x128xf32>
      %42 = math.exp %39 : vector<128x128xf32>
      %cst_24 = arith.constant 1.000000e+00 : f32
      %43 = vector.broadcast %cst_24 : f32 to vector<128x128xf32>
      %44 = arith.subf %42, %43 : vector<128x128xf32>
      %45 = arith.select %41, %39, %44 : vector<128x128xi1>, vector<128x128xf32>
      %c0_25 = arith.constant 0 : index
      %c0_26 = arith.constant 0 : index
      %46 = vector.load %arg7[%c0_25, %c0_26] : memref<128x128xf32, #tpu.memory_space<vmem>>, vector<128x128xf32>
      tpu.vector_store %arg7[%c0_25, %c0_26], %45 {strides = array<i32>} : memref<128x128xf32, #tpu.memory_space<vmem>>, vector<128x128xf32>,
    } else {
    }
    return
  }
  func.func @transform_0(%arg0: i32, %arg1: i32) -> (i32, i32, i32) {
    %c0_i32 = arith.constant 0 : i32
    %c0_i32_0 = arith.constant 0 : i32
    return %arg1, %arg0, %c0_i32 : i32, i32, i32
  }
  func.func @transform_1(%arg0: i32, %arg1: i32) -> (i32, i32, i32) {
    %c0_i32 = arith.constant 0 : i32
    %c0_i32_0 = arith.constant 0 : i32
    %c0_i32_1 = arith.constant 0 : i32
    return %arg1, %c0_i32, %c0_i32_0 : i32, i32, i32
  }
  func.func @transform_2(%arg0: i32, %arg1: i32) -> (i32, i32, i32) {
    %c0_i32 = arith.constant 0 : i32
    %c0_i32_0 = arith.constant 0 : i32
    %c0_i32_1 = arith.constant 0 : i32
    return %arg1, %c0_i32, %c0_i32_0 : i32, i32, i32
  }
  func.func @transform_3(%arg0: i32, %arg1: i32) -> (i32, i32) {
    %c0_i32 = arith.constant 0 : i32
    %c0_i32_0 = arith.constant 0 : i32
    %c0_i32_1 = arith.constant 0 : i32
    return %c0_i32, %c0_i32_0 : i32, i32
  }
  func.func @transform_4(%arg0: i32, %arg1: i32) -> (i32, i32) {
    %c0_i32 = arith.constant 0 : i32
    %c0_i32_0 = arith.constant 0 : i32
    return %arg0, %c0_i32 : i32, i32
  }
  func.func @transform_5(%arg0: i32, %arg1: i32) -> (i32, i32) {
    %c0_i32 = arith.constant 0 : i32
    %c0_i32_0 = arith.constant 0 : i32
    return %arg0, %c0_i32 : i32, i32
  }
}

module attributes {stable_mosaic.version = 11 : i64} {
  func.func @_project_kernel(%arg0: memref<128x64xf32, #tpu.memory_space<vmem>>, %arg1: memref<64x4xf32, #tpu.memory_space<vmem>>, %arg2: memref<4x1xf32, #tpu.memory_space<vmem>>, %arg3: memref<4x1xf32, #tpu.memory_space<vmem>>, %arg4: memref<128x4xf32, #tpu.memory_space<vmem>>, %arg5: memref<128x1xf32, #tpu.memory_space<vmem>>, %arg6: memref<128x1xf32, #tpu.memory_space<vmem>>) attributes {dimension_semantics = [], scalar_prefetch = 0 : i64, scratch_operands = 0 : i64, tpu.core_type = #tpu.core_type<tc>} {
    %c0 = arith.constant 0 : index
    %c0_0 = arith.constant 0 : index
    %0 = vector.load %arg0[%c0, %c0_0] : memref<128x64xf32, #tpu.memory_space<vmem>>, vector<128x64xf32>
    %c0_1 = arith.constant 0 : index
    %c0_2 = arith.constant 0 : index
    %1 = vector.load %arg1[%c0_1, %c0_2] : memref<64x4xf32, #tpu.memory_space<vmem>>, vector<64x4xf32>
    %cst = arith.constant dense<0.000000e+00> : vector<128x4xf32>
    %2 = tpu.matmul %0, %1, %cst {dimension_numbers = #tpu.dot_dimension_numbers<[1], [0], [0], [1], [0, 0, 1, 1], [], []>} : vector<128x64xf32>, vector<64x4xf32>, vector<128x4xf32> -> vector<128x4xf32>
    %c0_3 = arith.constant 0 : index
    %c0_4 = arith.constant 0 : index
    %3 = vector.load %arg4[%c0_3, %c0_4] : memref<128x4xf32, #tpu.memory_space<vmem>>, vector<128x4xf32>
    tpu.vector_store %arg4[%c0_3, %c0_4], %2 {strides = array<i32>} : memref<128x4xf32, #tpu.memory_space<vmem>>, vector<128x4xf32>,
    %c0_5 = arith.constant 0 : index
    %c0_6 = arith.constant 0 : index
    %4 = vector.load %arg2[%c0_5, %c0_6] : memref<4x1xf32, #tpu.memory_space<vmem>>, vector<4x1xf32>
    %cst_7 = arith.constant dense<0.000000e+00> : vector<128x1xf32>
    %5 = tpu.matmul %2, %4, %cst_7 {dimension_numbers = #tpu.dot_dimension_numbers<[1], [0], [0], [1], [0, 0, 1, 1], [], []>} : vector<128x4xf32>, vector<4x1xf32>, vector<128x1xf32> -> vector<128x1xf32>
    %c0_8 = arith.constant 0 : index
    %c0_9 = arith.constant 0 : index
    %6 = vector.load %arg5[%c0_8, %c0_9] : memref<128x1xf32, #tpu.memory_space<vmem>>, vector<128x1xf32>
    tpu.vector_store %arg5[%c0_8, %c0_9], %5 {strides = array<i32>} : memref<128x1xf32, #tpu.memory_space<vmem>>, vector<128x1xf32>,
    %c0_10 = arith.constant 0 : index
    %c0_11 = arith.constant 0 : index
    %7 = vector.load %arg3[%c0_10, %c0_11] : memref<4x1xf32, #tpu.memory_space<vmem>>, vector<4x1xf32>
    %cst_12 = arith.constant dense<0.000000e+00> : vector<128x1xf32>
    %8 = tpu.matmul %2, %7, %cst_12 {dimension_numbers = #tpu.dot_dimension_numbers<[1], [0], [0], [1], [0, 0, 1, 1], [], []>} : vector<128x4xf32>, vector<4x1xf32>, vector<128x1xf32> -> vector<128x1xf32>
    %c0_13 = arith.constant 0 : index
    %c0_14 = arith.constant 0 : index
    %9 = vector.load %arg6[%c0_13, %c0_14] : memref<128x1xf32, #tpu.memory_space<vmem>>, vector<128x1xf32>
    tpu.vector_store %arg6[%c0_13, %c0_14], %8 {strides = array<i32>} : memref<128x1xf32, #tpu.memory_space<vmem>>, vector<128x1xf32>,
    return
  }
}

module attributes {stable_mosaic.version = 11 : i64} {
  func.func @_attend_kernel(%arg0: i32, %arg1: i32, %arg2: memref<1x128x1xf32, #tpu.memory_space<vmem>>, %arg3: memref<1x1x128xf32, #tpu.memory_space<vmem>>, %arg4: memref<1x128x128xf32, #tpu.memory_space<vmem>>, %arg5: memref<1x128xf32, #tpu.memory_space<vmem>>, %arg6: memref<128x128xbf16, #tpu.memory_space<vmem>>, %arg7: memref<128x128xf32, #tpu.memory_space<vmem>>, %arg8: memref<128x128xf32, #tpu.memory_space<vmem>>) attributes {dimension_semantics = [#tpu.dimension_semantics<parallel>, #tpu.dimension_semantics<arbitrary>], iteration_bounds = array<i64: 1, 1>, scalar_prefetch = 0 : i64, scratch_operands = 1 : i64, tpu.core_type = #tpu.core_type<tc>, window_params = [{transform_indices = @transform_0, window_bounds = array<i64: 1, 128, 1>}, {transform_indices = @transform_1, window_bounds = array<i64: 1, 1, 128>}, {transform_indices = @transform_2, window_bounds = array<i64: 1, 128, 128>}, {pipeline_mode = #tpu.pipeline_mode<synchronous>, transform_indices = @transform_3, window_bounds = array<i64: 1, 128>}, {transform_indices = @transform_4, window_bounds = array<i64: 128, 128>}, {transform_indices = @transform_5, window_bounds = array<i64: 128, 128>}]} {
    %c0_i32 = arith.constant 0 : i32
    %0 = arith.cmpi eq, %arg1, %c0_i32 : i32
    %1 = arith.extui %0 : i1 to i32
    %c0_i32_0 = arith.constant 0 : i32
    %2 = arith.cmpi ne, %1, %c0_i32_0 : i32
    scf.if %2 {
      %cst_19 = arith.constant 0.000000e+00 : f32
      %34 = vector.broadcast %cst_19 : f32 to vector<128x128xf32>
      %c0_20 = arith.constant 0 : index
      %c0_21 = arith.constant 0 : index
      %35 = vector.load %arg8[%c0_20, %c0_21] : memref<128x128xf32, #tpu.memory_space<vmem>>, vector<128x128xf32>
      tpu.vector_store %arg8[%c0_20, %c0_21], %34 {strides = array<i32>} : memref<128x128xf32, #tpu.memory_space<vmem>>, vector<128x128xf32>,
    } else {
    }
    %c0 = arith.constant 0 : index
    %c0_1 = arith.constant 0 : index
    %c0_2 = arith.constant 0 : index
    %3 = vector.load %arg2[%c0, %c0_1, %c0_2] : memref<1x128x1xf32, #tpu.memory_space<vmem>>, vector<1x128x1xf32>
    %4 = vector.shape_cast %3 : vector<1x128x1xf32> to vector<128x1xf32>
    %c0_3 = arith.constant 0 : index
    %c0_4 = arith.constant 0 : index
    %c0_5 = arith.constant 0 : index
    %5 = vector.load %arg3[%c0_3, %c0_4, %c0_5] : memref<1x1x128xf32, #tpu.memory_space<vmem>>, vector<1x1x128xf32>
    %6 = vector.shape_cast %5 : vector<1x1x128xf32> to vector<1x128xf32>
    %7 = vector.broadcast %4 : vector<128x1xf32> to vector<128x128xf32>
    %8 = vector.broadcast %6 : vector<1x128xf32> to vector<128x128xf32>
    %9 = arith.addf %7, %8 : vector<128x128xf32>
    %cst = arith.constant 2.000000e-01 : f32
    %10 = vector.broadcast %cst : f32 to vector<128x128xf32>
    %11 = arith.mulf %10, %9 : vector<128x128xf32>
    %12 = arith.maximumf %9, %11 : vector<128x128xf32>
    %c0_6 = arith.constant 0 : index
    %c0_7 = arith.constant 0 : index
    %13 = vector.load %arg6[%c0_6, %c0_7] : memref<128x128xbf16, #tpu.memory_space<vmem>>, vector<128x128xbf16>
    %14 = arith.extf %13 : vector<128x128xbf16> to vector<128x128xf32>
    %15 = arith.addf %12, %14 : vector<128x128xf32>
    %cst_8 = arith.constant dense<0xFF800000> : vector<128xf32>
    %16 = vector.multi_reduction <maximumf>, %15, %cst_8 [1] : vector<128x128xf32> to vector<128xf32>
    %17 = vector.shape_cast %16 : vector<128xf32> to vector<128x1xf32>
    %18 = vector.broadcast %17 : vector<128x1xf32> to vector<128x128xf32>
    %19 = arith.subf %15, %18 : vector<128x128xf32>
    %20 = math.exp %19 : vector<128x128xf32>
    %c0_9 = arith.constant 0 : index
    %c0_10 = arith.constant 0 : index
    %c0_11 = arith.constant 0 : index
    %21 = vector.load %arg4[%c0_9, %c0_10, %c0_11] : memref<1x128x128xf32, #tpu.memory_space<vmem>>, vector<1x128x128xf32>
    %22 = vector.shape_cast %21 : vector<1x128x128xf32> to vector<128x128xf32>
    %cst_12 = arith.constant dense<0.000000e+00> : vector<128x128xf32>
    %23 = tpu.matmul %20, %22, %cst_12 {dimension_numbers = #tpu.dot_dimension_numbers<[1], [0], [0], [1], [0, 0, 1, 1], [], []>} : vector<128x128xf32>, vector<128x128xf32>, vector<128x128xf32> -> vector<128x128xf32>
    %24 = vector.extract_strided_slice %23 {offsets = [0, 127], sizes = [128, 1], strides = [1, 1]} : vector<128x128xf32> to vector<128x1xf32>
    %c0_13 = arith.constant 0 : index
    %c0_14 = arith.constant 0 : index
    %25 = vector.load %arg8[%c0_13, %c0_14] : memref<128x128xf32, #tpu.memory_space<vmem>>, vector<128x128xf32>
    %26 = tpu.reciprocal %24 {approx = true} : vector<128x1xf32> -> vector<128x1xf32>
    %27 = vector.broadcast %26 : vector<128x1xf32> to vector<128x128xf32>
    %28 = arith.mulf %23, %27 : vector<128x128xf32>
    %29 = arith.addf %25, %28 : vector<128x128xf32>
    %c0_15 = arith.constant 0 : index
    %c0_16 = arith.constant 0 : index
    %30 = vector.load %arg8[%c0_15, %c0_16] : memref<128x128xf32, #tpu.memory_space<vmem>>, vector<128x128xf32>
    tpu.vector_store %arg8[%c0_15, %c0_16], %29 {strides = array<i32>} : memref<128x128xf32, #tpu.memory_space<vmem>>, vector<128x128xf32>,
    %c0_i32_17 = arith.constant 0 : i32
    %31 = arith.cmpi eq, %arg1, %c0_i32_17 : i32
    %32 = arith.extui %31 : i1 to i32
    %c0_i32_18 = arith.constant 0 : i32
    %33 = arith.cmpi ne, %32, %c0_i32_18 : i32
    scf.if %33 {
      %c0_19 = arith.constant 0 : index
      %c0_20 = arith.constant 0 : index
      %34 = vector.load %arg8[%c0_19, %c0_20] : memref<128x128xf32, #tpu.memory_space<vmem>>, vector<128x128xf32>
      %cst_21 = arith.constant 1.000000e+00 : f32
      %35 = vector.broadcast %cst_21 : f32 to vector<128x128xf32>
      %36 = arith.mulf %34, %35 : vector<128x128xf32>
      %c0_22 = arith.constant 0 : index
      %c0_23 = arith.constant 0 : index
      %37 = vector.load %arg5[%c0_22, %c0_23] : memref<1x128xf32, #tpu.memory_space<vmem>>, vector<1x128xf32>
      %38 = vector.broadcast %37 : vector<1x128xf32> to vector<128x128xf32>
      %39 = arith.addf %36, %38 : vector<128x128xf32>
      %c0_24 = arith.constant 0 : index
      %c0_25 = arith.constant 0 : index
      %40 = vector.load %arg7[%c0_24, %c0_25] : memref<128x128xf32, #tpu.memory_space<vmem>>, vector<128x128xf32>
      tpu.vector_store %arg7[%c0_24, %c0_25], %39 {strides = array<i32>} : memref<128x128xf32, #tpu.memory_space<vmem>>, vector<128x128xf32>,
    } else {
    }
    return
  }
  func.func @transform_0(%arg0: i32, %arg1: i32) -> (i32, i32, i32) {
    %c0_i32 = arith.constant 0 : i32
    %c0_i32_0 = arith.constant 0 : i32
    return %arg1, %arg0, %c0_i32 : i32, i32, i32
  }
  func.func @transform_1(%arg0: i32, %arg1: i32) -> (i32, i32, i32) {
    %c0_i32 = arith.constant 0 : i32
    %c0_i32_0 = arith.constant 0 : i32
    %c0_i32_1 = arith.constant 0 : i32
    return %arg1, %c0_i32, %c0_i32_0 : i32, i32, i32
  }
  func.func @transform_2(%arg0: i32, %arg1: i32) -> (i32, i32, i32) {
    %c0_i32 = arith.constant 0 : i32
    %c0_i32_0 = arith.constant 0 : i32
    %c0_i32_1 = arith.constant 0 : i32
    return %arg1, %c0_i32, %c0_i32_0 : i32, i32, i32
  }
  func.func @transform_3(%arg0: i32, %arg1: i32) -> (i32, i32) {
    %c0_i32 = arith.constant 0 : i32
    %c0_i32_0 = arith.constant 0 : i32
    %c0_i32_1 = arith.constant 0 : i32
    return %c0_i32, %c0_i32_0 : i32, i32
  }
  func.func @transform_4(%arg0: i32, %arg1: i32) -> (i32, i32) {
    %c0_i32 = arith.constant 0 : i32
    %c0_i32_0 = arith.constant 0 : i32
    return %arg0, %c0_i32 : i32, i32
  }
  func.func @transform_5(%arg0: i32, %arg1: i32) -> (i32, i32) {
    %c0_i32 = arith.constant 0 : i32
    %c0_i32_0 = arith.constant 0 : i32
    return %arg0, %c0_i32 : i32, i32
  }
}

</mosaic_0001>

<llo_original>
// kernel: gat_forward.4
$region0: #{gat_forward.4}
  #allocation0 [shape = 'u32[]', space=smem, size = 0x4, offset = 0x4, fixed_abs, tag = 'smem constant byte address 0x4 - core index']
  #allocation1 [shape = 'u32[144,128]{1,0:T(1,128)}', space=vmem, size = 0x12000, scoped, tag = 'internal scratch']
  %s0 = inlined_call_operand.vmem [shape: f32[128,16], index: 0, kind: input, shape index: {}]
  %s1 = inlined_call_operand.vmem [shape: f32[16,64], index: 1, kind: input, shape index: {}]
  %s2 = inlined_call_operand.vmem [shape: f32[64,8], index: 2, kind: input, shape index: {}]
  %s3 = inlined_call_operand.vmem [shape: f32[64,8], index: 3, kind: input, shape index: {}]
  %s4 = inlined_call_operand.vmem [shape: f32[128,64], index: 4, kind: output, shape index: {0}]
  %s5 = inlined_call_operand.vmem [shape: f32[128,8], index: 5, kind: output, shape index: {1}]
  %s6 = inlined_call_operand.vmem [shape: f32[128,8], index: 6, kind: output, shape index: {2}]
  %7 = xla_tuple %s4, %s5, %s6
  %s8 = sld [smem:[#allocation0]]
  $region42: #{gat_forward.4} parent=0
    _
  %s10 = ssub.s32 1, %s8
  %s11 = scalar_select 0, %s10, %s8
  // Predicated region
  $region2: #{gat_forward.4} parent=0 // pred_check
    _
  $region3: #{gat_forward.4} parent=0 // pred_check_branch
    %13 = sbr.rel (0) target = $region5
  $region4: #{gat_forward.4} parent=0 // pred_region
    _
  $region5: #{gat_forward.4} parent=0 // pred_fallthru
    _
  // Predicated region
  $region6: #{gat_forward.4} parent=0 // pred_check
    _
  $region7: #{gat_forward.4} parent=0 // pred_check_branch
    %15 = sbr.rel (0) target = $region9
  $region8: #{gat_forward.4} parent=0 // pred_region
    _
  $region9: #{gat_forward.4} parent=0 // pred_fallthru
    _
  // Predicated region
  $region10: #{gat_forward.4} parent=0 // pred_check
    _
  $region11: #{gat_forward.4} parent=0 // pred_check_branch
    %17 = sbr.rel (0) target = $region13
  $region12: #{gat_forward.4} parent=0 // pred_region
    _
  $region13: #{gat_forward.4} parent=0 // pred_fallthru
    _
  // Predicated region
  $region14: #{gat_forward.4} parent=0 // pred_check
    _
  $region15: #{gat_forward.4} parent=0 // pred_check_branch
    %19 = sbr.rel (0) target = $region17
  $region16: #{gat_forward.4} parent=0 // pred_region
    _
  $region17: #{gat_forward.4} parent=0 // pred_fallthru
    _
  %v20 = vld [vmem:[%s0] sm:$0xff]
  %v21 = vld [vmem:[%s0 + $0x8] sm:$0xff]
  %v22 = vld [vmem:[%s0 + $0x10] sm:$0xff]
  %v23 = vld [vmem:[%s0 + $0x18] sm:$0xff]
  %v24 = vld [vmem:[%s0 + $0x20] sm:$0xff]
  %v25 = vld [vmem:[%s0 + $0x28] sm:$0xff]
  %v26 = vld [vmem:[%s0 + $0x30] sm:$0xff]
  %v27 = vld [vmem:[%s0 + $0x38] sm:$0xff]
  %v28 = vld [vmem:[%s0 + $0x40] sm:$0xff]
  %v29 = vld [vmem:[%s0 + $0x48] sm:$0xff]
  %v30 = vld [vmem:[%s0 + $0x50] sm:$0xff]
  %v31 = vld [vmem:[%s0 + $0x58] sm:$0xff]
  %v32 = vld [vmem:[%s0 + $0x60] sm:$0xff]
  %v33 = vld [vmem:[%s0 + $0x68] sm:$0xff]
  %v34 = vld [vmem:[%s0 + $0x70] sm:$0xff]
  %v35 = vld [vmem:[%s0 + $0x78] sm:$0xff]
  %v36 = vld [vmem:[%s1] sm:$0xff]
  %v37 = vld [vmem:[%s1 + $0x8] sm:$0xff]
  %vm38 = vcmask 130048
  %v40 = vsel %vm38, %v20, 0
  %v43 = vsel %vm38, %v21, 0
  %v46 = vsel %vm38, %v22, 0
  %v49 = vsel %vm38, %v23, 0
  %v52 = vsel %vm38, %v24, 0
  %v55 = vsel %vm38, %v25, 0
  %v58 = vsel %vm38, %v26, 0
  %v61 = vsel %vm38, %v27, 0
  %v64 = vsel %vm38, %v28, 0
  %v67 = vsel %vm38, %v29, 0
  %v70 = vsel %vm38, %v30, 0
  %v73 = vsel %vm38, %v31, 0
  %v76 = vsel %vm38, %v32, 0
  %v79 = vsel %vm38, %v33, 0
  %v82 = vsel %vm38, %v34, 0
  %v85 = vsel %vm38, %v35, 0
  %87 = vmatprep.subr.mxu0 0.0
  %88 = vmatpush1.msra.mxu0 %v36
  %89 = vmatprep.subr.mxu0 0.0
  %90 = vmatpush1.msra.mxu0 %v37
  %91 = vmatprep.subr.mxu0 0.0
  %92 = vmatpush1.msra.mxu0 0.0
  %93 = vmatprep.subr.mxu0 0.0
  %94 = vmatpush1.msra.mxu0 0.0
  %95 = vmatprep.subr.mxu0 0.0
  %96 = vmatpush1.msra.mxu0 0.0
  %97 = vmatprep.subr.mxu0 0.0
  %98 = vmatpush1.msra.mxu0 0.0
  %99 = vmatprep.subr.mxu0 0.0
  %100 = vmatpush1.msra.mxu0 0.0
  %101 = vmatprep.subr.mxu0 0.0
  %102 = vmatpush1.msra.mxu0 0.0
  %103 = vmatprep.subr.mxu0 0.0
  %104 = vmatpush1.msra.mxu0 0.0
  %105 = vmatprep.subr.mxu0 0.0
  %106 = vmatpush1.msra.mxu0 0.0
  %107 = vmatprep.subr.mxu0 0.0
  %108 = vmatpush1.msra.mxu0 0.0
  %109 = vmatprep.subr.mxu0 0.0
  %110 = vmatpush1.msra.mxu0 0.0
  %111 = vmatprep.subr.mxu0 0.0
  %112 = vmatpush1.msra.mxu0 0.0
  %113 = vmatprep.subr.mxu0 0.0
  %114 = vmatpush1.msra.mxu0 0.0
  %115 = vmatprep.subr.mxu0 0.0
  %116 = vmatpush1.msra.mxu0 0.0
  %117 = vmatprep.subr.mxu0 0.0
  %118 = vmatpush1.msra.mxu0 0.0
  %119 = vmatprep.subr.mxu0 0.0
  %120 = vmatpush1.msra.mxu0 0.0
  %121 = vmatprep.subr.mxu0 0.0
  %122 = vmatpush1.msra.mxu0 0.0
  %123 = vmatprep.subr.mxu0 0.0
  %124 = vmatpush1.msra.mxu0 0.0
  %125 = vmatprep.subr.mxu0 0.0
  %126 = vmatpush1.msra.mxu0 0.0
  %127 = vmatprep.subr.mxu0 0.0
  %128 = vmatpush1.msra.mxu0 0.0
  %129 = vmatprep.subr.mxu0 0.0
  %130 = vmatpush1.msra.mxu0 0.0
  %131 = vmatprep.subr.mxu0 0.0
  %132 = vmatpush1.msra.mxu0 0.0
  %133 = vmatprep.subr.mxu0 0.0
  %134 = vmatpush1.msra.mxu0 0.0
  %135 = vmatprep.subr.mxu0 0.0
  %136 = vmatpush1.msra.mxu0 0.0
  %137 = vmatprep.subr.mxu0 0.0
  %138 = vmatpush1.msra.mxu0 0.0
  %139 = vmatprep.subr.mxu0 0.0
  %140 = vmatpush1.msra.mxu0 0.0
  %141 = vmatprep.subr.mxu0 0.0
  %142 = vmatpush1.msra.mxu0 0.0
  %143 = vmatprep.subr.mxu0 0.0
  %144 = vmatpush1.msra.mxu0 0.0
  %145 = vmatprep.subr.mxu0 0.0
  %146 = vmatpush1.msra.mxu0 0.0
  %147 = vmatprep.subr.mxu0 0.0
  %148 = vmatpush1.msra.mxu0 0.0
  %149 = vmatprep.subr.mxu0 0.0
  %150 = vmatpush1.msra.mxu0 0.0
  %151 = vmatprep.mubr.f32.mxu0 0.0
  %152 = vmatmul.mubr.f32.gmra.mrb[0].mxu0 %v40
  %v153 = vpop.f32.mrb[0].mxu0
  %v154 = vadd.f32 0.0, %v153
  %v155 = vpop.f32.mrb[0].mxu0
  %156 = vmatprep.mubr.f32.mxu0 0.0
  %157 = vmatmul.mubr.f32.gmra.mrb[0].mxu0 %v43
  %v158 = vpop.f32.mrb[0].mxu0
  %v159 = vadd.f32 0.0, %v158
  %v160 = vpop.f32.mrb[0].mxu0
  %161 = vmatprep.mubr.f32.mxu0 0.0
  %162 = vmatmul.mubr.f32.gmra.mrb[0].mxu0 %v46
  %v163 = vpop.f32.mrb[0].mxu0
  %v164 = vadd.f32 0.0, %v163
  %v165 = vpop.f32.mrb[0].mxu0
  %166 = vmatprep.mubr.f32.mxu0 0.0
  %167 = vmatmul.mubr.f32.gmra.mrb[0].mxu0 %v49
  %v168 = vpop.f32.mrb[0].mxu0
  %v169 = vadd.f32 0.0, %v168
  %v170 = vpop.f32.mrb[0].mxu0
  %171 = vmatprep.mubr.f32.mxu0 0.0
  %172 = vmatmul.mubr.f32.gmra.mrb[0].mxu0 %v52
  %v173 = vpop.f32.mrb[0].mxu0
  %v174 = vadd.f32 0.0, %v173
  %v175 = vpop.f32.mrb[0].mxu0
  %176 = vmatprep.mubr.f32.mxu0 0.0
  %177 = vmatmul.mubr.f32.gmra.mrb[0].mxu0 %v55
  %v178 = vpop.f32.mrb[0].mxu0
  %v179 = vadd.f32 0.0, %v178
  %v180 = vpop.f32.mrb[0].mxu0
  %181 = vmatprep.mubr.f32.mxu0 0.0
  %182 = vmatmul.mubr.f32.gmra.mrb[0].mxu0 %v58
  %v183 = vpop.f32.mrb[0].mxu0
  %v184 = vadd.f32 0.0, %v183
  %v185 = vpop.f32.mrb[0].mxu0
  %186 = vmatprep.mubr.f32.mxu0 0.0
  %187 = vmatmul.mubr.f32.gmra.mrb[0].mxu0 %v61
  %v188 = vpop.f32.mrb[0].mxu0
  %v189 = vadd.f32 0.0, %v188
  %v190 = vpop.f32.mrb[0].mxu0
  %191 = vmatprep.mubr.f32.mxu0 0.0
  %192 = vmatmul.mubr.f32.gmra.mrb[0].mxu0 %v64
  %v193 = vpop.f32.mrb[0].mxu0
  %v194 = vadd.f32 0.0, %v193
  %v195 = vpop.f32.mrb[0].mxu0
  %196 = vmatprep.mubr.f32.mxu0 0.0
  %197 = vmatmul.mubr.f32.gmra.mrb[0].mxu0 %v67
  %v198 = vpop.f32.mrb[0].mxu0
  %v199 = vadd.f32 0.0, %v198
  %v200 = vpop.f32.mrb[0].mxu0
  %201 = vmatprep.mubr.f32.mxu0 0.0
  %202 = vmatmul.mubr.f32.gmra.mrb[0].mxu0 %v70
  %v203 = vpop.f32.mrb[0].mxu0
  %v204 = vadd.f32 0.0, %v203
  %v205 = vpop.f32.mrb[0].mxu0
  %206 = vmatprep.mubr.f32.mxu0 0.0
  %207 = vmatmul.mubr.f32.gmra.mrb[0].mxu0 %v73
  %v208 = vpop.f32.mrb[0].mxu0
  %v209 = vadd.f32 0.0, %v208
  %v210 = vpop.f32.mrb[0].mxu0
  %211 = vmatprep.mubr.f32.mxu0 0.0
  %212 = vmatmul.mubr.f32.gmra.mrb[0].mxu0 %v76
  %v213 = vpop.f32.mrb[0].mxu0
  %v214 = vadd.f32 0.0, %v213
  %v215 = vpop.f32.mrb[0].mxu0
  %216 = vmatprep.mubr.f32.mxu0 0.0
  %217 = vmatmul.mubr.f32.gmra.mrb[0].mxu0 %v79
  %v218 = vpop.f32.mrb[0].mxu0
  %v219 = vadd.f32 0.0, %v218
  %v220 = vpop.f32.mrb[0].mxu0
  %221 = vmatprep.mubr.f32.mxu0 0.0
  %222 = vmatmul.mubr.f32.gmra.mrb[0].mxu0 %v82
  %v223 = vpop.f32.mrb[0].mxu0
  %v224 = vadd.f32 0.0, %v223
  %v225 = vpop.f32.mrb[0].mxu0
  %226 = vmatprep.mubr.f32.mxu0 0.0
  %227 = vmatmul.mubr.f32.gmra.mrb[0].mxu0 %v85
  %v228 = vpop.f32.mrb[0].mxu0
  %v229 = vadd.f32 0.0, %v228
  %v230 = vpop.f32.mrb[0].mxu0
  %231 = vdwg.mxu0
  %vm232 = vcmask 523264
  %233 = vst.msk [vmem:[%s4] sm:$0xff] %vm232, %v154
  %234 = vst.msk [vmem:[%s4 + $0x8] sm:$0xff] %vm232, %v159
  %235 = vst.msk [vmem:[%s4 + $0x10] sm:$0xff] %vm232, %v164
  %236 = vst.msk [vmem:[%s4 + $0x18] sm:$0xff] %vm232, %v169
  %237 = vst.msk [vmem:[%s4 + $0x20] sm:$0xff] %vm232, %v174
  %238 = vst.msk [vmem:[%s4 + $0x28] sm:$0xff] %vm232, %v179
  %239 = vst.msk [vmem:[%s4 + $0x30] sm:$0xff] %vm232, %v184
  %240 = vst.msk [vmem:[%s4 + $0x38] sm:$0xff] %vm232, %v189
  %241 = vst.msk [vmem:[%s4 + $0x40] sm:$0xff] %vm232, %v194
  %242 = vst.msk [vmem:[%s4 + $0x48] sm:$0xff] %vm232, %v199
  %243 = vst.msk [vmem:[%s4 + $0x50] sm:$0xff] %vm232, %v204
  %244 = vst.msk [vmem:[%s4 + $0x58] sm:$0xff] %vm232, %v209
  %245 = vst.msk [vmem:[%s4 + $0x60] sm:$0xff] %vm232, %v214
  %246 = vst.msk [vmem:[%s4 + $0x68] sm:$0xff] %vm232, %v219
  %247 = vst.msk [vmem:[%s4 + $0x70] sm:$0xff] %vm232, %v224
  %248 = vst.msk [vmem:[%s4 + $0x78] sm:$0xff] %vm232, %v229
  %v249 = vld [vmem:[%s2] sm:$0xff]
  %v250 = vld [vmem:[%s2 + $0x8] sm:$0xff]
  %v251 = vld [vmem:[%s2 + $0x10] sm:$0xff]
  %v252 = vld [vmem:[%s2 + $0x18] sm:$0xff]
  %v253 = vld [vmem:[%s2 + $0x20] sm:$0xff]
  %v254 = vld [vmem:[%s2 + $0x28] sm:$0xff]
  %v255 = vld [vmem:[%s2 + $0x30] sm:$0xff]
  %v256 = vld [vmem:[%s2 + $0x38] sm:$0xff]
  %v258 = vsel %vm232, %v154, 0
  %v261 = vsel %vm232, %v159, 0
  %v264 = vsel %vm232, %v164, 0
  %v267 = vsel %vm232, %v169, 0
  %v270 = vsel %vm232, %v174, 0
  %v273 = vsel %vm232, %v179, 0
  %v276 = vsel %vm232, %v184, 0
  %v279 = vsel %vm232, %v189, 0
  %v282 = vsel %vm232, %v194, 0
  %v285 = vsel %vm232, %v199, 0
  %v288 = vsel %vm232, %v204, 0
  %v291 = vsel %vm232, %v209, 0
  %v294 = vsel %vm232, %v214, 0
  %v297 = vsel %vm232, %v219, 0
  %v300 = vsel %vm232, %v224, 0
  %v303 = vsel %vm232, %v229, 0
  %305 = vmatprep.subr.mxu0 0.0
  %306 = vmatpush1.msra.mxu0 %v249
  %307 = vmatprep.subr.mxu0 0.0
  %308 = vmatpush1.msra.mxu0 %v250
  %309 = vmatprep.subr.mxu0 0.0
  %310 = vmatpush1.msra.mxu0 %v251
  %311 = vmatprep.subr.mxu0 0.0
  %312 = vmatpush1.msra.mxu0 %v252
  %313 = vmatprep.subr.mxu0 0.0
  %314 = vmatpush1.msra.mxu0 %v253
  %315 = vmatprep.subr.mxu0 0.0
  %316 = vmatpush1.msra.mxu0 %v254
  %317 = vmatprep.subr.mxu0 0.0
  %318 = vmatpush1.msra.mxu0 %v255
  %319 = vmatprep.subr.mxu0 0.0
  %320 = vmatpush1.msra.mxu0 %v256
  %321 = vmatprep.subr.mxu0 0.0
  %322 = vmatpush1.msra.mxu0 0.0
  %323 = vmatprep.subr.mxu0 0.0
  %324 = vmatpush1.msra.mxu0 0.0
  %325 = vmatprep.subr.mxu0 0.0
  %326 = vmatpush1.msra.mxu0 0.0
  %327 = vmatprep.subr.mxu0 0.0
  %328 = vmatpush1.msra.mxu0 0.0
  %329 = vmatprep.subr.mxu0 0.0
  %330 = vmatpush1.msra.mxu0 0.0
  %331 = vmatprep.subr.mxu0 0.0
  %332 = vmatpush1.msra.mxu0 0.0
  %333 = vmatprep.subr.mxu0 0.0
  %334 = vmatpush1.msra.mxu0 0.0
  %335 = vmatprep.subr.mxu0 0.0
  %336 = vmatpush1.msra.mxu0 0.0
  %337 = vmatprep.subr.mxu0 0.0
  %338 = vmatpush1.msra.mxu0 0.0
  %339 = vmatprep.subr.mxu0 0.0
  %340 = vmatpush1.msra.mxu0 0.0
  %341 = vmatprep.subr.mxu0 0.0
  %342 = vmatpush1.msra.mxu0 0.0
  %343 = vmatprep.subr.mxu0 0.0
  %344 = vmatpush1.msra.mxu0 0.0
  %345 = vmatprep.subr.mxu0 0.0
  %346 = vmatpush1.msra.mxu0 0.0
  %347 = vmatprep.subr.mxu0 0.0
  %348 = vmatpush1.msra.mxu0 0.0
  %349 = vmatprep.subr.mxu0 0.0
  %350 = vmatpush1.msra.mxu0 0.0
  %351 = vmatprep.subr.mxu0 0.0
  %352 = vmatpush1.msra.mxu0 0.0
  %353 = vmatprep.subr.mxu0 0.0
  %354 = vmatpush1.msra.mxu0 0.0
  %355 = vmatprep.subr.mxu0 0.0
  %356 = vmatpush1.msra.mxu0 0.0
  %357 = vmatprep.subr.mxu0 0.0
  %358 = vmatpush1.msra.mxu0 0.0
  %359 = vmatprep.subr.mxu0 0.0
  %360 = vmatpush1.msra.mxu0 0.0
  %361 = vmatprep.subr.mxu0 0.0
  %362 = vmatpush1.msra.mxu0 0.0
  %363 = vmatprep.subr.mxu0 0.0
  %364 = vmatpush1.msra.mxu0 0.0
  %365 = vmatprep.subr.mxu0 0.0
  %366 = vmatpush1.msra.mxu0 0.0
  %367 = vmatprep.subr.mxu0 0.0
  %368 = vmatpush1.msra.mxu0 0.0
  %369 = vmatprep.mubr.f32.mxu0 0.0
  %370 = vmatmul.mubr.f32.gmra.mrb[0].mxu0 %v258
  %v371 = vpop.f32.mrb[0].mxu0
  %v372 = vadd.f32 0.0, %v371
  %v373 = vpop.f32.mrb[0].mxu0
  %374 = vmatprep.mubr.f32.mxu0 0.0
  %375 = vmatmul.mubr.f32.gmra.mrb[0].mxu0 %v261
  %v376 = vpop.f32.mrb[0].mxu0
  %v377 = vadd.f32 0.0, %v376
  %v378 = vpop.f32.mrb[0].mxu0
  %379 = vmatprep.mubr.f32.mxu0 0.0
  %380 = vmatmul.mubr.f32.gmra.mrb[0].mxu0 %v264
  %v381 = vpop.f32.mrb[0].mxu0
  %v382 = vadd.f32 0.0, %v381
  %v383 = vpop.f32.mrb[0].mxu0
  %384 = vmatprep.mubr.f32.mxu0 0.0
  %385 = vmatmul.mubr.f32.gmra.mrb[0].mxu0 %v267
  %v386 = vpop.f32.mrb[0].mxu0
  %v387 = vadd.f32 0.0, %v386
  %v388 = vpop.f32.mrb[0].mxu0
  %389 = vmatprep.mubr.f32.mxu0 0.0
  %390 = vmatmul.mubr.f32.gmra.mrb[0].mxu0 %v270
  %v391 = vpop.f32.mrb[0].mxu0
  %v392 = vadd.f32 0.0, %v391
  %v393 = vpop.f32.mrb[0].mxu0
  %394 = vmatprep.mubr.f32.mxu0 0.0
  %395 = vmatmul.mubr.f32.gmra.mrb[0].mxu0 %v273
  %v396 = vpop.f32.mrb[0].mxu0
  %v397 = vadd.f32 0.0, %v396
  %v398 = vpop.f32.mrb[0].mxu0
  %399 = vmatprep.mubr.f32.mxu0 0.0
  %400 = vmatmul.mubr.f32.gmra.mrb[0].mxu0 %v276
  %v401 = vpop.f32.mrb[0].mxu0
  %v402 = vadd.f32 0.0, %v401
  %v403 = vpop.f32.mrb[0].mxu0
  %404 = vmatprep.mubr.f32.mxu0 0.0
  %405 = vmatmul.mubr.f32.gmra.mrb[0].mxu0 %v279
  %v406 = vpop.f32.mrb[0].mxu0
  %v407 = vadd.f32 0.0, %v406
  %v408 = vpop.f32.mrb[0].mxu0
  %409 = vmatprep.mubr.f32.mxu0 0.0
  %410 = vmatmul.mubr.f32.gmra.mrb[0].mxu0 %v282
  %v411 = vpop.f32.mrb[0].mxu0
  %v412 = vadd.f32 0.0, %v411
  %v413 = vpop.f32.mrb[0].mxu0
  %414 = vmatprep.mubr.f32.mxu0 0.0
  %415 = vmatmul.mubr.f32.gmra.mrb[0].mxu0 %v285
  %v416 = vpop.f32.mrb[0].mxu0
  %v417 = vadd.f32 0.0, %v416
  %v418 = vpop.f32.mrb[0].mxu0
  %419 = vmatprep.mubr.f32.mxu0 0.0
  %420 = vmatmul.mubr.f32.gmra.mrb[0].mxu0 %v288
  %v421 = vpop.f32.mrb[0].mxu0
  %v422 = vadd.f32 0.0, %v421
  %v423 = vpop.f32.mrb[0].mxu0
  %424 = vmatprep.mubr.f32.mxu0 0.0
  %425 = vmatmul.mubr.f32.gmra.mrb[0].mxu0 %v291
  %v426 = vpop.f32.mrb[0].mxu0
  %v427 = vadd.f32 0.0, %v426
  %v428 = vpop.f32.mrb[0].mxu0
  %429 = vmatprep.mubr.f32.mxu0 0.0
  %430 = vmatmul.mubr.f32.gmra.mrb[0].mxu0 %v294
  %v431 = vpop.f32.mrb[0].mxu0
  %v432 = vadd.f32 0.0, %v431
  %v433 = vpop.f32.mrb[0].mxu0
  %434 = vmatprep.mubr.f32.mxu0 0.0
  %435 = vmatmul.mubr.f32.gmra.mrb[0].mxu0 %v297
  %v436 = vpop.f32.mrb[0].mxu0
  %v437 = vadd.f32 0.0, %v436
  %v438 = vpop.f32.mrb[0].mxu0
  %439 = vmatprep.mubr.f32.mxu0 0.0
  %440 = vmatmul.mubr.f32.gmra.mrb[0].mxu0 %v300
  %v441 = vpop.f32.mrb[0].mxu0
  %v442 = vadd.f32 0.0, %v441
  %v443 = vpop.f32.mrb[0].mxu0
  %444 = vmatprep.mubr.f32.mxu0 0.0
  %445 = vmatmul.mubr.f32.gmra.mrb[0].mxu0 %v303
  %v446 = vpop.f32.mrb[0].mxu0
  %v447 = vadd.f32 0.0, %v446
  %v448 = vpop.f32.mrb[0].mxu0
  %449 = vdwg.mxu0
  %vm450 = vcmask 64512
  %451 = vst.msk [vmem:[%s5] sm:$0xff] %vm450, %v372
  %452 = vst.msk [vmem:[%s5 + $0x8] sm:$0xff] %vm450, %v377
  %453 = vst.msk [vmem:[%s5 + $0x10] sm:$0xff] %vm450, %v382
  %454 = vst.msk [vmem:[%s5 + $0x18] sm:$0xff] %vm450, %v387
  %455 = vst.msk [vmem:[%s5 + $0x20] sm:$0xff] %vm450, %v392
  %456 = vst.msk [vmem:[%s5 + $0x28] sm:$0xff] %vm450, %v397
  %457 = vst.msk [vmem:[%s5 + $0x30] sm:$0xff] %vm450, %v402
  %458 = vst.msk [vmem:[%s5 + $0x38] sm:$0xff] %vm450, %v407
  %459 = vst.msk [vmem:[%s5 + $0x40] sm:$0xff] %vm450, %v412
  %460 = vst.msk [vmem:[%s5 + $0x48] sm:$0xff] %vm450, %v417
  %461 = vst.msk [vmem:[%s5 + $0x50] sm:$0xff] %vm450, %v422
  %462 = vst.msk [vmem:[%s5 + $0x58] sm:$0xff] %vm450, %v427
  %463 = vst.msk [vmem:[%s5 + $0x60] sm:$0xff] %vm450, %v432
  %464 = vst.msk [vmem:[%s5 + $0x68] sm:$0xff] %vm450, %v437
  %465 = vst.msk [vmem:[%s5 + $0x70] sm:$0xff] %vm450, %v442
  %466 = vst.msk [vmem:[%s5 + $0x78] sm:$0xff] %vm450, %v447
  %v467 = vld [vmem:[%s3] sm:$0xff]
  %v468 = vld [vmem:[%s3 + $0x8] sm:$0xff]
  %v469 = vld [vmem:[%s3 + $0x10] sm:$0xff]
  %v470 = vld [vmem:[%s3 + $0x18] sm:$0xff]
  %v471 = vld [vmem:[%s3 + $0x20] sm:$0xff]
  %v472 = vld [vmem:[%s3 + $0x28] sm:$0xff]
  %v473 = vld [vmem:[%s3 + $0x30] sm:$0xff]
  %v474 = vld [vmem:[%s3 + $0x38] sm:$0xff]
  %475 = vmatprep.subr.mxu0 0.0
  %476 = vmatpush1.msra.mxu0 %v467
  %477 = vmatprep.subr.mxu0 0.0
  %478 = vmatpush1.msra.mxu0 %v468
  %479 = vmatprep.subr.mxu0 0.0
  %480 = vmatpush1.msra.mxu0 %v469
  %481 = vmatprep.subr.mxu0 0.0
  %482 = vmatpush1.msra.mxu0 %v470
  %483 = vmatprep.subr.mxu0 0.0
  %484 = vmatpush1.msra.mxu0 %v471
  %485 = vmatprep.subr.mxu0 0.0
  %486 = vmatpush1.msra.mxu0 %v472
  %487 = vmatprep.subr.mxu0 0.0
  %488 = vmatpush1.msra.mxu0 %v473
  %489 = vmatprep.subr.mxu0 0.0
  %490 = vmatpush1.msra.mxu0 %v474
  %491 = vmatprep.subr.mxu0 0.0
  %492 = vmatpush1.msra.mxu0 0.0
  %493 = vmatprep.subr.mxu0 0.0
  %494 = vmatpush1.msra.mxu0 0.0
  %495 = vmatprep.subr.mxu0 0.0
  %496 = vmatpush1.msra.mxu0 0.0
  %497 = vmatprep.subr.mxu0 0.0
  %498 = vmatpush1.msra.mxu0 0.0
  %499 = vmatprep.subr.mxu0 0.0
  %500 = vmatpush1.msra.mxu0 0.0
  %501 = vmatprep.subr.mxu0 0.0
  %502 = vmatpush1.msra.mxu0 0.0
  %503 = vmatprep.subr.mxu0 0.0
  %504 = vmatpush1.msra.mxu0 0.0
  %505 = vmatprep.subr.mxu0 0.0
  %506 = vmatpush1.msra.mxu0 0.0
  %507 = vmatprep.subr.mxu0 0.0
  %508 = vmatpush1.msra.mxu0 0.0
  %509 = vmatprep.subr.mxu0 0.0
  %510 = vmatpush1.msra.mxu0 0.0
  %511 = vmatprep.subr.mxu0 0.0
  %512 = vmatpush1.msra.mxu0 0.0
  %513 = vmatprep.subr.mxu0 0.0
  %514 = vmatpush1.msra.mxu0 0.0
  %515 = vmatprep.subr.mxu0 0.0
  %516 = vmatpush1.msra.mxu0 0.0
  %517 = vmatprep.subr.mxu0 0.0
  %518 = vmatpush1.msra.mxu0 0.0
  %519 = vmatprep.subr.mxu0 0.0
  %520 = vmatpush1.msra.mxu0 0.0
  %521 = vmatprep.subr.mxu0 0.0
  %522 = vmatpush1.msra.mxu0 0.0
  %523 = vmatprep.subr.mxu0 0.0
  %524 = vmatpush1.msra.mxu0 0.0
  %525 = vmatprep.subr.mxu0 0.0
  %526 = vmatpush1.msra.mxu0 0.0
  %527 = vmatprep.subr.mxu0 0.0
  %528 = vmatpush1.msra.mxu0 0.0
  %529 = vmatprep.subr.mxu0 0.0
  %530 = vmatpush1.msra.mxu0 0.0
  %531 = vmatprep.subr.mxu0 0.0
  %532 = vmatpush1.msra.mxu0 0.0
  %533 = vmatprep.subr.mxu0 0.0
  %534 = vmatpush1.msra.mxu0 0.0
  %535 = vmatprep.subr.mxu0 0.0
  %536 = vmatpush1.msra.mxu0 0.0
  %537 = vmatprep.subr.mxu0 0.0
  %538 = vmatpush1.msra.mxu0 0.0
  %539 = vmatprep.mubr.f32.mxu0 0.0
  %540 = vmatmul.mubr.f32.gmra.mrb[0].mxu0 %v258
  %v541 = vpop.f32.mrb[0].mxu0
  %v542 = vadd.f32 0.0, %v541
  %v543 = vpop.f32.mrb[0].mxu0
  %544 = vmatprep.mubr.f32.mxu0 0.0
  %545 = vmatmul.mubr.f32.gmra.mrb[0].mxu0 %v261
  %v546 = vpop.f32.mrb[0].mxu0
  %v547 = vadd.f32 0.0, %v546
  %v548 = vpop.f32.mrb[0].mxu0
  %549 = vmatprep.mubr.f32.mxu0 0.0
  %550 = vmatmul.mubr.f32.gmra.mrb[0].mxu0 %v264
  %v551 = vpop.f32.mrb[0].mxu0
  %v552 = vadd.f32 0.0, %v551
  %v553 = vpop.f32.mrb[0].mxu0
  %554 = vmatprep.mubr.f32.mxu0 0.0
  %555 = vmatmul.mubr.f32.gmra.mrb[0].mxu0 %v267
  %v556 = vpop.f32.mrb[0].mxu0
  %v557 = vadd.f32 0.0, %v556
  %v558 = vpop.f32.mrb[0].mxu0
  %559 = vmatprep.mubr.f32.mxu0 0.0
  %560 = vmatmul.mubr.f32.gmra.mrb[0].mxu0 %v270
  %v561 = vpop.f32.mrb[0].mxu0
  %v562 = vadd.f32 0.0, %v561
  %v563 = vpop.f32.mrb[0].mxu0
  %564 = vmatprep.mubr.f32.mxu0 0.0
  %565 = vmatmul.mubr.f32.gmra.mrb[0].mxu0 %v273
  %v566 = vpop.f32.mrb[0].mxu0
  %v567 = vadd.f32 0.0, %v566
  %v568 = vpop.f32.mrb[0].mxu0
  %569 = vmatprep.mubr.f32.mxu0 0.0
  %570 = vmatmul.mubr.f32.gmra.mrb[0].mxu0 %v276
  %v571 = vpop.f32.mrb[0].mxu0
  %v572 = vadd.f32 0.0, %v571
  %v573 = vpop.f32.mrb[0].mxu0
  %574 = vmatprep.mubr.f32.mxu0 0.0
  %575 = vmatmul.mubr.f32.gmra.mrb[0].mxu0 %v279
  %v576 = vpop.f32.mrb[0].mxu0
  %v577 = vadd.f32 0.0, %v576
  %v578 = vpop.f32.mrb[0].mxu0
  %579 = vmatprep.mubr.f32.mxu0 0.0
  %580 = vmatmul.mubr.f32.gmra.mrb[0].mxu0 %v282
  %v581 = vpop.f32.mrb[0].mxu0
  %v582 = vadd.f32 0.0, %v581
  %v583 = vpop.f32.mrb[0].mxu0
  %584 = vmatprep.mubr.f32.mxu0 0.0
  %585 = vmatmul.mubr.f32.gmra.mrb[0].mxu0 %v285
  %v586 = vpop.f32.mrb[0].mxu0
  %v587 = vadd.f32 0.0, %v586
  %v588 = vpop.f32.mrb[0].mxu0
  %589 = vmatprep.mubr.f32.mxu0 0.0
  %590 = vmatmul.mubr.f32.gmra.mrb[0].mxu0 %v288
  %v591 = vpop.f32.mrb[0].mxu0
  %v592 = vadd.f32 0.0, %v591
  %v593 = vpop.f32.mrb[0].mxu0
  %594 = vmatprep.mubr.f32.mxu0 0.0
  %595 = vmatmul.mubr.f32.gmra.mrb[0].mxu0 %v291
  %v596 = vpop.f32.mrb[0].mxu0
  %v597 = vadd.f32 0.0, %v596
  %v598 = vpop.f32.mrb[0].mxu0
  %599 = vmatprep.mubr.f32.mxu0 0.0
  %600 = vmatmul.mubr.f32.gmra.mrb[0].mxu0 %v294
  %v601 = vpop.f32.mrb[0].mxu0
  %v602 = vadd.f32 0.0, %v601
  %v603 = vpop.f32.mrb[0].mxu0
  %604 = vmatprep.mubr.f32.mxu0 0.0
  %605 = vmatmul.mubr.f32.gmra.mrb[0].mxu0 %v297
  %v606 = vpop.f32.mrb[0].mxu0
  %v607 = vadd.f32 0.0, %v606
  %v608 = vpop.f32.mrb[0].mxu0
  %609 = vmatprep.mubr.f32.mxu0 0.0
  %610 = vmatmul.mubr.f32.gmra.mrb[0].mxu0 %v300
  %v611 = vpop.f32.mrb[0].mxu0
  %v612 = vadd.f32 0.0, %v611
  %v613 = vpop.f32.mrb[0].mxu0
  %614 = vmatprep.mubr.f32.mxu0 0.0
  %615 = vmatmul.mubr.f32.gmra.mrb[0].mxu0 %v303
  %v616 = vpop.f32.mrb[0].mxu0
  %v617 = vadd.f32 0.0, %v616
  %v618 = vpop.f32.mrb[0].mxu0
  %619 = vdwg.mxu0
  %620 = vst.msk [vmem:[%s6] sm:$0xff] %vm450, %v542
  %621 = vst.msk [vmem:[%s6 + $0x8] sm:$0xff] %vm450, %v547
  %622 = vst.msk [vmem:[%s6 + $0x10] sm:$0xff] %vm450, %v552
  %623 = vst.msk [vmem:[%s6 + $0x18] sm:$0xff] %vm450, %v557
  %624 = vst.msk [vmem:[%s6 + $0x20] sm:$0xff] %vm450, %v562
  %625 = vst.msk [vmem:[%s6 + $0x28] sm:$0xff] %vm450, %v567
  %626 = vst.msk [vmem:[%s6 + $0x30] sm:$0xff] %vm450, %v572
  %627 = vst.msk [vmem:[%s6 + $0x38] sm:$0xff] %vm450, %v577
  %628 = vst.msk [vmem:[%s6 + $0x40] sm:$0xff] %vm450, %v582
  %629 = vst.msk [vmem:[%s6 + $0x48] sm:$0xff] %vm450, %v587
  %630 = vst.msk [vmem:[%s6 + $0x50] sm:$0xff] %vm450, %v592
  %631 = vst.msk [vmem:[%s6 + $0x58] sm:$0xff] %vm450, %v597
  %632 = vst.msk [vmem:[%s6 + $0x60] sm:$0xff] %vm450, %v602
  %633 = vst.msk [vmem:[%s6 + $0x68] sm:$0xff] %vm450, %v607
  %634 = vst.msk [vmem:[%s6 + $0x70] sm:$0xff] %vm450, %v612
  %635 = vst.msk [vmem:[%s6 + $0x78] sm:$0xff] %vm450, %v617
  // Predicated region
  $region18: #{gat_forward.4} parent=0 // pred_check
    _
  $region19: #{gat_forward.4} parent=0 // pred_check_branch
    %637 = sbr.rel (0) target = $region21
  $region20: #{gat_forward.4} parent=0 // pred_region
    _
  $region21: #{gat_forward.4} parent=0 // pred_fallthru
    _
  // Predicated region
  $region22: #{gat_forward.4} parent=0 // pred_check
    _
  $region23: #{gat_forward.4} parent=0 // pred_check_branch
    %639 = sbr.rel (0) target = $region25
  $region24: #{gat_forward.4} parent=0 // pred_region
    _
  $region25: #{gat_forward.4} parent=0 // pred_fallthru
    _
  // Predicated region
  $region26: #{gat_forward.4} parent=0 // pred_check
    _
  $region27: #{gat_forward.4} parent=0 // pred_check_branch
    %641 = sbr.rel (0) target = $region29
  $region28: #{gat_forward.4} parent=0 // pred_region
    _
  $region29: #{gat_forward.4} parent=0 // pred_fallthru
    _
  // Predicated region
  $region30: #{gat_forward.4} parent=0 // pred_check
    _
  $region31: #{gat_forward.4} parent=0 // pred_check_branch
    %643 = sbr.rel (0) target = $region33
  $region32: #{gat_forward.4} parent=0 // pred_region
    _
  $region33: #{gat_forward.4} parent=0 // pred_fallthru
    _
  // Predicated region
  $region34: #{gat_forward.4} parent=0 // pred_check
    _
  $region35: #{gat_forward.4} parent=0 // pred_check_branch
    %645 = sbr.rel (0) target = $region37
  $region36: #{gat_forward.4} parent=0 // pred_region
    _
  $region37: #{gat_forward.4} parent=0 // pred_fallthru
    _
  // Predicated region
  $region38: #{gat_forward.4} parent=0 // pred_check
    _
  $region39: #{gat_forward.4} parent=0 // pred_check_branch
    %647 = sbr.rel (0) target = $region41
  $region40: #{gat_forward.4} parent=0 // pred_region
    _
  $region41: #{gat_forward.4} parent=0 // pred_fallthru
    _

// kernel: gat_forward.6
$region0: #{gat_forward.6}
  #allocation0 [shape = 'u32[]', space=smem, size = 0x4, offset = 0x4, fixed_abs, tag = 'smem constant byte address 0x4 - core index']
  #allocation1 [shape = 'u32[144,128]{1,0:T(1,128)}', space=vmem, size = 0x12000, scoped, tag = 'internal scratch']
  %s0 = inlined_call_operand.hbm [shape: f32[128,64], index: 0, kind: input, shape index: {}]
  %s1 = inlined_call_operand.vmem [shape: f32[64,4], index: 1, kind: input, shape index: {}]
  %s2 = inlined_call_operand.vmem [shape: f32[4,1], index: 2, kind: input, shape index: {}]
  %s3 = inlined_call_operand.vmem [shape: f32[4,1], index: 3, kind: input, shape index: {}]
  %s4 = inlined_call_operand.vmem [shape: f32[128,4], index: 4, kind: output, shape index: {0}]
  %s5 = inlined_call_operand.vmem [shape: f32[128,1], index: 5, kind: output, shape index: {1}]
  %s6 = inlined_call_operand.hbm [shape: f32[128,1], index: 6, kind: output, shape index: {2}]
  %7 = xla_tuple %s4, %s5, %s6
  %s8 = sld [smem:[#allocation0]]
  $region46: #{gat_forward.6} parent=0
    _
  %s10 = ssub.s32 1, %s8
  %s11 = scalar_select 0, %s10, %s8
  $region1: #{gat_forward.6} parent=0
    #allocation2 [shape = 'u8[65536]{0}', space=vmem, size = 0x10000, scoped, tag = 'input window, operand 0, single buffered']
    #allocation3 [shape = 's32[1]{0}', space=sflag, size = 0x4, scoped, tag = 'scoped memory for gat_forward.6']
    #allocation4 [shape = 's32[1]{0}', space=sflag, size = 0x4, scoped, tag = 'scoped memory for gat_forward.6']
    #allocation5 [shape = 'u8[65536]{0}', space=vmem, size = 0x10000, scoped, tag = 'output window, operand 2, single buffered']
    %12 = vsyncpa [#allocation3], 0
    %13 = vsyncpa [#allocation4], 0
    // Predicated region
    $region2: #{gat_forward.6} parent=1 // pred_check
      _
    $region3: #{gat_forward.6} parent=1 // pred_check_branch
      %15 = sbr.rel (0) target = $region5
    $region4: #{gat_forward.6} parent=1 // pred_region
      %s17 = ssub.s32 2048, 2048
      %18 = vsyncadd [#allocation3], %s17
      %s19 = sshll.u32 [#allocation2], 4
      %s20 = int_to_ptr.vmem [resolvable:$true] %s19
      %25 = dma.hbm_to_vmem [thread:$0]  %s0, 2048, %s20, [#allocation3], 128, 128, 8
    $region5: #{gat_forward.6} parent=1 // pred_fallthru
      _
    // Predicated region
    $region6: #{gat_forward.6} parent=1 // pred_check
      _
    $region7: #{gat_forward.6} parent=1 // pred_check_branch
      %27 = sbr.rel (0) target = $region9
    $region8: #{gat_forward.6} parent=1 // pred_region
      _
    $region9: #{gat_forward.6} parent=1 // pred_fallthru
      _
    // Predicated region
    $region10: #{gat_forward.6} parent=1 // pred_check
      _
    $region11: #{gat_forward.6} parent=1 // pred_check_branch
      %29 = sbr.rel (0) target = $region13
    $region12: #{gat_forward.6} parent=1 // pred_region
      _
    $region13: #{gat_forward.6} parent=1 // pred_fallthru
      _
    // Predicated region
    $region14: #{gat_forward.6} parent=1 // pred_check
      _
    $region15: #{gat_forward.6} parent=1 // pred_check_branch
      %31 = sbr.rel (0) target = $region17
    $region16: #{gat_forward.6} parent=1 // pred_region
      _
    $region17: #{gat_forward.6} parent=1 // pred_fallthru
      _
    // Predicated region
    $region18: #{gat_forward.6} parent=1 // pred_check
      _
    $region19: #{gat_forward.6} parent=1 // pred_check_branch
      %33 = sbr.rel (0) target = $region21
    $region20: #{gat_forward.6} parent=1 // pred_region
      %34 = dma.done [#allocation3], 2048
    $region21: #{gat_forward.6} parent=1 // pred_fallthru
      _
    %v35 = vld [vmem:[#allocation2] sm:$0xff]
    %v36 = vld [vmem:[#allocation2 + $0x8] sm:$0xff]
    %v37 = vld [vmem:[#allocation2 + $0x10] sm:$0xff]
    %v38 = vld [vmem:[#allocation2 + $0x18] sm:$0xff]
    %v39 = vld [vmem:[#allocation2 + $0x20] sm:$0xff]
    %v40 = vld [vmem:[#allocation2 + $0x28] sm:$0xff]
    %v41 = vld [vmem:[#allocation2 + $0x30] sm:$0xff]
    %v42 = vld [vmem:[#allocation2 + $0x38] sm:$0xff]
    %v43 = vld [vmem:[#allocation2 + $0x40] sm:$0xff]
    %v44 = vld [vmem:[#allocation2 + $0x48] sm:$0xff]
    %v45 = vld [vmem:[#allocation2 + $0x50] sm:$0xff]
    %v46 = vld [vmem:[#allocation2 + $0x58] sm:$0xff]
    %v47 = vld [vmem:[#allocation2 + $0x60] sm:$0xff]
    %v48 = vld [vmem:[#allocation2 + $0x68] sm:$0xff]
    %v49 = vld [vmem:[#allocation2 + $0x70] sm:$0xff]
    %v50 = vld [vmem:[#allocation2 + $0x78] sm:$0xff]
    %v51 = vld [vmem:[%s1] sm:$0xff]
    %v52 = vld [vmem:[%s1 + $0x8] sm:$0xff]
    %v53 = vld [vmem:[%s1 + $0x10] sm:$0xff]
    %v54 = vld [vmem:[%s1 + $0x18] sm:$0xff]
    %v55 = vld [vmem:[%s1 + $0x20] sm:$0xff]
    %v56 = vld [vmem:[%s1 + $0x28] sm:$0xff]
    %v57 = vld [vmem:[%s1 + $0x30] sm:$0xff]
    %v58 = vld [vmem:[%s1 + $0x38] sm:$0xff]
    %vm59 = vcmask 523264
    %v61 = vsel %vm59, %v35, 0
    %v64 = vsel %vm59, %v36, 0
    %v67 = vsel %vm59, %v37, 0
    %v70 = vsel %vm59, %v38, 0
    %v73 = vsel %vm59, %v39, 0
    %v76 = vsel %vm59, %v40, 0
    %v79 = vsel %vm59, %v41, 0
    %v82 = vsel %vm59, %v42, 0
    %v85 = vsel %vm59, %v43, 0
    %v88 = vsel %vm59, %v44, 0
    %v91 = vsel %vm59, %v45, 0
    %v94 = vsel %vm59, %v46, 0
    %v97 = vsel %vm59, %v47, 0
    %v100 = vsel %vm59, %v48, 0
    %v103 = vsel %vm59, %v49, 0
    %v106 = vsel %vm59, %v50, 0
    %108 = vmatprep.subr.mxu0 0.0
    %109 = vmatpush1.msra.mxu0 %v51
    %110 = vmatprep.subr.mxu0 0.0
    %111 = vmatpush1.msra.mxu0 %v52
    %112 = vmatprep.subr.mxu0 0.0
    %113 = vmatpush1.msra.mxu0 %v53
    %114 = vmatprep.subr.mxu0 0.0
    %115 = vmatpush1.msra.mxu0 %v54
    %116 = vmatprep.subr.mxu0 0.0
    %117 = vmatpush1.msra.mxu0 %v55
    %118 = vmatprep.subr.mxu0 0.0
    %119 = vmatpush1.msra.mxu0 %v56
    %120 = vmatprep.subr.mxu0 0.0
    %121 = vmatpush1.msra.mxu0 %v57
    %122 = vmatprep.subr.mxu0 0.0
    %123 = vmatpush1.msra.mxu0 %v58
    %124 = vmatprep.subr.mxu0 0.0
    %125 = vmatpush1.msra.mxu0 0.0
    %126 = vmatprep.subr.mxu0 0.0
    %127 = vmatpush1.msra.mxu0 0.0
    %128 = vmatprep.subr.mxu0 0.0
    %129 = vmatpush1.msra.mxu0 0.0
    %130 = vmatprep.subr.mxu0 0.0
    %131 = vmatpush1.msra.mxu0 0.0
    %132 = vmatprep.subr.mxu0 0.0
    %133 = vmatpush1.msra.mxu0 0.0
    %134 = vmatprep.subr.mxu0 0.0
    %135 = vmatpush1.msra.mxu0 0.0
    %136 = vmatprep.subr.mxu0 0.0
    %137 = vmatpush1.msra.mxu0 0.0
    %138 = vmatprep.subr.mxu0 0.0
    %139 = vmatpush1.msra.mxu0 0.0
    %140 = vmatprep.subr.mxu0 0.0
    %141 = vmatpush1.msra.mxu0 0.0
    %142 = vmatprep.subr.mxu0 0.0
    %143 = vmatpush1.msra.mxu0 0.0
    %144 = vmatprep.subr.mxu0 0.0
    %145 = vmatpush1.msra.mxu0 0.0
    %146 = vmatprep.subr.mxu0 0.0
    %147 = vmatpush1.msra.mxu0 0.0
    %148 = vmatprep.subr.mxu0 0.0
    %149 = vmatpush1.msra.mxu0 0.0
    %150 = vmatprep.subr.mxu0 0.0
    %151 = vmatpush1.msra.mxu0 0.0
    %152 = vmatprep.subr.mxu0 0.0
    %153 = vmatpush1.msra.mxu0 0.0
    %154 = vmatprep.subr.mxu0 0.0
    %155 = vmatpush1.msra.mxu0 0.0
    %156 = vmatprep.subr.mxu0 0.0
    %157 = vmatpush1.msra.mxu0 0.0
    %158 = vmatprep.subr.mxu0 0.0
    %159 = vmatpush1.msra.mxu0 0.0
    %160 = vmatprep.subr.mxu0 0.0
    %161 = vmatpush1.msra.mxu0 0.0
    %162 = vmatprep.subr.mxu0 0.0
    %163 = vmatpush1.msra.mxu0 0.0
    %164 = vmatprep.subr.mxu0 0.0
    %165 = vmatpush1.msra.mxu0 0.0
    %166 = vmatprep.subr.mxu0 0.0
    %167 = vmatpush1.msra.mxu0 0.0
    %168 = vmatprep.subr.mxu0 0.0
    %169 = vmatpush1.msra.mxu0 0.0
    %170 = vmatprep.subr.mxu0 0.0
    %171 = vmatpush1.msra.mxu0 0.0
    %172 = vmatprep.mubr.f32.mxu0 0.0
    %173 = vmatmul.mubr.f32.gmra.mrb[0].mxu0 %v61
    %v174 = vpop.f32.mrb[0].mxu0
    %v175 = vadd.f32 0.0, %v174
    %v176 = vpop.f32.mrb[0].mxu0
    %177 = vmatprep.mubr.f32.mxu0 0.0
    %178 = vmatmul.mubr.f32.gmra.mrb[0].mxu0 %v64
    %v179 = vpop.f32.mrb[0].mxu0
    %v180 = vadd.f32 0.0, %v179
    %v181 = vpop.f32.mrb[0].mxu0
    %182 = vmatprep.mubr.f32.mxu0 0.0
    %183 = vmatmul.mubr.f32.gmra.mrb[0].mxu0 %v67
    %v184 = vpop.f32.mrb[0].mxu0
    %v185 = vadd.f32 0.0, %v184
    %v186 = vpop.f32.mrb[0].mxu0
    %187 = vmatprep.mubr.f32.mxu0 0.0
    %188 = vmatmul.mubr.f32.gmra.mrb[0].mxu0 %v70
    %v189 = vpop.f32.mrb[0].mxu0
    %v190 = vadd.f32 0.0, %v189
    %v191 = vpop.f32.mrb[0].mxu0
    %192 = vmatprep.mubr.f32.mxu0 0.0
    %193 = vmatmul.mubr.f32.gmra.mrb[0].mxu0 %v73
    %v194 = vpop.f32.mrb[0].mxu0
    %v195 = vadd.f32 0.0, %v194
    %v196 = vpop.f32.mrb[0].mxu0
    %197 = vmatprep.mubr.f32.mxu0 0.0
    %198 = vmatmul.mubr.f32.gmra.mrb[0].mxu0 %v76
    %v199 = vpop.f32.mrb[0].mxu0
    %v200 = vadd.f32 0.0, %v199
    %v201 = vpop.f32.mrb[0].mxu0
    %202 = vmatprep.mubr.f32.mxu0 0.0
    %203 = vmatmul.mubr.f32.gmra.mrb[0].mxu0 %v79
    %v204 = vpop.f32.mrb[0].mxu0
    %v205 = vadd.f32 0.0, %v204
    %v206 = vpop.f32.mrb[0].mxu0
    %207 = vmatprep.mubr.f32.mxu0 0.0
    %208 = vmatmul.mubr.f32.gmra.mrb[0].mxu0 %v82
    %v209 = vpop.f32.mrb[0].mxu0
    %v210 = vadd.f32 0.0, %v209
    %v211 = vpop.f32.mrb[0].mxu0
    %212 = vmatprep.mubr.f32.mxu0 0.0
    %213 = vmatmul.mubr.f32.gmra.mrb[0].mxu0 %v85
    %v214 = vpop.f32.mrb[0].mxu0
    %v215 = vadd.f32 0.0, %v214
    %v216 = vpop.f32.mrb[0].mxu0
    %217 = vmatprep.mubr.f32.mxu0 0.0
    %218 = vmatmul.mubr.f32.gmra.mrb[0].mxu0 %v88
    %v219 = vpop.f32.mrb[0].mxu0
    %v220 = vadd.f32 0.0, %v219
    %v221 = vpop.f32.mrb[0].mxu0
    %222 = vmatprep.mubr.f32.mxu0 0.0
    %223 = vmatmul.mubr.f32.gmra.mrb[0].mxu0 %v91
    %v224 = vpop.f32.mrb[0].mxu0
    %v225 = vadd.f32 0.0, %v224
    %v226 = vpop.f32.mrb[0].mxu0
    %227 = vmatprep.mubr.f32.mxu0 0.0
    %228 = vmatmul.mubr.f32.gmra.mrb[0].mxu0 %v94
    %v229 = vpop.f32.mrb[0].mxu0
    %v230 = vadd.f32 0.0, %v229
    %v231 = vpop.f32.mrb[0].mxu0
    %232 = vmatprep.mubr.f32.mxu0 0.0
    %233 = vmatmul.mubr.f32.gmra.mrb[0].mxu0 %v97
    %v234 = vpop.f32.mrb[0].mxu0
    %v235 = vadd.f32 0.0, %v234
    %v236 = vpop.f32.mrb[0].mxu0
    %237 = vmatprep.mubr.f32.mxu0 0.0
    %238 = vmatmul.mubr.f32.gmra.mrb[0].mxu0 %v100
    %v239 = vpop.f32.mrb[0].mxu0
    %v240 = vadd.f32 0.0, %v239
    %v241 = vpop.f32.mrb[0].mxu0
    %242 = vmatprep.mubr.f32.mxu0 0.0
    %243 = vmatmul.mubr.f32.gmra.mrb[0].mxu0 %v103
    %v244 = vpop.f32.mrb[0].mxu0
    %v245 = vadd.f32 0.0, %v244
    %v246 = vpop.f32.mrb[0].mxu0
    %247 = vmatprep.mubr.f32.mxu0 0.0
    %248 = vmatmul.mubr.f32.gmra.mrb[0].mxu0 %v106
    %v249 = vpop.f32.mrb[0].mxu0
    %v250 = vadd.f32 0.0, %v249
    %v251 = vpop.f32.mrb[0].mxu0
    %252 = vdwg.mxu0
    %vm253 = vcmask 31744
    %254 = vst.msk [vmem:[%s4] sm:$0xff] %vm253, %v175
    %255 = vst.msk [vmem:[%s4 + $0x8] sm:$0xff] %vm253, %v180
    %256 = vst.msk [vmem:[%s4 + $0x10] sm:$0xff] %vm253, %v185
    %257 = vst.msk [vmem:[%s4 + $0x18] sm:$0xff] %vm253, %v190
    %258 = vst.msk [vmem:[%s4 + $0x20] sm:$0xff] %vm253, %v195
    %259 = vst.msk [vmem:[%s4 + $0x28] sm:$0xff] %vm253, %v200
    %260 = vst.msk [vmem:[%s4 + $0x30] sm:$0xff] %vm253, %v205
    %261 = vst.msk [vmem:[%s4 + $0x38] sm:$0xff] %vm253, %v210
    %262 = vst.msk [vmem:[%s4 + $0x40] sm:$0xff] %vm253, %v215
    %263 = vst.msk [vmem:[%s4 + $0x48] sm:$0xff] %vm253, %v220
    %264 = vst.msk [vmem:[%s4 + $0x50] sm:$0xff] %vm253, %v225
    %265 = vst.msk [vmem:[%s4 + $0x58] sm:$0xff] %vm253, %v230
    %266 = vst.msk [vmem:[%s4 + $0x60] sm:$0xff] %vm253, %v235
    %267 = vst.msk [vmem:[%s4 + $0x68] sm:$0xff] %vm253, %v240
    %268 = vst.msk [vmem:[%s4 + $0x70] sm:$0xff] %vm253, %v245
    %269 = vst.msk [vmem:[%s4 + $0x78] sm:$0xff] %vm253, %v250
    %v270 = vld [vmem:[%s2] sm:$0xf]
    %v272 = vsel %vm253, %v175, 0
    %v275 = vsel %vm253, %v180, 0
    %v278 = vsel %vm253, %v185, 0
    %v281 = vsel %vm253, %v190, 0
    %v284 = vsel %vm253, %v195, 0
    %v287 = vsel %vm253, %v200, 0
    %v290 = vsel %vm253, %v205, 0
    %v293 = vsel %vm253, %v210, 0
    %v296 = vsel %vm253, %v215, 0
    %v299 = vsel %vm253, %v220, 0
    %v302 = vsel %vm253, %v225, 0
    %v305 = vsel %vm253, %v230, 0
    %v308 = vsel %vm253, %v235, 0
    %v311 = vsel %vm253, %v240, 0
    %v314 = vsel %vm253, %v245, 0
    %v317 = vsel %vm253, %v250, 0
    %vm319 = vcmask 1043456
    %v321 = vsel %vm319, %v270, 0
    %323 = vmatprep.subr.mxu0 0.0
    %324 = vmatpush1.msra.mxu0 %v321
    %325 = vmatprep.subr.mxu0 0.0
    %326 = vmatpush1.msra.mxu0 0.0
    %327 = vmatprep.subr.mxu0 0.0
    %328 = vmatpush1.msra.mxu0 0.0
    %329 = vmatprep.subr.mxu0 0.0
    %330 = vmatpush1.msra.mxu0 0.0
    %331 = vmatprep.subr.mxu0 0.0
    %332 = vmatpush1.msra.mxu0 0.0
    %333 = vmatprep.subr.mxu0 0.0
    %334 = vmatpush1.msra.mxu0 0.0
    %335 = vmatprep.subr.mxu0 0.0
    %336 = vmatpush1.msra.mxu0 0.0
    %337 = vmatprep.subr.mxu0 0.0
    %338 = vmatpush1.msra.mxu0 0.0
    %339 = vmatprep.subr.mxu0 0.0
    %340 = vmatpush1.msra.mxu0 0.0
    %341 = vmatprep.subr.mxu0 0.0
    %342 = vmatpush1.msra.mxu0 0.0
    %343 = vmatprep.subr.mxu0 0.0
    %344 = vmatpush1.msra.mxu0 0.0
    %345 = vmatprep.subr.mxu0 0.0
    %346 = vmatpush1.msra.mxu0 0.0
    %347 = vmatprep.subr.mxu0 0.0
    %348 = vmatpush1.msra.mxu0 0.0
    %349 = vmatprep.subr.mxu0 0.0
    %350 = vmatpush1.msra.mxu0 0.0
    %351 = vmatprep.subr.mxu0 0.0
    %352 = vmatpush1.msra.mxu0 0.0
    %353 = vmatprep.subr.mxu0 0.0
    %354 = vmatpush1.msra.mxu0 0.0
    %355 = vmatprep.subr.mxu0 0.0
    %356 = vmatpush1.msra.mxu0 0.0
    %357 = vmatprep.subr.mxu0 0.0
    %358 = vmatpush1.msra.mxu0 0.0
    %359 = vmatprep.subr.mxu0 0.0
    %360 = vmatpush1.msra.mxu0 0.0
    %361 = vmatprep.subr.mxu0 0.0
    %362 = vmatpush1.msra.mxu0 0.0
    %363 = vmatprep.subr.mxu0 0.0
    %364 = vmatpush1.msra.mxu0 0.0
    %365 = vmatprep.subr.mxu0 0.0
    %366 = vmatpush1.msra.mxu0 0.0
    %367 = vmatprep.subr.mxu0 0.0
    %368 = vmatpush1.msra.mxu0 0.0
    %369 = vmatprep.subr.mxu0 0.0
    %370 = vmatpush1.msra.mxu0 0.0
    %371 = vmatprep.subr.mxu0 0.0
    %372 = vmatpush1.msra.mxu0 0.0
    %373 = vmatprep.subr.mxu0 0.0
    %374 = vmatpush1.msra.mxu0 0.0
    %375 = vmatprep.subr.mxu0 0.0
    %376 = vmatpush1.msra.mxu0 0.0
    %377 = vmatprep.subr.mxu0 0.0
    %378 = vmatpush1.msra.mxu0 0.0
    %379 = vmatprep.subr.mxu0 0.0
    %380 = vmatpush1.msra.mxu0 0.0
    %381 = vmatprep.subr.mxu0 0.0
    %382 = vmatpush1.msra.mxu0 0.0
    %383 = vmatprep.subr.mxu0 0.0
    %384 = vmatpush1.msra.mxu0 0.0
    %385 = vmatprep.subr.mxu0 0.0
    %386 = vmatpush1.msra.mxu0 0.0
    %387 = vmatprep.mubr.f32.mxu0 0.0
    %388 = vmatmul.mubr.f32.gmra.mrb[0].mxu0 %v272
    %v389 = vpop.f32.mrb[0].mxu0
    %v390 = vadd.f32 0.0, %v389
    %v391 = vpop.f32.mrb[0].mxu0
    %392 = vmatprep.mubr.f32.mxu0 0.0
    %393 = vmatmul.mubr.f32.gmra.mrb[0].mxu0 %v275
    %v394 = vpop.f32.mrb[0].mxu0
    %v395 = vadd.f32 0.0, %v394
    %v396 = vpop.f32.mrb[0].mxu0
    %397 = vmatprep.mubr.f32.mxu0 0.0
    %398 = vmatmul.mubr.f32.gmra.mrb[0].mxu0 %v278
    %v399 = vpop.f32.mrb[0].mxu0
    %v400 = vadd.f32 0.0, %v399
    %v401 = vpop.f32.mrb[0].mxu0
    %402 = vmatprep.mubr.f32.mxu0 0.0
    %403 = vmatmul.mubr.f32.gmra.mrb[0].mxu0 %v281
    %v404 = vpop.f32.mrb[0].mxu0
    %v405 = vadd.f32 0.0, %v404
    %v406 = vpop.f32.mrb[0].mxu0
    %407 = vmatprep.mubr.f32.mxu0 0.0
    %408 = vmatmul.mubr.f32.gmra.mrb[0].mxu0 %v284
    %v409 = vpop.f32.mrb[0].mxu0
    %v410 = vadd.f32 0.0, %v409
    %v411 = vpop.f32.mrb[0].mxu0
    %412 = vmatprep.mubr.f32.mxu0 0.0
    %413 = vmatmul.mubr.f32.gmra.mrb[0].mxu0 %v287
    %v414 = vpop.f32.mrb[0].mxu0
    %v415 = vadd.f32 0.0, %v414
    %v416 = vpop.f32.mrb[0].mxu0
    %417 = vmatprep.mubr.f32.mxu0 0.0
    %418 = vmatmul.mubr.f32.gmra.mrb[0].mxu0 %v290
    %v419 = vpop.f32.mrb[0].mxu0
    %v420 = vadd.f32 0.0, %v419
    %v421 = vpop.f32.mrb[0].mxu0
    %422 = vmatprep.mubr.f32.mxu0 0.0
    %423 = vmatmul.mubr.f32.gmra.mrb[0].mxu0 %v293
    %v424 = vpop.f32.mrb[0].mxu0
    %v425 = vadd.f32 0.0, %v424
    %v426 = vpop.f32.mrb[0].mxu0
    %427 = vmatprep.mubr.f32.mxu0 0.0
    %428 = vmatmul.mubr.f32.gmra.mrb[0].mxu0 %v296
    %v429 = vpop.f32.mrb[0].mxu0
    %v430 = vadd.f32 0.0, %v429
    %v431 = vpop.f32.mrb[0].mxu0
    %432 = vmatprep.mubr.f32.mxu0 0.0
    %433 = vmatmul.mubr.f32.gmra.mrb[0].mxu0 %v299
    %v434 = vpop.f32.mrb[0].mxu0
    %v435 = vadd.f32 0.0, %v434
    %v436 = vpop.f32.mrb[0].mxu0
    %437 = vmatprep.mubr.f32.mxu0 0.0
    %438 = vmatmul.mubr.f32.gmra.mrb[0].mxu0 %v302
    %v439 = vpop.f32.mrb[0].mxu0
    %v440 = vadd.f32 0.0, %v439
    %v441 = vpop.f32.mrb[0].mxu0
    %442 = vmatprep.mubr.f32.mxu0 0.0
    %443 = vmatmul.mubr.f32.gmra.mrb[0].mxu0 %v305
    %v444 = vpop.f32.mrb[0].mxu0
    %v445 = vadd.f32 0.0, %v444
    %v446 = vpop.f32.mrb[0].mxu0
    %447 = vmatprep.mubr.f32.mxu0 0.0
    %448 = vmatmul.mubr.f32.gmra.mrb[0].mxu0 %v308
    %v449 = vpop.f32.mrb[0].mxu0
    %v450 = vadd.f32 0.0, %v449
    %v451 = vpop.f32.mrb[0].mxu0
    %452 = vmatprep.mubr.f32.mxu0 0.0
    %453 = vmatmul.mubr.f32.gmra.mrb[0].mxu0 %v311
    %v454 = vpop.f32.mrb[0].mxu0
    %v455 = vadd.f32 0.0, %v454
    %v456 = vpop.f32.mrb[0].mxu0
    %457 = vmatprep.mubr.f32.mxu0 0.0
    %458 = vmatmul.mubr.f32.gmra.mrb[0].mxu0 %v314
    %v459 = vpop.f32.mrb[0].mxu0
    %v460 = vadd.f32 0.0, %v459
    %v461 = vpop.f32.mrb[0].mxu0
    %462 = vmatprep.mubr.f32.mxu0 0.0
    %463 = vmatmul.mubr.f32.gmra.mrb[0].mxu0 %v317
    %v464 = vpop.f32.mrb[0].mxu0
    %v465 = vadd.f32 0.0, %v464
    %v466 = vpop.f32.mrb[0].mxu0
    %467 = vdwg.mxu0
    %vm468 = vcmask 7168
    %469 = vst.msk [vmem:[%s5] sm:$0xff] %vm468, %v390
    %470 = vst.msk [vmem:[%s5 + $0x8] sm:$0xff] %vm468, %v395
    %471 = vst.msk [vmem:[%s5 + $0x10] sm:$0xff] %vm468, %v400
    %472 = vst.msk [vmem:[%s5 + $0x18] sm:$0xff] %vm468, %v405
    %473 = vst.msk [vmem:[%s5 + $0x20] sm:$0xff] %vm468, %v410
    %474 = vst.msk [vmem:[%s5 + $0x28] sm:$0xff] %vm468, %v415
    %475 = vst.msk [vmem:[%s5 + $0x30] sm:$0xff] %vm468, %v420
    %476 = vst.msk [vmem:[%s5 + $0x38] sm:$0xff] %vm468, %v425
    %477 = vst.msk [vmem:[%s5 + $0x40] sm:$0xff] %vm468, %v430
    %478 = vst.msk [vmem:[%s5 + $0x48] sm:$0xff] %vm468, %v435
    %479 = vst.msk [vmem:[%s5 + $0x50] sm:$0xff] %vm468, %v440
    %480 = vst.msk [vmem:[%s5 + $0x58] sm:$0xff] %vm468, %v445
    %481 = vst.msk [vmem:[%s5 + $0x60] sm:$0xff] %vm468, %v450
    %482 = vst.msk [vmem:[%s5 + $0x68] sm:$0xff] %vm468, %v455
    %483 = vst.msk [vmem:[%s5 + $0x70] sm:$0xff] %vm468, %v460
    %484 = vst.msk [vmem:[%s5 + $0x78] sm:$0xff] %vm468, %v465
    %v485 = vld [vmem:[%s3] sm:$0xf]
    %v487 = vsel %vm319, %v485, 0
    %489 = vmatprep.subr.mxu0 0.0
    %490 = vmatpush1.msra.mxu0 %v487
    %491 = vmatprep.subr.mxu0 0.0
    %492 = vmatpush1.msra.mxu0 0.0
    %493 = vmatprep.subr.mxu0 0.0
    %494 = vmatpush1.msra.mxu0 0.0
    %495 = vmatprep.subr.mxu0 0.0
    %496 = vmatpush1.msra.mxu0 0.0
    %497 = vmatprep.subr.mxu0 0.0
    %498 = vmatpush1.msra.mxu0 0.0
    %499 = vmatprep.subr.mxu0 0.0
    %500 = vmatpush1.msra.mxu0 0.0
    %501 = vmatprep.subr.mxu0 0.0
    %502 = vmatpush1.msra.mxu0 0.0
    %503 = vmatprep.subr.mxu0 0.0
    %504 = vmatpush1.msra.mxu0 0.0
    %505 = vmatprep.subr.mxu0 0.0
    %506 = vmatpush1.msra.mxu0 0.0
    %507 = vmatprep.subr.mxu0 0.0
    %508 = vmatpush1.msra.mxu0 0.0
    %509 = vmatprep.subr.mxu0 0.0
    %510 = vmatpush1.msra.mxu0 0.0
    %511 = vmatprep.subr.mxu0 0.0
    %512 = vmatpush1.msra.mxu0 0.0
    %513 = vmatprep.subr.mxu0 0.0
    %514 = vmatpush1.msra.mxu0 0.0
    %515 = vmatprep.subr.mxu0 0.0
    %516 = vmatpush1.msra.mxu0 0.0
    %517 = vmatprep.subr.mxu0 0.0
    %518 = vmatpush1.msra.mxu0 0.0
    %519 = vmatprep.subr.mxu0 0.0
    %520 = vmatpush1.msra.mxu0 0.0
    %521 = vmatprep.subr.mxu0 0.0
    %522 = vmatpush1.msra.mxu0 0.0
    %523 = vmatprep.subr.mxu0 0.0
    %524 = vmatpush1.msra.mxu0 0.0
    %525 = vmatprep.subr.mxu0 0.0
    %526 = vmatpush1.msra.mxu0 0.0
    %527 = vmatprep.subr.mxu0 0.0
    %528 = vmatpush1.msra.mxu0 0.0
    %529 = vmatprep.subr.mxu0 0.0
    %530 = vmatpush1.msra.mxu0 0.0
    %531 = vmatprep.subr.mxu0 0.0
    %532 = vmatpush1.msra.mxu0 0.0
    %533 = vmatprep.subr.mxu0 0.0
    %534 = vmatpush1.msra.mxu0 0.0
    %535 = vmatprep.subr.mxu0 0.0
    %536 = vmatpush1.msra.mxu0 0.0
    %537 = vmatprep.subr.mxu0 0.0
    %538 = vmatpush1.msra.mxu0 0.0
    %539 = vmatprep.subr.mxu0 0.0
    %540 = vmatpush1.msra.mxu0 0.0
    %541 = vmatprep.subr.mxu0 0.0
    %542 = vmatpush1.msra.mxu0 0.0
    %543 = vmatprep.subr.mxu0 0.0
    %544 = vmatpush1.msra.mxu0 0.0
    %545 = vmatprep.subr.mxu0 0.0
    %546 = vmatpush1.msra.mxu0 0.0
    %547 = vmatprep.subr.mxu0 0.0
    %548 = vmatpush1.msra.mxu0 0.0
    %549 = vmatprep.subr.mxu0 0.0
    %550 = vmatpush1.msra.mxu0 0.0
    %551 = vmatprep.subr.mxu0 0.0
    %552 = vmatpush1.msra.mxu0 0.0
    %553 = vmatprep.mubr.f32.mxu0 0.0
    %554 = vmatmul.mubr.f32.gmra.mrb[0].mxu0 %v272
    %v555 = vpop.f32.mrb[0].mxu0
    %v556 = vadd.f32 0.0, %v555
    %v557 = vpop.f32.mrb[0].mxu0
    %558 = vmatprep.mubr.f32.mxu0 0.0
    %559 = vmatmul.mubr.f32.gmra.mrb[0].mxu0 %v275
    %v560 = vpop.f32.mrb[0].mxu0
    %v561 = vadd.f32 0.0, %v560
    %v562 = vpop.f32.mrb[0].mxu0
    %563 = vmatprep.mubr.f32.mxu0 0.0
    %564 = vmatmul.mubr.f32.gmra.mrb[0].mxu0 %v278
    %v565 = vpop.f32.mrb[0].mxu0
    %v566 = vadd.f32 0.0, %v565
    %v567 = vpop.f32.mrb[0].mxu0
    %568 = vmatprep.mubr.f32.mxu0 0.0
    %569 = vmatmul.mubr.f32.gmra.mrb[0].mxu0 %v281
    %v570 = vpop.f32.mrb[0].mxu0
    %v571 = vadd.f32 0.0, %v570
    %v572 = vpop.f32.mrb[0].mxu0
    %573 = vmatprep.mubr.f32.mxu0 0.0
    %574 = vmatmul.mubr.f32.gmra.mrb[0].mxu0 %v284
    %v575 = vpop.f32.mrb[0].mxu0
    %v576 = vadd.f32 0.0, %v575
    %v577 = vpop.f32.mrb[0].mxu0
    %578 = vmatprep.mubr.f32.mxu0 0.0
    %579 = vmatmul.mubr.f32.gmra.mrb[0].mxu0 %v287
    %v580 = vpop.f32.mrb[0].mxu0
    %v581 = vadd.f32 0.0, %v580
    %v582 = vpop.f32.mrb[0].mxu0
    %583 = vmatprep.mubr.f32.mxu0 0.0
    %584 = vmatmul.mubr.f32.gmra.mrb[0].mxu0 %v290
    %v585 = vpop.f32.mrb[0].mxu0
    %v586 = vadd.f32 0.0, %v585
    %v587 = vpop.f32.mrb[0].mxu0
    %588 = vmatprep.mubr.f32.mxu0 0.0
    %589 = vmatmul.mubr.f32.gmra.mrb[0].mxu0 %v293
    %v590 = vpop.f32.mrb[0].mxu0
    %v591 = vadd.f32 0.0, %v590
    %v592 = vpop.f32.mrb[0].mxu0
    %593 = vmatprep.mubr.f32.mxu0 0.0
    %594 = vmatmul.mubr.f32.gmra.mrb[0].mxu0 %v296
    %v595 = vpop.f32.mrb[0].mxu0
    %v596 = vadd.f32 0.0, %v595
    %v597 = vpop.f32.mrb[0].mxu0
    %598 = vmatprep.mubr.f32.mxu0 0.0
    %599 = vmatmul.mubr.f32.gmra.mrb[0].mxu0 %v299
    %v600 = vpop.f32.mrb[0].mxu0
    %v601 = vadd.f32 0.0, %v600
    %v602 = vpop.f32.mrb[0].mxu0
    %603 = vmatprep.mubr.f32.mxu0 0.0
    %604 = vmatmul.mubr.f32.gmra.mrb[0].mxu0 %v302
    %v605 = vpop.f32.mrb[0].mxu0
    %v606 = vadd.f32 0.0, %v605
    %v607 = vpop.f32.mrb[0].mxu0
    %608 = vmatprep.mubr.f32.mxu0 0.0
    %609 = vmatmul.mubr.f32.gmra.mrb[0].mxu0 %v305
    %v610 = vpop.f32.mrb[0].mxu0
    %v611 = vadd.f32 0.0, %v610
    %v612 = vpop.f32.mrb[0].mxu0
    %613 = vmatprep.mubr.f32.mxu0 0.0
    %614 = vmatmul.mubr.f32.gmra.mrb[0].mxu0 %v308
    %v615 = vpop.f32.mrb[0].mxu0
    %v616 = vadd.f32 0.0, %v615
    %v617 = vpop.f32.mrb[0].mxu0
    %618 = vmatprep.mubr.f32.mxu0 0.0
    %619 = vmatmul.mubr.f32.gmra.mrb[0].mxu0 %v311
    %v620 = vpop.f32.mrb[0].mxu0
    %v621 = vadd.f32 0.0, %v620
    %v622 = vpop.f32.mrb[0].mxu0
    %623 = vmatprep.mubr.f32.mxu0 0.0
    %624 = vmatmul.mubr.f32.gmra.mrb[0].mxu0 %v314
    %v625 = vpop.f32.mrb[0].mxu0
    %v626 = vadd.f32 0.0, %v625
    %v627 = vpop.f32.mrb[0].mxu0
    %628 = vmatprep.mubr.f32.mxu0 0.0
    %629 = vmatmul.mubr.f32.gmra.mrb[0].mxu0 %v317
    %v630 = vpop.f32.mrb[0].mxu0
    %v631 = vadd.f32 0.0, %v630
    %v632 = vpop.f32.mrb[0].mxu0
    %633 = vdwg.mxu0
    %634 = vst.msk [vmem:[#allocation5] sm:$0xff] %vm468, %v556
    %635 = vst.msk [vmem:[#allocation5 + $0x8] sm:$0xff] %vm468, %v561
    %636 = vst.msk [vmem:[#allocation5 + $0x10] sm:$0xff] %vm468, %v566
    %637 = vst.msk [vmem:[#allocation5 + $0x18] sm:$0xff] %vm468, %v571
    %638 = vst.msk [vmem:[#allocation5 + $0x20] sm:$0xff] %vm468, %v576
    %639 = vst.msk [vmem:[#allocation5 + $0x28] sm:$0xff] %vm468, %v581
    %640 = vst.msk [vmem:[#allocation5 + $0x30] sm:$0xff] %vm468, %v586
    %641 = vst.msk [vmem:[#allocation5 + $0x38] sm:$0xff] %vm468, %v591
    %642 = vst.msk [vmem:[#allocation5 + $0x40] sm:$0xff] %vm468, %v596
    %643 = vst.msk [vmem:[#allocation5 + $0x48] sm:$0xff] %vm468, %v601
    %644 = vst.msk [vmem:[#allocation5 + $0x50] sm:$0xff] %vm468, %v606
    %645 = vst.msk [vmem:[#allocation5 + $0x58] sm:$0xff] %vm468, %v611
    %646 = vst.msk [vmem:[#allocation5 + $0x60] sm:$0xff] %vm468, %v616
    %647 = vst.msk [vmem:[#allocation5 + $0x68] sm:$0xff] %vm468, %v621
    %648 = vst.msk [vmem:[#allocation5 + $0x70] sm:$0xff] %vm468, %v626
    %649 = vst.msk [vmem:[#allocation5 + $0x78] sm:$0xff] %vm468, %v631
    // Predicated region
    $region22: #{gat_forward.6} parent=1 // pred_check
      _
    $region23: #{gat_forward.6} parent=1 // pred_check_branch
      %651 = sbr.rel (0) target = $region25
    $region24: #{gat_forward.6} parent=1 // pred_region
      _
    $region25: #{gat_forward.6} parent=1 // pred_fallthru
      _
    // Predicated region
    $region26: #{gat_forward.6} parent=1 // pred_check
      _
    $region27: #{gat_forward.6} parent=1 // pred_check_branch
      %653 = sbr.rel (0) target = $region29
    $region28: #{gat_forward.6} parent=1 // pred_region
      _
    $region29: #{gat_forward.6} parent=1 // pred_fallthru
      _
    // Predicated region
    $region30: #{gat_forward.6} parent=1 // pred_check
      _
    $region31: #{gat_forward.6} parent=1 // pred_check_branch
      %655 = sbr.rel (0) target = $region33
    $region32: #{gat_forward.6} parent=1 // pred_region
      %s657 = ssub.s32 2048, 2048
      %658 = vsyncadd [#allocation4], %s657
      %s659 = sshll.u32 [#allocation5], 4
      %s660 = int_to_ptr.vmem [resolvable:$true] %s659
      %665 = dma.vmem_to_hbm [thread:$0]  %s660, 2048, %s6, [#allocation4], 128, 128, 8
    $region33: #{gat_forward.6} parent=1 // pred_fallthru
      _
    // Predicated region
    $region34: #{gat_forward.6} parent=1 // pred_check
      _
    $region35: #{gat_forward.6} parent=1 // pred_check_branch
      %667 = sbr.rel (0) target = $region37
    $region36: #{gat_forward.6} parent=1 // pred_region
      _
    $region37: #{gat_forward.6} parent=1 // pred_fallthru
      _
    // Predicated region
    $region38: #{gat_forward.6} parent=1 // pred_check
      _
    $region39: #{gat_forward.6} parent=1 // pred_check_branch
      %669 = sbr.rel (0) target = $region41
    $region40: #{gat_forward.6} parent=1 // pred_region
      _
    $region41: #{gat_forward.6} parent=1 // pred_fallthru
      _
    // Predicated region
    $region42: #{gat_forward.6} parent=1 // pred_check
      _
    $region43: #{gat_forward.6} parent=1 // pred_check_branch
      %671 = sbr.rel (0) target = $region45
    $region44: #{gat_forward.6} parent=1 // pred_region
      %672 = dma.done [#allocation4], 2048
    $region45: #{gat_forward.6} parent=1 // pred_fallthru
      _
    %673 = vsyncpa [#allocation3], 1
    %674 = vsyncpa [#allocation4], 1

// kernel: gat_forward.5
$region0: #{gat_forward.5}
  #allocation0 [shape = 'u32[]', space=smem, size = 0x4, offset = 0x4, fixed_abs, tag = 'smem constant byte address 0x4 - core index']
  #allocation1 [shape = 'u32[144,128]{1,0:T(1,128)}', space=vmem, size = 0x12000, scoped, tag = 'internal scratch']
  #allocation2 [shape = 'f32[128,128]{1,0:T(8,128)}', space=vmem, size = 0x10000, scoped, tag = 'scratch operand']
  %s0 = inlined_call_operand.hbm [shape: f32[8,128,1], index: 0, kind: input, shape index: {}]
  %s1 = inlined_call_operand.hbm [shape: f32[8,1,128], index: 1, kind: input, shape index: {}]
  %s2 = inlined_call_operand.hbm [shape: f32[8,128,128], index: 2, kind: input, shape index: {}]
  %s3 = inlined_call_operand.hbm [shape: f32[1,128], index: 3, kind: input, shape index: {}]
  %s4 = inlined_call_operand.hbm [shape: bf16[128,128], index: 4, kind: input, shape index: {}]
  %s5 = inlined_call_operand.hbm [shape: f32[128,128], index: 5, kind: output, shape index: {}]
  %s6 = sld [smem:[#allocation0]]
  $region81: #{gat_forward.5} parent=0
    _
  %s8 = ssub.s32 1, %s6
  %s9 = scalar_select 0, %s8, %s6
  $region1: #{gat_forward.5} parent=0
    #allocation3 [shape = 'u8[131072]{0}', space=vmem, size = 0x20000, scoped, tag = 'input window, operand 0']
    #allocation4 [shape = 's32[2]{0}', space=sflag, size = 0x8, scoped, tag = 'scoped memory for gat_forward.5']
    #allocation5 [shape = 's32[2]{0}', space=sflag, size = 0x8, scoped, tag = 'scoped memory for gat_forward.5']
    #allocation6 [shape = 'u8[1024]{0}', space=vmem, size = 0x400, scoped, tag = 'input window, operand 1']
    #allocation7 [shape = 's32[2]{0}', space=sflag, size = 0x8, scoped, tag = 'scoped memory for gat_forward.5']
    #allocation8 [shape = 'u8[131072]{0}', space=vmem, size = 0x20000, scoped, tag = 'input window, operand 2']
    #allocation9 [shape = 'u8[512]{0}', space=vmem, size = 0x400, scoped, tag = 'input window, operand 3, single buffered']
    #allocation10 [shape = 's32[1]{0}', space=sflag, size = 0x4, scoped, tag = 'scoped memory for gat_forward.5']
    #allocation11 [shape = 'u8[32768]{0}', space=vmem, size = 0x8000, scoped, tag = 'input window, operand 4, single buffered']
    #allocation12 [shape = 'u8[65536]{0}', space=vmem, size = 0x10000, scoped, tag = 'output window, operand 0, single buffered']
    %10 = vsyncpa [#allocation4], 0
    %s11 = scalar_lea.sflag [#allocation4], 1
    %12 = vsyncpa %s11, 0
    %13 = vsyncpa [#allocation7], 0
    %s14 = scalar_lea.sflag [#allocation7], 1
    %15 = vsyncpa %s14, 0
    %16 = vsyncpa [#allocation10], 0
    %17 = vsyncpa [#allocation5], 0
    loop: start=0, step=1, limit=10
    $region2: #{gat_forward.5} parent=1 // loop_pre_header
      _
    $region3: #{gat_forward.5} parent=1 // loop_header
      %s19 = sphi 0, %s23
      %p20 = scmp.ge.s32.totalorder %s19, 10
      %s26 = sphi 0, %s38
      %s27 = sphi 0, %s34
      %s28 = sphi 0, %s26
      %s29 = sphi 0, %s27
      %s30 = sphi 0, %s28
      %s31 = sphi 0, %s29
      %s43 = sphi 0, %s45
      %s46 = sphi 0, %s43
      %s47 = sphi 0, %s46
      %s63 = sphi 0, %s47
      %s69 = sphi 0, %s71
      %s72 = sphi 0, %s69
      %s73 = sphi 0, %s72
      %s89 = sphi 0, %s73
      %s95 = sphi 0, %s97
      %s98 = sphi 0, %s95
      %s99 = sphi 0, %s98
      %s115 = sphi 0, %s99
      %s119 = sphi 0, %s119
      %s121 = sphi 0, %s119
      %s122 = sphi 0, %s121
      %s136 = sphi 0, %s122
      %s142 = sphi 0, %s144
      %s145 = sphi 0, %s142
      %s146 = sphi 0, %s145
      %s162 = sphi 0, %s146
      %s168 = sphi 0, %s170
      %s171 = sphi 0, %s168
      %s172 = sphi 0, %s171
      %s188 = sphi 0, %s172
    $region4: #{gat_forward.5} parent=1 // loop_header_branch
      %22 = sbr.rel (%p20) target = $region8
    $region5: #{gat_forward.5} parent=1 // loop_body
      %s24 = ssub.s32 %s19, 1
      %s25 = ssub.s32 %s19, 2
      %s32 = sadd.s32 1, %s27
      %p33 = scmp.ge.s32.totalorder %s32, 8
      %s34 = scalar_select %p33, 0, %s32
      %s35 = sadd.s32 1, %s26
      %s36 = scalar_select %p33, %s35, %s26
      %p37 = scmp.ge.s32.totalorder %s36, 1
      %s38 = scalar_select %p37, 0, %s36
      %s39 = ssub.s32 %s27, %s34
      %s40 = ssub.s32 %s26, %s38
      %s41 = sor.u32 %s39, %s40
      %p42 = scmp.eq.s32.totalorder %s41, 0
      %s44 = sadd.s32 %s43, 1
      %s45 = scalar_select %p42, %s43, %s44
      %p48 = pneg %p42
      %p49 = scmp.eq.s32.totalorder %s19, 7
      %p50 = por %p48, %p49
      %p51 = scmp.ne.s32.totalorder %s43, %s46
      %p52 = scmp.eq.s32.totalorder %s19, 0
      %p53 = por %p51, %p52
      %p54 = scmp.ne.s32.totalorder %s43, %s46
      %p55 = scmp.eq.s32.totalorder %s24, 7
      %p56 = por %p54, %p55
      %p57 = scmp.ne.s32.totalorder %s46, %s47
      %p58 = scmp.eq.s32.totalorder %s24, 0
      %p59 = por %p57, %p58
      %p60 = scmp.ne.s32.totalorder %s46, %s47
      %p61 = scmp.eq.s32.totalorder %s25, 7
      %p62 = por %p60, %p61
      %p64 = scmp.ne.s32.totalorder %s47, %s63
      %p65 = scmp.eq.s32.totalorder %s25, 0
      %p66 = por %p64, %p65
      %s67 = ssub.s32 %s27, %s34
      %p68 = scmp.eq.s32.totalorder %s67, 0
      %s70 = sadd.s32 %s69, 1
      %s71 = scalar_select %p68, %s69, %s70
      %p74 = pneg %p68
      %p75 = scmp.eq.s32.totalorder %s19, 7
      %p76 = por %p74, %p75
      %p77 = scmp.ne.s32.totalorder %s69, %s72
      %p78 = scmp.eq.s32.totalorder %s19, 0
      %p79 = por %p77, %p78
      %p80 = scmp.ne.s32.totalorder %s69, %s72
      %p81 = scmp.eq.s32.totalorder %s24, 7
      %p82 = por %p80, %p81
      %p83 = scmp.ne.s32.totalorder %s72, %s73
      %p84 = scmp.eq.s32.totalorder %s24, 0
      %p85 = por %p83, %p84
      %p86 = scmp.ne.s32.totalorder %s72, %s73
      %p87 = scmp.eq.s32.totalorder %s25, 7
      %p88 = por %p86, %p87
      %p90 = scmp.ne.s32.totalorder %s73, %s89
      %p91 = scmp.eq.s32.totalorder %s25, 0
      %p92 = por %p90, %p91
      %s93 = ssub.s32 %s27, %s34
      %p94 = scmp.eq.s32.totalorder %s93, 0
      %s96 = sadd.s32 %s95, 1
      %s97 = scalar_select %p94, %s95, %s96
      %p100 = pneg %p94
      %p101 = scmp.eq.s32.totalorder %s19, 7
      %p102 = por %p100, %p101
      %p103 = scmp.ne.s32.totalorder %s95, %s98
      %p104 = scmp.eq.s32.totalorder %s19, 0
      %p105 = por %p103, %p104
      %p106 = scmp.ne.s32.totalorder %s95, %s98
      %p107 = scmp.eq.s32.totalorder %s24, 7
      %p108 = por %p106, %p107
      %p109 = scmp.ne.s32.totalorder %s98, %s99
      %p110 = scmp.eq.s32.totalorder %s24, 0
      %p111 = por %p109, %p110
      %p112 = scmp.ne.s32.totalorder %s98, %s99
      %p113 = scmp.eq.s32.totalorder %s25, 7
      %p114 = por %p112, %p113
      %p116 = scmp.ne.s32.totalorder %s99, %s115
      %p117 = scmp.eq.s32.totalorder %s25, 0
      %p118 = por %p116, %p117
      %s120 = sadd.s32 %s119, 1
      %p123 = scmp.eq.s32.totalorder %s19, 7
      %p124 = scmp.ne.s32.totalorder %s119, %s121
      %p125 = scmp.eq.s32.totalorder %s19, 0
      %p126 = por %p124, %p125
      %p127 = scmp.ne.s32.totalorder %s119, %s121
      %p128 = scmp.eq.s32.totalorder %s24, 7
      %p129 = por %p127, %p128
      %p130 = scmp.ne.s32.totalorder %s121, %s122
      %p131 = scmp.eq.s32.totalorder %s24, 0
      %p132 = por %p130, %p131
      %p133 = scmp.ne.s32.totalorder %s121, %s122
      %p134 = scmp.eq.s32.totalorder %s25, 7
      %p135 = por %p133, %p134
      %p137 = scmp.ne.s32.totalorder %s122, %s136
      %p138 = scmp.eq.s32.totalorder %s25, 0
      %p139 = por %p137, %p138
      %s140 = ssub.s32 %s26, %s38
      %p141 = scmp.eq.s32.totalorder %s140, 0
      %s143 = sadd.s32 %s142, 1
      %s144 = scalar_select %p141, %s142, %s143
      %p147 = pneg %p141
      %p148 = scmp.eq.s32.totalorder %s19, 7
      %p149 = por %p147, %p148
      %p150 = scmp.ne.s32.totalorder %s142, %s145
      %p151 = scmp.eq.s32.totalorder %s19, 0
      %p152 = por %p150, %p151
      %p153 = scmp.ne.s32.totalorder %s142, %s145
      %p154 = scmp.eq.s32.totalorder %s24, 7
      %p155 = por %p153, %p154
      %p156 = scmp.ne.s32.totalorder %s145, %s146
      %p157 = scmp.eq.s32.totalorder %s24, 0
      %p158 = por %p156, %p157
      %p159 = scmp.ne.s32.totalorder %s145, %s146
      %p160 = scmp.eq.s32.totalorder %s25, 7
      %p161 = por %p159, %p160
      %p163 = scmp.ne.s32.totalorder %s146, %s162
      %p164 = scmp.eq.s32.totalorder %s25, 0
      %p165 = por %p163, %p164
      %s166 = ssub.s32 %s26, %s38
      %p167 = scmp.eq.s32.totalorder %s166, 0
      %s169 = sadd.s32 %s168, 1
      %s170 = scalar_select %p167, %s168, %s169
      %p173 = pneg %p167
      %p174 = scmp.eq.s32.totalorder %s19, 7
      %p175 = por %p173, %p174
      %p176 = scmp.ne.s32.totalorder %s168, %s171
      %p177 = scmp.eq.s32.totalorder %s19, 0
      %p178 = por %p176, %p177
      %p179 = scmp.ne.s32.totalorder %s168, %s171
      %p180 = scmp.eq.s32.totalorder %s24, 7
      %p181 = por %p179, %p180
      %p182 = scmp.ne.s32.totalorder %s171, %s172
      %p183 = scmp.eq.s32.totalorder %s24, 0
      %p184 = por %p182, %p183
      %p185 = scmp.ne.s32.totalorder %s171, %s172
      %p186 = scmp.eq.s32.totalorder %s25, 7
      %p187 = por %p185, %p186
      %p189 = scmp.ne.s32.totalorder %s172, %s188
      %p190 = scmp.eq.s32.totalorder %s25, 0
      %p191 = por %p189, %p190
      %p192 = scmp.le.s32.totalorder 1, %s19
      %p193 = scmp.lt.s32.totalorder %s19, 9
      %p194 = pnand %p192, %p193
      %p195 = pneg %p194
      // Predicated region
      $region9: #{gat_forward.5} parent=5 // pred_check
        _
      $region10: #{gat_forward.5} parent=5 // pred_check_branch
        %197 = sbr.rel (%p194) target = $region12
      $region11: #{gat_forward.5} parent=5 // pred_region
        %s198 = ssub.s32 %s19, 1
        // Predicated region
        $region13: #{gat_forward.5} parent=11 // pred_check
          %p199 = pneg %p132
        $region14: #{gat_forward.5} parent=11 // pred_check_branch
          %201 = sbr.rel (%p199) target = $region16
        $region15: #{gat_forward.5} parent=11 // pred_region
          %s203 = ssub.s32 16, 16
          %204 = vsyncadd [#allocation10], %s203
          %s206 = sshll.u32 [#allocation9], 4
          %s207 = int_to_ptr.vmem [resolvable:$true] %s206
          %209 = dma.hbm_to_vmem [thread:$0]  %s3, 16, %s207, [#allocation10]
        $region16: #{gat_forward.5} parent=11 // pred_fallthru
          _
        // Predicated region
        $region17: #{gat_forward.5} parent=11 // pred_check
          %p210 = pneg %p158
        $region18: #{gat_forward.5} parent=11 // pred_check_branch
          %212 = sbr.rel (%p210) target = $region20
        $region19: #{gat_forward.5} parent=11 // pred_region
          %s213 = smul.u32 16, %s28
          %s215 = ssub.s32 1024, 1024
          %216 = vsyncadd [#allocation10], %s215
          %s217 = smul.addr %s213, 64
          %s218 = scalar_lea.hbm %s4, %s217
          %s219 = sshll.u32 [#allocation11], 4
          %s220 = int_to_ptr.vmem [resolvable:$true] %s219
          %225 = dma.hbm_to_vmem [thread:$0]  %s218, 1024, %s220, [#allocation10], 64, 64, 4
        $region20: #{gat_forward.5} parent=11 // pred_fallthru
          _
      $region12: #{gat_forward.5} parent=5 // pred_fallthru
        _
      %p226 = scmp.lt.s32.totalorder %s19, 8
      // Predicated region
      $region21: #{gat_forward.5} parent=5 // pred_check
        %p227 = pneg %p226
      $region22: #{gat_forward.5} parent=5 // pred_check_branch
        %229 = sbr.rel (%p227) target = $region24
      $region23: #{gat_forward.5} parent=5 // pred_region
        // Predicated region
        $region25: #{gat_forward.5} parent=23 // pred_check
          %p230 = pneg %p53
        $region26: #{gat_forward.5} parent=23 // pred_check_branch
          %232 = sbr.rel (%p230) target = $region28
        $region27: #{gat_forward.5} parent=23 // pred_region
          %s233 = sand.u32 %s43, 1
          %s234 = scalar_lea.sflag [#allocation4], %s233
          %s235 = sand.u32 %s43, 1
          %s236 = smul.addr %s235, 128
          %s237 = scalar_lea.vmem [#allocation3], %s236
          %s238 = smul.u32 16, %s26
          %s240 = ssub.s32 2048, 2048
          %241 = vsyncadd %s234, %s240
          %s242 = smul.addr %s27, 16
          %s243 = sadd.s32 %s238, %s242
          %s244 = smul.addr %s243, 128
          %s245 = scalar_lea.hbm %s0, %s244
          %s246 = sshll.u32 %s237, 4
          %s247 = int_to_ptr.vmem [resolvable:$true] %s246
          %252 = dma.hbm_to_vmem [thread:$0]  %s245, 2048, %s247, %s234, 128, 128, 8
        $region28: #{gat_forward.5} parent=23 // pred_fallthru
          _
        // Predicated region
        $region29: #{gat_forward.5} parent=23 // pred_check
          %p253 = pneg %p79
        $region30: #{gat_forward.5} parent=23 // pred_check_branch
          %255 = sbr.rel (%p253) target = $region32
        $region31: #{gat_forward.5} parent=23 // pred_region
          %s256 = sand.u32 %s19, 1
          %s257 = scalar_lea.sflag [#allocation7], %s256
          %s258 = sand.u32 %s69, 1
          %s259 = scalar_lea.vmem [#allocation6], %s258
          %s261 = ssub.s32 16, 16
          %262 = vsyncadd %s257, %s261
          %s263 = smul.addr %s27, 16
          %s264 = scalar_lea.hbm %s1, %s263
          %s266 = sshll.u32 %s259, 4
          %s267 = int_to_ptr.vmem [resolvable:$true] %s266
          %269 = dma.hbm_to_vmem [thread:$0]  %s264, 16, %s267, %s257
        $region32: #{gat_forward.5} parent=23 // pred_fallthru
          _
        // Predicated region
        $region33: #{gat_forward.5} parent=23 // pred_check
          %p270 = pneg %p105
        $region34: #{gat_forward.5} parent=23 // pred_check_branch
          %272 = sbr.rel (%p270) target = $region36
        $region35: #{gat_forward.5} parent=23 // pred_region
          %s273 = sand.u32 %s19, 1
          %s274 = scalar_lea.sflag [#allocation7], %s273
          %s275 = sand.u32 %s95, 1
          %s276 = smul.addr %s275, 128
          %s277 = scalar_lea.vmem [#allocation8], %s276
          %s279 = ssub.s32 2048, 2048
          %280 = vsyncadd %s274, %s279
          %s281 = smul.addr %s27, 16
          %s282 = smul.addr %s281, 128
          %s283 = scalar_lea.hbm %s2, %s282
          %s284 = sshll.u32 %s277, 4
          %s285 = int_to_ptr.vmem [resolvable:$true] %s284
          %290 = dma.hbm_to_vmem [thread:$0]  %s283, 2048, %s285, %s274, 128, 128, 8
        $region36: #{gat_forward.5} parent=23 // pred_fallthru
          _
      $region24: #{gat_forward.5} parent=5 // pred_fallthru
        _
      %p291 = scmp.le.s32.totalorder 1, %s19
      %p292 = scmp.lt.s32.totalorder %s19, 9
      %p293 = pnand %p291, %p292
      %p294 = pneg %p293
      // Predicated region
      $region37: #{gat_forward.5} parent=5 // pred_check
        _
      $region38: #{gat_forward.5} parent=5 // pred_check_branch
        %296 = sbr.rel (%p293) target = $region40
      $region39: #{gat_forward.5} parent=5 // pred_region
        %s297 = ssub.s32 %s19, 1
        %s298 = sand.u32 %s46, 1
        %s299 = scalar_lea.sflag [#allocation4], %s298
        %s300 = sand.u32 %s46, 1
        %s301 = smul.addr %s300, 128
        %s302 = scalar_lea.vmem [#allocation3], %s301
        // Predicated region
        $region41: #{gat_forward.5} parent=39 // pred_check
          %p303 = pneg %p59
        $region42: #{gat_forward.5} parent=39 // pred_check_branch
          %305 = sbr.rel (%p303) target = $region44
        $region43: #{gat_forward.5} parent=39 // pred_region
          %306 = dma.done %s299, 2048
        $region44: #{gat_forward.5} parent=39 // pred_fallthru
          _
        %s307 = sand.u32 %s24, 1
        %s308 = scalar_lea.sflag [#allocation7], %s307
        %s309 = sand.u32 %s72, 1
        %s310 = scalar_lea.vmem [#allocation6], %s309
        // Predicated region
        $region45: #{gat_forward.5} parent=39 // pred_check
          %p311 = pneg %p85
        $region46: #{gat_forward.5} parent=39 // pred_check_branch
          %313 = sbr.rel (%p311) target = $region48
        $region47: #{gat_forward.5} parent=39 // pred_region
          %314 = dma.done %s308, 16
        $region48: #{gat_forward.5} parent=39 // pred_fallthru
          _
        %s315 = sand.u32 %s24, 1
        %s316 = scalar_lea.sflag [#allocation7], %s315
        %s317 = sand.u32 %s98, 1
        %s318 = smul.addr %s317, 128
        %s319 = scalar_lea.vmem [#allocation8], %s318
        // Predicated region
        $region49: #{gat_forward.5} parent=39 // pred_check
          %p320 = pneg %p111
        $region50: #{gat_forward.5} parent=39 // pred_check_branch
          %322 = sbr.rel (%p320) target = $region52
        $region51: #{gat_forward.5} parent=39 // pred_region
          %323 = dma.done %s316, 2048
        $region52: #{gat_forward.5} parent=39 // pred_fallthru
          _
        // Predicated region
        $region53: #{gat_forward.5} parent=39 // pred_check
          %p324 = pneg %p132
        $region54: #{gat_forward.5} parent=39 // pred_check_branch
          %326 = sbr.rel (%p324) target = $region56
        $region55: #{gat_forward.5} parent=39 // pred_region
          %327 = dma.done [#allocation10], 16
        $region56: #{gat_forward.5} parent=39 // pred_fallthru
          _
        // Predicated region
        $region57: #{gat_forward.5} parent=39 // pred_check
          %p328 = pneg %p158
        $region58: #{gat_forward.5} parent=39 // pred_check_branch
          %330 = sbr.rel (%p328) target = $region60
        $region59: #{gat_forward.5} parent=39 // pred_region
          %331 = dma.done [#allocation10], 1024
        $region60: #{gat_forward.5} parent=39 // pred_fallthru
          _
        %s332 = sand.u32 %s46, 1
        %s333 = scalar_lea.sflag [#allocation4], %s332
        %s334 = sand.u32 %s46, 1
        %s335 = smul.addr %s334, 128
        %s336 = scalar_lea.vmem [#allocation3], %s335
        %p337 = pneg %p59
        %p338 = pneg %p56
        %s339 = sand.u32 %s24, 1
        %s340 = scalar_lea.sflag [#allocation7], %s339
        %s341 = sand.u32 %s72, 1
        %s342 = scalar_lea.vmem [#allocation6], %s341
        %p343 = pneg %p85
        %p344 = pneg %p82
        %s345 = sand.u32 %s24, 1
        %s346 = scalar_lea.sflag [#allocation7], %s345
        %s347 = sand.u32 %s98, 1
        %s348 = smul.addr %s347, 128
        %s349 = scalar_lea.vmem [#allocation8], %s348
        %p350 = pneg %p111
        %p351 = pneg %p108
        %p352 = pneg %p132
        %p353 = pneg %p129
        %p354 = pneg %p158
        %p355 = pneg %p155
        %p356 = pneg %p184
        %p357 = pneg %p181
        %s358 = smul.u32 16, %s28
        %s359 = smul.u32 16, %s28
        %s360 = smul.u32 16, %s28
        %p361 = scmp.eq.s32.totalorder %s29, 0
        // Predicated region
        $region61: #{gat_forward.5} parent=39 // pred_check
          %p362 = pneg %p361
        $region62: #{gat_forward.5} parent=39 // pred_check_branch
          %364 = sbr.rel (%p362) target = $region64
        $region63: #{gat_forward.5} parent=39 // pred_region
          %365 = vst [vmem:[#allocation2] sm:$0xff] 0.0
          %366 = vst [vmem:[#allocation2 + $0x8] sm:$0xff] 0.0
          %367 = vst [vmem:[#allocation2 + $0x10] sm:$0xff] 0.0
          %368 = vst [vmem:[#allocation2 + $0x18] sm:$0xff] 0.0
          %369 = vst [vmem:[#allocation2 + $0x20] sm:$0xff] 0.0
          %370 = vst [vmem:[#allocation2 + $0x28] sm:$0xff] 0.0
          %371 = vst [vmem:[#allocation2 + $0x30] sm:$0xff] 0.0
          %372 = vst [vmem:[#allocation2 + $0x38] sm:$0xff] 0.0
          %373 = vst [vmem:[#allocation2 + $0x40] sm:$0xff] 0.0
          %374 = vst [vmem:[#allocation2 + $0x48] sm:$0xff] 0.0
          %375 = vst [vmem:[#allocation2 + $0x50] sm:$0xff] 0.0
          %376 = vst [vmem:[#allocation2 + $0x58] sm:$0xff] 0.0
          %377 = vst [vmem:[#allocation2 + $0x60] sm:$0xff] 0.0
          %378 = vst [vmem:[#allocation2 + $0x68] sm:$0xff] 0.0
          %379 = vst [vmem:[#allocation2 + $0x70] sm:$0xff] 0.0
          %380 = vst [vmem:[#allocation2 + $0x78] sm:$0xff] 0.0
        $region64: #{gat_forward.5} parent=39 // pred_fallthru
          _
        %v381 = vld [vmem:[%s302] sm:$0xff]
        %v382 = vld [vmem:[%s302 + $0x8] sm:$0xff]
        %v383 = vld [vmem:[%s302 + $0x10] sm:$0xff]
        %v384 = vld [vmem:[%s302 + $0x18] sm:$0xff]
        %v385 = vld [vmem:[%s302 + $0x20] sm:$0xff]
        %v386 = vld [vmem:[%s302 + $0x28] sm:$0xff]
        %v387 = vld [vmem:[%s302 + $0x30] sm:$0xff]
        %v388 = vld [vmem:[%s302 + $0x38] sm:$0xff]
        %v389 = vld [vmem:[%s302 + $0x40] sm:$0xff]
        %v390 = vld [vmem:[%s302 + $0x48] sm:$0xff]
        %v391 = vld [vmem:[%s302 + $0x50] sm:$0xff]
        %v392 = vld [vmem:[%s302 + $0x58] sm:$0xff]
        %v393 = vld [vmem:[%s302 + $0x60] sm:$0xff]
        %v394 = vld [vmem:[%s302 + $0x68] sm:$0xff]
        %v395 = vld [vmem:[%s302 + $0x70] sm:$0xff]
        %v396 = vld [vmem:[%s302 + $0x78] sm:$0xff]
        %v397 = vld [vmem:[%s310] sm:$0x1]
        %399 = vset.pattern.permute.xlu0 0
        %400 = vperm.xlu0 %399, %v381
        %v401 = vpop.permute.xlu0 %400
        %404 = vset.pattern.permute.xlu0 0
        %405 = vperm.xlu0 %404, %v382
        %v406 = vpop.permute.xlu0 %405
        %409 = vset.pattern.permute.xlu0 0
        %410 = vperm.xlu0 %409, %v383
        %v411 = vpop.permute.xlu0 %410
        %414 = vset.pattern.permute.xlu0 0
        %415 = vperm.xlu0 %414, %v384
        %v416 = vpop.permute.xlu0 %415
        %419 = vset.pattern.permute.xlu0 0
        %420 = vperm.xlu0 %419, %v385
        %v421 = vpop.permute.xlu0 %420
        %424 = vset.pattern.permute.xlu0 0
        %425 = vperm.xlu0 %424, %v386
        %v426 = vpop.permute.xlu0 %425
        %429 = vset.pattern.permute.xlu0 0
        %430 = vperm.xlu0 %429, %v387
        %v431 = vpop.permute.xlu0 %430
        %434 = vset.pattern.permute.xlu0 0
        %435 = vperm.xlu0 %434, %v388
        %v436 = vpop.permute.xlu0 %435
        %439 = vset.pattern.permute.xlu0 0
        %440 = vperm.xlu0 %439, %v389
        %v441 = vpop.permute.xlu0 %440
        %444 = vset.pattern.permute.xlu0 0
        %445 = vperm.xlu0 %444, %v390
        %v446 = vpop.permute.xlu0 %445
        %449 = vset.pattern.permute.xlu0 0
        %450 = vperm.xlu0 %449, %v391
        %v451 = vpop.permute.xlu0 %450
        %454 = vset.pattern.permute.xlu0 0
        %455 = vperm.xlu0 %454, %v392
        %v456 = vpop.permute.xlu0 %455
        %459 = vset.pattern.permute.xlu0 0
        %460 = vperm.xlu0 %459, %v393
        %v461 = vpop.permute.xlu0 %460
        %464 = vset.pattern.permute.xlu0 0
        %465 = vperm.xlu0 %464, %v394
        %v466 = vpop.permute.xlu0 %465
        %469 = vset.pattern.permute.xlu0 0
        %470 = vperm.xlu0 %469, %v395
        %v471 = vpop.permute.xlu0 %470
        %474 = vset.pattern.permute.xlu0 0
        %475 = vperm.xlu0 %474, %v396
        %v476 = vpop.permute.xlu0 %475
        %v479 = vlaneseq
        %v480 = vshrl.u32 %v479, 7
        %v481 = vsub.s32 0, %v480
        %v482 = vrot.slane %v397, %v481
        %v484 = vadd.f32 %v401, %v482
        %v485 = vadd.f32 %v406, %v482
        %v486 = vadd.f32 %v411, %v482
        %v487 = vadd.f32 %v416, %v482
        %v488 = vadd.f32 %v421, %v482
        %v489 = vadd.f32 %v426, %v482
        %v490 = vadd.f32 %v431, %v482
        %v491 = vadd.f32 %v436, %v482
        %v492 = vadd.f32 %v441, %v482
        %v493 = vadd.f32 %v446, %v482
        %v494 = vadd.f32 %v451, %v482
        %v495 = vadd.f32 %v456, %v482
        %v496 = vadd.f32 %v461, %v482
        %v497 = vadd.f32 %v466, %v482
        %v498 = vadd.f32 %v471, %v482
        %v499 = vadd.f32 %v476, %v482
        %v500 = vmul.f32 %v484, 0.2
        %v501 = vmul.f32 %v485, 0.2
        %v502 = vmul.f32 %v486, 0.2
        %v503 = vmul.f32 %v487, 0.2
        %v504 = vmul.f32 %v488, 0.2
        %v505 = vmul.f32 %v489, 0.2
        %v506 = vmul.f32 %v490, 0.2
        %v507 = vmul.f32 %v491, 0.2
        %v508 = vmul.f32 %v492, 0.2
        %v509 = vmul.f32 %v493, 0.2
        %v510 = vmul.f32 %v494, 0.2
        %v511 = vmul.f32 %v495, 0.2
        %v512 = vmul.f32 %v496, 0.2
        %v513 = vmul.f32 %v497, 0.2
        %v514 = vmul.f32 %v498, 0.2
        %v515 = vmul.f32 %v499, 0.2
        %v516 = vmax.f32 %v484, %v500
        %v517 = vmax.f32 %v485, %v501
        %v518 = vmax.f32 %v486, %v502
        %v519 = vmax.f32 %v487, %v503
        %v520 = vmax.f32 %v488, %v504
        %v521 = vmax.f32 %v489, %v505
        %v522 = vmax.f32 %v490, %v506
        %v523 = vmax.f32 %v491, %v507
        %v524 = vmax.f32 %v492, %v508
        %v525 = vmax.f32 %v493, %v509
        %v526 = vmax.f32 %v494, %v510
        %v527 = vmax.f32 %v495, %v511
        %v528 = vmax.f32 %v496, %v512
        %v529 = vmax.f32 %v497, %v513
        %v530 = vmax.f32 %v498, %v514
        %v531 = vmax.f32 %v499, %v515
        %v532 = vld [vmem:[#allocation11] sm:$0xf]
        %v533 = vld [vmem:[#allocation11 + $0x4] sm:$0xf]
        %v534 = vld [vmem:[#allocation11 + $0x8] sm:$0xf]
        %v535 = vld [vmem:[#allocation11 + $0xc] sm:$0xf]
        %v536 = vld [vmem:[#allocation11 + $0x10] sm:$0xf]
        %v537 = vld [vmem:[#allocation11 + $0x14] sm:$0xf]
        %v538 = vld [vmem:[#allocation11 + $0x18] sm:$0xf]
        %v539 = vld [vmem:[#allocation11 + $0x1c] sm:$0xf]
        %v540 = vld [vmem:[#allocation11 + $0x20] sm:$0xf]
        %v541 = vld [vmem:[#allocation11 + $0x24] sm:$0xf]
        %v542 = vld [vmem:[#allocation11 + $0x28] sm:$0xf]
        %v543 = vld [vmem:[#allocation11 + $0x2c] sm:$0xf]
        %v544 = vld [vmem:[#allocation11 + $0x30] sm:$0xf]
        %v545 = vld [vmem:[#allocation11 + $0x34] sm:$0xf]
        %v546 = vld [vmem:[#allocation11 + $0x38] sm:$0xf]
        %v547 = vld [vmem:[#allocation11 + $0x3c] sm:$0xf]
        %v548 = vunpack.c.l.bf16 %v532
        %v549 = vunpack.c.l.bf16 %v533
        %v550 = vunpack.c.l.bf16 %v534
        %v551 = vunpack.c.l.bf16 %v535
        %v552 = vunpack.c.l.bf16 %v536
        %v553 = vunpack.c.l.bf16 %v537
        %v554 = vunpack.c.l.bf16 %v538
        %v555 = vunpack.c.l.bf16 %v539
        %v556 = vunpack.c.l.bf16 %v540
        %v557 = vunpack.c.l.bf16 %v541
        %v558 = vunpack.c.l.bf16 %v542
        %v559 = vunpack.c.l.bf16 %v543
        %v560 = vunpack.c.l.bf16 %v544
        %v561 = vunpack.c.l.bf16 %v545
        %v562 = vunpack.c.l.bf16 %v546
        %v563 = vunpack.c.l.bf16 %v547
        %v564 = vadd.f32 %v516, %v548
        %v565 = vadd.f32 %v517, %v549
        %v566 = vadd.f32 %v518, %v550
        %v567 = vadd.f32 %v519, %v551
        %v568 = vadd.f32 %v520, %v552
        %v569 = vadd.f32 %v521, %v553
        %v570 = vadd.f32 %v522, %v554
        %v571 = vadd.f32 %v523, %v555
        %v572 = vadd.f32 %v524, %v556
        %v573 = vadd.f32 %v525, %v557
        %v574 = vadd.f32 %v526, %v558
        %v575 = vadd.f32 %v527, %v559
        %v576 = vadd.f32 %v528, %v560
        %v577 = vadd.f32 %v529, %v561
        %v578 = vadd.f32 %v530, %v562
        %v579 = vadd.f32 %v531, %v563
        %580 = vmax.xlane.f32.xlu0 %v564
        %v581 = vpop.xlane.xlu0 %580
        %582 = vmax.xlane.f32.xlu0 %v565
        %v583 = vpop.xlane.xlu0 %582
        %584 = vmax.xlane.f32.xlu0 %v566
        %v585 = vpop.xlane.xlu0 %584
        %586 = vmax.xlane.f32.xlu0 %v567
        %v587 = vpop.xlane.xlu0 %586
        %588 = vmax.xlane.f32.xlu0 %v568
        %v589 = vpop.xlane.xlu0 %588
        %590 = vmax.xlane.f32.xlu0 %v569
        %v591 = vpop.xlane.xlu0 %590
        %592 = vmax.xlane.f32.xlu0 %v570
        %v593 = vpop.xlane.xlu0 %592
        %594 = vmax.xlane.f32.xlu0 %v571
        %v595 = vpop.xlane.xlu0 %594
        %596 = vmax.xlane.f32.xlu0 %v572
        %v597 = vpop.xlane.xlu0 %596
        %598 = vmax.xlane.f32.xlu0 %v573
        %v599 = vpop.xlane.xlu0 %598
        %600 = vmax.xlane.f32.xlu0 %v574
        %v601 = vpop.xlane.xlu0 %600
        %602 = vmax.xlane.f32.xlu0 %v575
        %v603 = vpop.xlane.xlu0 %602
        %604 = vmax.xlane.f32.xlu0 %v576
        %v605 = vpop.xlane.xlu0 %604
        %606 = vmax.xlane.f32.xlu0 %v577
        %v607 = vpop.xlane.xlu0 %606
        %608 = vmax.xlane.f32.xlu0 %v578
        %v609 = vpop.xlane.xlu0 %608
        %610 = vmax.xlane.f32.xlu0 %v579
        %v611 = vpop.xlane.xlu0 %610
        %v612 = vsub.f32 %v564, %v581
        %v613 = vsub.f32 %v565, %v583
        %v614 = vsub.f32 %v566, %v585
        %v615 = vsub.f32 %v567, %v587
        %v616 = vsub.f32 %v568, %v589
        %v617 = vsub.f32 %v569, %v591
        %v618 = vsub.f32 %v570, %v593
        %v619 = vsub.f32 %v571, %v595
        %v620 = vsub.f32 %v572, %v597
        %v621 = vsub.f32 %v573, %v599
        %v622 = vsub.f32 %v574, %v601
        %v623 = vsub.f32 %v575, %v603
        %v624 = vsub.f32 %v576, %v605
        %v625 = vsub.f32 %v577, %v607
        %v626 = vsub.f32 %v578, %v609
        %v627 = vsub.f32 %v579, %v611
        %v628 = vmul.f32 %v612, 1.442695
        %v629 = vpow.pop %v628
        %v630 = vmul.f32 %v613, 1.442695
        %v631 = vpow.pop %v630
        %v632 = vmul.f32 %v614, 1.442695
        %v633 = vpow.pop %v632
        %v634 = vmul.f32 %v615, 1.442695
        %v635 = vpow.pop %v634
        %v636 = vmul.f32 %v616, 1.442695
        %v637 = vpow.pop %v636
        %v638 = vmul.f32 %v617, 1.442695
        %v639 = vpow.pop %v638
        %v640 = vmul.f32 %v618, 1.442695
        %v641 = vpow.pop %v640
        %v642 = vmul.f32 %v619, 1.442695
        %v643 = vpow.pop %v642
        %v644 = vmul.f32 %v620, 1.442695
        %v645 = vpow.pop %v644
        %v646 = vmul.f32 %v621, 1.442695
        %v647 = vpow.pop %v646
        %v648 = vmul.f32 %v622, 1.442695
        %v649 = vpow.pop %v648
        %v650 = vmul.f32 %v623, 1.442695
        %v651 = vpow.pop %v650
        %v652 = vmul.f32 %v624, 1.442695
        %v653 = vpow.pop %v652
        %v654 = vmul.f32 %v625, 1.442695
        %v655 = vpow.pop %v654
        %v656 = vmul.f32 %v626, 1.442695
        %v657 = vpow.pop %v656
        %v658 = vmul.f32 %v627, 1.442695
        %v659 = vpow.pop %v658
        %v660 = vld [vmem:[%s319] sm:$0xff]
        %v661 = vld [vmem:[%s319 + $0x8] sm:$0xff]
        %v662 = vld [vmem:[%s319 + $0x10] sm:$0xff]
        %v663 = vld [vmem:[%s319 + $0x18] sm:$0xff]
        %v664 = vld [vmem:[%s319 + $0x20] sm:$0xff]
        %v665 = vld [vmem:[%s319 + $0x28] sm:$0xff]
        %v666 = vld [vmem:[%s319 + $0x30] sm:$0xff]
        %v667 = vld [vmem:[%s319 + $0x38] sm:$0xff]
        %v668 = vld [vmem:[%s319 + $0x40] sm:$0xff]
        %v669 = vld [vmem:[%s319 + $0x48] sm:$0xff]
        %v670 = vld [vmem:[%s319 + $0x50] sm:$0xff]
        %v671 = vld [vmem:[%s319 + $0x58] sm:$0xff]
        %v672 = vld [vmem:[%s319 + $0x60] sm:$0xff]
        %v673 = vld [vmem:[%s319 + $0x68] sm:$0xff]
        %v674 = vld [vmem:[%s319 + $0x70] sm:$0xff]
        %v675 = vld [vmem:[%s319 + $0x78] sm:$0xff]
        %676 = vmatprep.subr.mxu0 0.0
        %677 = vmatpush1.msra.mxu0 %v660
        %678 = vmatprep.subr.mxu0 0.0
        %679 = vmatpush1.msra.mxu0 %v661
        %680 = vmatprep.subr.mxu0 0.0
        %681 = vmatpush1.msra.mxu0 %v662
        %682 = vmatprep.subr.mxu0 0.0
        %683 = vmatpush1.msra.mxu0 %v663
        %684 = vmatprep.subr.mxu0 0.0
        %685 = vmatpush1.msra.mxu0 %v664
        %686 = vmatprep.subr.mxu0 0.0
        %687 = vmatpush1.msra.mxu0 %v665
        %688 = vmatprep.subr.mxu0 0.0
        %689 = vmatpush1.msra.mxu0 %v666
        %690 = vmatprep.subr.mxu0 0.0
        %691 = vmatpush1.msra.mxu0 %v667
        %692 = vmatprep.subr.mxu0 0.0
        %693 = vmatpush1.msra.mxu0 %v668
        %694 = vmatprep.subr.mxu0 0.0
        %695 = vmatpush1.msra.mxu0 %v669
        %696 = vmatprep.subr.mxu0 0.0
        %697 = vmatpush1.msra.mxu0 %v670
        %698 = vmatprep.subr.mxu0 0.0
        %699 = vmatpush1.msra.mxu0 %v671
        %700 = vmatprep.subr.mxu0 0.0
        %701 = vmatpush1.msra.mxu0 %v672
        %702 = vmatprep.subr.mxu0 0.0
        %703 = vmatpush1.msra.mxu0 %v673
        %704 = vmatprep.subr.mxu0 0.0
        %705 = vmatpush1.msra.mxu0 %v674
        %706 = vmatprep.subr.mxu0 0.0
        %707 = vmatpush1.msra.mxu0 %v675
        %708 = vmatprep.subr.mxu0 0.0
        %709 = vmatpush1.msra.mxu0 0.0
        %710 = vmatprep.subr.mxu0 0.0
        %711 = vmatpush1.msra.mxu0 0.0
        %712 = vmatprep.subr.mxu0 0.0
        %713 = vmatpush1.msra.mxu0 0.0
        %714 = vmatprep.subr.mxu0 0.0
        %715 = vmatpush1.msra.mxu0 0.0
        %716 = vmatprep.subr.mxu0 0.0
        %717 = vmatpush1.msra.mxu0 0.0
        %718 = vmatprep.subr.mxu0 0.0
        %719 = vmatpush1.msra.mxu0 0.0
        %720 = vmatprep.subr.mxu0 0.0
        %721 = vmatpush1.msra.mxu0 0.0
        %722 = vmatprep.subr.mxu0 0.0
        %723 = vmatpush1.msra.mxu0 0.0
        %724 = vmatprep.subr.mxu0 0.0
        %725 = vmatpush1.msra.mxu0 0.0
        %726 = vmatprep.subr.mxu0 0.0
        %727 = vmatpush1.msra.mxu0 0.0
        %728 = vmatprep.subr.mxu0 0.0
        %729 = vmatpush1.msra.mxu0 0.0
        %730 = vmatprep.subr.mxu0 0.0
        %731 = vmatpush1.msra.mxu0 0.0
        %732 = vmatprep.subr.mxu0 0.0
        %733 = vmatpush1.msra.mxu0 0.0
        %734 = vmatprep.subr.mxu0 0.0
        %735 = vmatpush1.msra.mxu0 0.0
        %736 = vmatprep.subr.mxu0 0.0
        %737 = vmatpush1.msra.mxu0 0.0
        %738 = vmatprep.subr.mxu0 0.0
        %739 = vmatpush1.msra.mxu0 0.0
        %740 = vmatprep.mubr.f32.mxu0 0.0
        %741 = vmatmul.mubr.f32.gmra.mrb[0].mxu0 %v629
        %v742 = vpop.f32.mrb[0].mxu0
        %v743 = vadd.f32 0.0, %v742
        %v744 = vpop.f32.mrb[0].mxu0
        %745 = vmatprep.mubr.f32.mxu0 0.0
        %746 = vmatmul.mubr.f32.gmra.mrb[0].mxu0 %v631
        %v747 = vpop.f32.mrb[0].mxu0
        %v748 = vadd.f32 0.0, %v747
        %v749 = vpop.f32.mrb[0].mxu0
        %750 = vmatprep.mubr.f32.mxu0 0.0
        %751 = vmatmul.mubr.f32.gmra.mrb[0].mxu0 %v633
        %v752 = vpop.f32.mrb[0].mxu0
        %v753 = vadd.f32 0.0, %v752
        %v754 = vpop.f32.mrb[0].mxu0
        %755 = vmatprep.mubr.f32.mxu0 0.0
        %756 = vmatmul.mubr.f32.gmra.mrb[0].mxu0 %v635
        %v757 = vpop.f32.mrb[0].mxu0
        %v758 = vadd.f32 0.0, %v757
        %v759 = vpop.f32.mrb[0].mxu0
        %760 = vmatprep.mubr.f32.mxu0 0.0
        %761 = vmatmul.mubr.f32.gmra.mrb[0].mxu0 %v637
        %v762 = vpop.f32.mrb[0].mxu0
        %v763 = vadd.f32 0.0, %v762
        %v764 = vpop.f32.mrb[0].mxu0
        %765 = vmatprep.mubr.f32.mxu0 0.0
        %766 = vmatmul.mubr.f32.gmra.mrb[0].mxu0 %v639
        %v767 = vpop.f32.mrb[0].mxu0
        %v768 = vadd.f32 0.0, %v767
        %v769 = vpop.f32.mrb[0].mxu0
        %770 = vmatprep.mubr.f32.mxu0 0.0
        %771 = vmatmul.mubr.f32.gmra.mrb[0].mxu0 %v641
        %v772 = vpop.f32.mrb[0].mxu0
        %v773 = vadd.f32 0.0, %v772
        %v774 = vpop.f32.mrb[0].mxu0
        %775 = vmatprep.mubr.f32.mxu0 0.0
        %776 = vmatmul.mubr.f32.gmra.mrb[0].mxu0 %v643
        %v777 = vpop.f32.mrb[0].mxu0
        %v778 = vadd.f32 0.0, %v777
        %v779 = vpop.f32.mrb[0].mxu0
        %780 = vmatprep.mubr.f32.mxu0 0.0
        %781 = vmatmul.mubr.f32.gmra.mrb[0].mxu0 %v645
        %v782 = vpop.f32.mrb[0].mxu0
        %v783 = vadd.f32 0.0, %v782
        %v784 = vpop.f32.mrb[0].mxu0
        %785 = vmatprep.mubr.f32.mxu0 0.0
        %786 = vmatmul.mubr.f32.gmra.mrb[0].mxu0 %v647
        %v787 = vpop.f32.mrb[0].mxu0
        %v788 = vadd.f32 0.0, %v787
        %v789 = vpop.f32.mrb[0].mxu0
        %790 = vmatprep.mubr.f32.mxu0 0.0
        %791 = vmatmul.mubr.f32.gmra.mrb[0].mxu0 %v649
        %v792 = vpop.f32.mrb[0].mxu0
        %v793 = vadd.f32 0.0, %v792
        %v794 = vpop.f32.mrb[0].mxu0
        %795 = vmatprep.mubr.f32.mxu0 0.0
        %796 = vmatmul.mubr.f32.gmra.mrb[0].mxu0 %v651
        %v797 = vpop.f32.mrb[0].mxu0
        %v798 = vadd.f32 0.0, %v797
        %v799 = vpop.f32.mrb[0].mxu0
        %800 = vmatprep.mubr.f32.mxu0 0.0
        %801 = vmatmul.mubr.f32.gmra.mrb[0].mxu0 %v653
        %v802 = vpop.f32.mrb[0].mxu0
        %v803 = vadd.f32 0.0, %v802
        %v804 = vpop.f32.mrb[0].mxu0
        %805 = vmatprep.mubr.f32.mxu0 0.0
        %806 = vmatmul.mubr.f32.gmra.mrb[0].mxu0 %v655
        %v807 = vpop.f32.mrb[0].mxu0
        %v808 = vadd.f32 0.0, %v807
        %v809 = vpop.f32.mrb[0].mxu0
        %810 = vmatprep.mubr.f32.mxu0 0.0
        %811 = vmatmul.mubr.f32.gmra.mrb[0].mxu0 %v657
        %v812 = vpop.f32.mrb[0].mxu0
        %v813 = vadd.f32 0.0, %v812
        %v814 = vpop.f32.mrb[0].mxu0
        %815 = vmatprep.mubr.f32.mxu0 0.0
        %816 = vmatmul.mubr.f32.gmra.mrb[0].mxu0 %v659
        %v817 = vpop.f32.mrb[0].mxu0
        %v818 = vadd.f32 0.0, %v817
        %v819 = vpop.f32.mrb[0].mxu0
        %820 = vdwg.mxu0
        %v821 = vld [vmem:[#allocation2] sm:$0xff]
        %v822 = vld [vmem:[#allocation2 + $0x8] sm:$0xff]
        %v823 = vld [vmem:[#allocation2 + $0x10] sm:$0xff]
        %v824 = vld [vmem:[#allocation2 + $0x18] sm:$0xff]
        %v825 = vld [vmem:[#allocation2 + $0x20] sm:$0xff]
        %v826 = vld [vmem:[#allocation2 + $0x28] sm:$0xff]
        %v827 = vld [vmem:[#allocation2 + $0x30] sm:$0xff]
        %v828 = vld [vmem:[#allocation2 + $0x38] sm:$0xff]
        %v829 = vld [vmem:[#allocation2 + $0x40] sm:$0xff]
        %v830 = vld [vmem:[#allocation2 + $0x48] sm:$0xff]
        %v831 = vld [vmem:[#allocation2 + $0x50] sm:$0xff]
        %v832 = vld [vmem:[#allocation2 + $0x58] sm:$0xff]
        %v833 = vld [vmem:[#allocation2 + $0x60] sm:$0xff]
        %v834 = vld [vmem:[#allocation2 + $0x68] sm:$0xff]
        %v835 = vld [vmem:[#allocation2 + $0x70] sm:$0xff]
        %v836 = vld [vmem:[#allocation2 + $0x78] sm:$0xff]
        %v837 = vrcp.pop %v743
        %v838 = vrcp.pop %v748
        %v839 = vrcp.pop %v753
        %v840 = vrcp.pop %v758
        %v841 = vrcp.pop %v763
        %v842 = vrcp.pop %v768
        %v843 = vrcp.pop %v773
        %v844 = vrcp.pop %v778
        %v845 = vrcp.pop %v783
        %v846 = vrcp.pop %v788
        %v847 = vrcp.pop %v793
        %v848 = vrcp.pop %v798
        %v849 = vrcp.pop %v803
        %v850 = vrcp.pop %v808
        %v851 = vrcp.pop %v813
        %v852 = vrcp.pop %v818
        %854 = vset.pattern.permute.xlu0 127
        %855 = vperm.xlu0 %854, %v837
        %v856 = vpop.permute.xlu0 %855
        %859 = vset.pattern.permute.xlu0 127
        %860 = vperm.xlu0 %859, %v838
        %v861 = vpop.permute.xlu0 %860
        %864 = vset.pattern.permute.xlu0 127
        %865 = vperm.xlu0 %864, %v839
        %v866 = vpop.permute.xlu0 %865
        %869 = vset.pattern.permute.xlu0 127
        %870 = vperm.xlu0 %869, %v840
        %v871 = vpop.permute.xlu0 %870
        %874 = vset.pattern.permute.xlu0 127
        %875 = vperm.xlu0 %874, %v841
        %v876 = vpop.permute.xlu0 %875
        %879 = vset.pattern.permute.xlu0 127
        %880 = vperm.xlu0 %879, %v842
        %v881 = vpop.permute.xlu0 %880
        %884 = vset.pattern.permute.xlu0 127
        %885 = vperm.xlu0 %884, %v843
        %v886 = vpop.permute.xlu0 %885
        %889 = vset.pattern.permute.xlu0 127
        %890 = vperm.xlu0 %889, %v844
        %v891 = vpop.permute.xlu0 %890
        %894 = vset.pattern.permute.xlu0 127
        %895 = vperm.xlu0 %894, %v845
        %v896 = vpop.permute.xlu0 %895
        %899 = vset.pattern.permute.xlu0 127
        %900 = vperm.xlu0 %899, %v846
        %v901 = vpop.permute.xlu0 %900
        %904 = vset.pattern.permute.xlu0 127
        %905 = vperm.xlu0 %904, %v847
        %v906 = vpop.permute.xlu0 %905
        %909 = vset.pattern.permute.xlu0 127
        %910 = vperm.xlu0 %909, %v848
        %v911 = vpop.permute.xlu0 %910
        %914 = vset.pattern.permute.xlu0 127
        %915 = vperm.xlu0 %914, %v849
        %v916 = vpop.permute.xlu0 %915
        %919 = vset.pattern.permute.xlu0 127
        %920 = vperm.xlu0 %919, %v850
        %v921 = vpop.permute.xlu0 %920
        %924 = vset.pattern.permute.xlu0 127
        %925 = vperm.xlu0 %924, %v851
        %v926 = vpop.permute.xlu0 %925
        %929 = vset.pattern.permute.xlu0 127
        %930 = vperm.xlu0 %929, %v852
        %v931 = vpop.permute.xlu0 %930
        %v933 = vmul.f32 %v743, %v856
        %v934 = vmul.f32 %v748, %v861
        %v935 = vmul.f32 %v753, %v866
        %v936 = vmul.f32 %v758, %v871
        %v937 = vmul.f32 %v763, %v876
        %v938 = vmul.f32 %v768, %v881
        %v939 = vmul.f32 %v773, %v886
        %v940 = vmul.f32 %v778, %v891
        %v941 = vmul.f32 %v783, %v896
        %v942 = vmul.f32 %v788, %v901
        %v943 = vmul.f32 %v793, %v906
        %v944 = vmul.f32 %v798, %v911
        %v945 = vmul.f32 %v803, %v916
        %v946 = vmul.f32 %v808, %v921
        %v947 = vmul.f32 %v813, %v926
        %v948 = vmul.f32 %v818, %v931
        %v949 = vadd.f32 %v821, %v933
        %v950 = vadd.f32 %v822, %v934
        %v951 = vadd.f32 %v823, %v935
        %v952 = vadd.f32 %v824, %v936
        %v953 = vadd.f32 %v825, %v937
        %v954 = vadd.f32 %v826, %v938
        %v955 = vadd.f32 %v827, %v939
        %v956 = vadd.f32 %v828, %v940
        %v957 = vadd.f32 %v829, %v941
        %v958 = vadd.f32 %v830, %v942
        %v959 = vadd.f32 %v831, %v943
        %v960 = vadd.f32 %v832, %v944
        %v961 = vadd.f32 %v833, %v945
        %v962 = vadd.f32 %v834, %v946
        %v963 = vadd.f32 %v835, %v947
        %v964 = vadd.f32 %v836, %v948
        %965 = vst [vmem:[#allocation2] sm:$0xff] %v949
        %966 = vst [vmem:[#allocation2 + $0x8] sm:$0xff] %v950
        %967 = vst [vmem:[#allocation2 + $0x10] sm:$0xff] %v951
        %968 = vst [vmem:[#allocation2 + $0x18] sm:$0xff] %v952
        %969 = vst [vmem:[#allocation2 + $0x20] sm:$0xff] %v953
        %970 = vst [vmem:[#allocation2 + $0x28] sm:$0xff] %v954
        %971 = vst [vmem:[#allocation2 + $0x30] sm:$0xff] %v955
        %972 = vst [vmem:[#allocation2 + $0x38] sm:$0xff] %v956
        %973 = vst [vmem:[#allocation2 + $0x40] sm:$0xff] %v957
        %974 = vst [vmem:[#allocation2 + $0x48] sm:$0xff] %v958
        %975 = vst [vmem:[#allocation2 + $0x50] sm:$0xff] %v959
        %976 = vst [vmem:[#allocation2 + $0x58] sm:$0xff] %v960
        %977 = vst [vmem:[#allocation2 + $0x60] sm:$0xff] %v961
        %978 = vst [vmem:[#allocation2 + $0x68] sm:$0xff] %v962
        %979 = vst [vmem:[#allocation2 + $0x70] sm:$0xff] %v963
        %980 = vst [vmem:[#allocation2 + $0x78] sm:$0xff] %v964
        %p981 = scmp.eq.s32.totalorder %s29, 7
        // Predicated region
        $region65: #{gat_forward.5} parent=39 // pred_check
          %p982 = pneg %p981
        $region66: #{gat_forward.5} parent=39 // pred_check_branch
          %984 = sbr.rel (%p982) target = $region68
        $region67: #{gat_forward.5} parent=39 // pred_region
          %v985 = vld [vmem:[#allocation2] sm:$0xff]
          %v986 = vld [vmem:[#allocation2 + $0x8] sm:$0xff]
          %v987 = vld [vmem:[#allocation2 + $0x10] sm:$0xff]
          %v988 = vld [vmem:[#allocation2 + $0x18] sm:$0xff]
          %v989 = vld [vmem:[#allocation2 + $0x20] sm:$0xff]
          %v990 = vld [vmem:[#allocation2 + $0x28] sm:$0xff]
          %v991 = vld [vmem:[#allocation2 + $0x30] sm:$0xff]
          %v992 = vld [vmem:[#allocation2 + $0x38] sm:$0xff]
          %v993 = vld [vmem:[#allocation2 + $0x40] sm:$0xff]
          %v994 = vld [vmem:[#allocation2 + $0x48] sm:$0xff]
          %v995 = vld [vmem:[#allocation2 + $0x50] sm:$0xff]
          %v996 = vld [vmem:[#allocation2 + $0x58] sm:$0xff]
          %v997 = vld [vmem:[#allocation2 + $0x60] sm:$0xff]
          %v998 = vld [vmem:[#allocation2 + $0x68] sm:$0xff]
          %v999 = vld [vmem:[#allocation2 + $0x70] sm:$0xff]
          %v1000 = vld [vmem:[#allocation2 + $0x78] sm:$0xff]
          %v1001 = vld [vmem:[#allocation9] sm:$0x1]
          %v1003 = vlaneseq
          %v1004 = vshrl.u32 %v1003, 7
          %v1005 = vsub.s32 0, %v1004
          %v1006 = vrot.slane %v1001, %v1005
          %v1008 = vadd.f32 %v985, %v1006
          %v1009 = vadd.f32 %v986, %v1006
          %v1010 = vadd.f32 %v987, %v1006
          %v1011 = vadd.f32 %v988, %v1006
          %v1012 = vadd.f32 %v989, %v1006
          %v1013 = vadd.f32 %v990, %v1006
          %v1014 = vadd.f32 %v991, %v1006
          %v1015 = vadd.f32 %v992, %v1006
          %v1016 = vadd.f32 %v993, %v1006
          %v1017 = vadd.f32 %v994, %v1006
          %v1018 = vadd.f32 %v995, %v1006
          %v1019 = vadd.f32 %v996, %v1006
          %v1020 = vadd.f32 %v997, %v1006
          %v1021 = vadd.f32 %v998, %v1006
          %v1022 = vadd.f32 %v999, %v1006
          %v1023 = vadd.f32 %v1000, %v1006
          %vm1024 = vcmp.gt.f32.partialorder %v1008, 0.0
          %vm1025 = vcmp.gt.f32.partialorder %v1009, 0.0
          %vm1026 = vcmp.gt.f32.partialorder %v1010, 0.0
          %vm1027 = vcmp.gt.f32.partialorder %v1011, 0.0
          %vm1028 = vcmp.gt.f32.partialorder %v1012, 0.0
          %vm1029 = vcmp.gt.f32.partialorder %v1013, 0.0
          %vm1030 = vcmp.gt.f32.partialorder %v1014, 0.0
          %vm1031 = vcmp.gt.f32.partialorder %v1015, 0.0
          %vm1032 = vcmp.gt.f32.partialorder %v1016, 0.0
          %vm1033 = vcmp.gt.f32.partialorder %v1017, 0.0
          %vm1034 = vcmp.gt.f32.partialorder %v1018, 0.0
          %vm1035 = vcmp.gt.f32.partialorder %v1019, 0.0
          %vm1036 = vcmp.gt.f32.partialorder %v1020, 0.0
          %vm1037 = vcmp.gt.f32.partialorder %v1021, 0.0
          %vm1038 = vcmp.gt.f32.partialorder %v1022, 0.0
          %vm1039 = vcmp.gt.f32.partialorder %v1023, 0.0
          %v1040 = vmul.f32 %v1008, 1.442695
          %v1041 = vpow.pop %v1040
          %v1042 = vmul.f32 %v1009, 1.442695
          %v1043 = vpow.pop %v1042
          %v1044 = vmul.f32 %v1010, 1.442695
          %v1045 = vpow.pop %v1044
          %v1046 = vmul.f32 %v1011, 1.442695
          %v1047 = vpow.pop %v1046
          %v1048 = vmul.f32 %v1012, 1.442695
          %v1049 = vpow.pop %v1048
          %v1050 = vmul.f32 %v1013, 1.442695
          %v1051 = vpow.pop %v1050
          %v1052 = vmul.f32 %v1014, 1.442695
          %v1053 = vpow.pop %v1052
          %v1054 = vmul.f32 %v1015, 1.442695
          %v1055 = vpow.pop %v1054
          %v1056 = vmul.f32 %v1016, 1.442695
          %v1057 = vpow.pop %v1056
          %v1058 = vmul.f32 %v1017, 1.442695
          %v1059 = vpow.pop %v1058
          %v1060 = vmul.f32 %v1018, 1.442695
          %v1061 = vpow.pop %v1060
          %v1062 = vmul.f32 %v1019, 1.442695
          %v1063 = vpow.pop %v1062
          %v1064 = vmul.f32 %v1020, 1.442695
          %v1065 = vpow.pop %v1064
          %v1066 = vmul.f32 %v1021, 1.442695
          %v1067 = vpow.pop %v1066
          %v1068 = vmul.f32 %v1022, 1.442695
          %v1069 = vpow.pop %v1068
          %v1070 = vmul.f32 %v1023, 1.442695
          %v1071 = vpow.pop %v1070
          %v1072 = vsub.f32 %v1041, 1.0
          %v1073 = vsub.f32 %v1043, 1.0
          %v1074 = vsub.f32 %v1045, 1.0
          %v1075 = vsub.f32 %v1047, 1.0
          %v1076 = vsub.f32 %v1049, 1.0
          %v1077 = vsub.f32 %v1051, 1.0
          %v1078 = vsub.f32 %v1053, 1.0
          %v1079 = vsub.f32 %v1055, 1.0
          %v1080 = vsub.f32 %v1057, 1.0
          %v1081 = vsub.f32 %v1059, 1.0
          %v1082 = vsub.f32 %v1061, 1.0
          %v1083 = vsub.f32 %v1063, 1.0
          %v1084 = vsub.f32 %v1065, 1.0
          %v1085 = vsub.f32 %v1067, 1.0
          %v1086 = vsub.f32 %v1069, 1.0
          %v1087 = vsub.f32 %v1071, 1.0
          %v1088 = vsel %vm1024, %v1008, %v1072
          %v1089 = vsel %vm1025, %v1009, %v1073
          %v1090 = vsel %vm1026, %v1010, %v1074
          %v1091 = vsel %vm1027, %v1011, %v1075
          %v1092 = vsel %vm1028, %v1012, %v1076
          %v1093 = vsel %vm1029, %v1013, %v1077
          %v1094 = vsel %vm1030, %v1014, %v1078
          %v1095 = vsel %vm1031, %v1015, %v1079
          %v1096 = vsel %vm1032, %v1016, %v1080
          %v1097 = vsel %vm1033, %v1017, %v1081
          %v1098 = vsel %vm1034, %v1018, %v1082
          %v1099 = vsel %vm1035, %v1019, %v1083
          %v1100 = vsel %vm1036, %v1020, %v1084
          %v1101 = vsel %vm1037, %v1021, %v1085
          %v1102 = vsel %vm1038, %v1022, %v1086
          %v1103 = vsel %vm1039, %v1023, %v1087
          %1104 = vst [vmem:[#allocation12] sm:$0xff] %v1088
          %1105 = vst [vmem:[#allocation12 + $0x8] sm:$0xff] %v1089
          %1106 = vst [vmem:[#allocation12 + $0x10] sm:$0xff] %v1090
          %1107 = vst [vmem:[#allocation12 + $0x18] sm:$0xff] %v1091
          %1108 = vst [vmem:[#allocation12 + $0x20] sm:$0xff] %v1092
          %1109 = vst [vmem:[#allocation12 + $0x28] sm:$0xff] %v1093
          %1110 = vst [vmem:[#allocation12 + $0x30] sm:$0xff] %v1094
          %1111 = vst [vmem:[#allocation12 + $0x38] sm:$0xff] %v1095
          %1112 = vst [vmem:[#allocation12 + $0x40] sm:$0xff] %v1096
          %1113 = vst [vmem:[#allocation12 + $0x48] sm:$0xff] %v1097
          %1114 = vst [vmem:[#allocation12 + $0x50] sm:$0xff] %v1098
          %1115 = vst [vmem:[#allocation12 + $0x58] sm:$0xff] %v1099
          %1116 = vst [vmem:[#allocation12 + $0x60] sm:$0xff] %v1100
          %1117 = vst [vmem:[#allocation12 + $0x68] sm:$0xff] %v1101
          %1118 = vst [vmem:[#allocation12 + $0x70] sm:$0xff] %v1102
          %1119 = vst [vmem:[#allocation12 + $0x78] sm:$0xff] %v1103
        $region68: #{gat_forward.5} parent=39 // pred_fallthru
          _
        // Predicated region
        $region69: #{gat_forward.5} parent=39 // pred_check
          %p1120 = pneg %p181
        $region70: #{gat_forward.5} parent=39 // pred_check_branch
          %1122 = sbr.rel (%p1120) target = $region72
        $region71: #{gat_forward.5} parent=39 // pred_region
          %s1123 = smul.u32 16, %s28
          %s1125 = ssub.s32 2048, 2048
          %1126 = vsyncadd [#allocation5], %s1125
          %s1127 = smul.addr %s1123, 128
          %s1128 = scalar_lea.hbm %s5, %s1127
          %s1129 = sshll.u32 [#allocation12], 4
          %s1130 = int_to_ptr.vmem [resolvable:$true] %s1129
          %1135 = dma.vmem_to_hbm [thread:$0]  %s1130, 2048, %s1128, [#allocation5], 128, 128, 8
        $region72: #{gat_forward.5} parent=39 // pred_fallthru
          _
        // Predicated region
        $region73: #{gat_forward.5} parent=39 // pred_check
          %p1136 = pneg %p181
        $region74: #{gat_forward.5} parent=39 // pred_check_branch
          %1138 = sbr.rel (%p1136) target = $region76
        $region75: #{gat_forward.5} parent=39 // pred_region
          %1139 = dma.done [#allocation5], 2048
        $region76: #{gat_forward.5} parent=39 // pred_fallthru
          _
      $region40: #{gat_forward.5} parent=5 // pred_fallthru
        _
      %p1140 = scmp.le.s32.totalorder 2, %s19
      // Predicated region
      $region77: #{gat_forward.5} parent=5 // pred_check
        %p1141 = pneg %p1140
      $region78: #{gat_forward.5} parent=5 // pred_check_branch
        %1143 = sbr.rel (%p1141) target = $region80
      $region79: #{gat_forward.5} parent=5 // pred_region
        %s1144 = ssub.s32 %s19, 2
      $region80: #{gat_forward.5} parent=5 // pred_fallthru
        _
    $region6: #{gat_forward.5} parent=1 // loop_footer
      %s23 = sadd.s32 1, %s19
    $region7: #{gat_forward.5} parent=1 // loop_footer_branch
      %18 = sbr.rel target = $region3
    $region8: #{gat_forward.5} parent=1 // loop_exit
      _
    %1145 = vsyncpa [#allocation4], 1
    %s1146 = scalar_lea.sflag [#allocation4], 1
    %1147 = vsyncpa %s1146, 1
    %1148 = vsyncpa [#allocation7], 1
    %s1149 = scalar_lea.sflag [#allocation7], 1
    %1150 = vsyncpa %s1149, 1
    %1151 = vsyncpa [#allocation10], 1
    %1152 = vsyncpa [#allocation5], 1
    %s1153 = scalar_lea.sflag [#allocation5], 1
    %1154 = vsyncpa %s1153, 1

// kernel: gat_forward.7
$region0: #{gat_forward.7}
  #allocation0 [shape = 'u32[]', space=smem, size = 0x4, offset = 0x4, fixed_abs, tag = 'smem constant byte address 0x4 - core index']
  #allocation1 [shape = 'u32[144,128]{1,0:T(1,128)}', space=vmem, size = 0x12000, scoped, tag = 'internal scratch']
  #allocation2 [shape = 'f32[128,128]{1,0:T(8,128)}', space=vmem, size = 0x10000, scoped, tag = 'scratch operand']
  %s0 = inlined_call_operand.hbm [shape: f32[1,128,1], index: 0, kind: input, shape index: {}]
  %s1 = inlined_call_operand.hbm [shape: f32[1,1,128], index: 1, kind: input, shape index: {}]
  %s2 = inlined_call_operand.hbm [shape: f32[1,128,128], index: 2, kind: input, shape index: {}]
  %s3 = inlined_call_operand.hbm [shape: f32[1,128], index: 3, kind: input, shape index: {}]
  %s4 = inlined_call_operand.hbm [shape: bf16[128,128], index: 4, kind: input, shape index: {}]
  %s5 = inlined_call_operand.hbm [shape: f32[128,128], index: 5, kind: output, shape index: {}]
  %s6 = sld [smem:[#allocation0]]
  $region58: #{gat_forward.7} parent=0
    _
  %s8 = ssub.s32 1, %s6
  %s9 = scalar_select 0, %s8, %s6
  $region1: #{gat_forward.7} parent=0
    #allocation3 [shape = 'u8[65536]{0}', space=vmem, size = 0x10000, scoped, tag = 'input window, operand 0, single buffered']
    #allocation4 [shape = 's32[1]{0}', space=sflag, size = 0x4, scoped, tag = 'scoped memory for gat_forward.7']
    #allocation5 [shape = 's32[1]{0}', space=sflag, size = 0x4, scoped, tag = 'scoped memory for gat_forward.7']
    #allocation6 [shape = 'u8[512]{0}', space=vmem, size = 0x400, scoped, tag = 'input window, operand 1, single buffered']
    #allocation7 [shape = 's32[1]{0}', space=sflag, size = 0x4, scoped, tag = 'scoped memory for gat_forward.7']
    #allocation8 [shape = 'u8[65536]{0}', space=vmem, size = 0x10000, scoped, tag = 'input window, operand 2, single buffered']
    #allocation9 [shape = 'u8[512]{0}', space=vmem, size = 0x400, scoped, tag = 'input window, operand 3, single buffered']
    #allocation10 [shape = 's32[1]{0}', space=sflag, size = 0x4, scoped, tag = 'scoped memory for gat_forward.7']
    #allocation11 [shape = 'u8[32768]{0}', space=vmem, size = 0x8000, scoped, tag = 'input window, operand 4, single buffered']
    #allocation12 [shape = 'u8[65536]{0}', space=vmem, size = 0x10000, scoped, tag = 'output window, operand 0, single buffered']
    %10 = vsyncpa [#allocation4], 0
    %11 = vsyncpa [#allocation7], 0
    %12 = vsyncpa [#allocation10], 0
    %13 = vsyncpa [#allocation5], 0
    // Predicated region
    $region2: #{gat_forward.7} parent=1 // pred_check
      _
    $region3: #{gat_forward.7} parent=1 // pred_check_branch
      %15 = sbr.rel (0) target = $region5
    $region4: #{gat_forward.7} parent=1 // pred_region
      %s17 = ssub.s32 2048, 2048
      %18 = vsyncadd [#allocation4], %s17
      %s19 = sshll.u32 [#allocation3], 4
      %s20 = int_to_ptr.vmem [resolvable:$true] %s19
      %25 = dma.hbm_to_vmem [thread:$0]  %s0, 2048, %s20, [#allocation4], 128, 128, 8
    $region5: #{gat_forward.7} parent=1 // pred_fallthru
      _
    // Predicated region
    $region6: #{gat_forward.7} parent=1 // pred_check
      _
    $region7: #{gat_forward.7} parent=1 // pred_check_branch
      %27 = sbr.rel (0) target = $region9
    $region8: #{gat_forward.7} parent=1 // pred_region
      %s29 = ssub.s32 16, 16
      %30 = vsyncadd [#allocation7], %s29
      %s32 = sshll.u32 [#allocation6], 4
      %s33 = int_to_ptr.vmem [resolvable:$true] %s32
      %35 = dma.hbm_to_vmem [thread:$0]  %s1, 16, %s33, [#allocation7]
    $region9: #{gat_forward.7} parent=1 // pred_fallthru
      _
    // Predicated region
    $region10: #{gat_forward.7} parent=1 // pred_check
      _
    $region11: #{gat_forward.7} parent=1 // pred_check_branch
      %37 = sbr.rel (0) target = $region13
    $region12: #{gat_forward.7} parent=1 // pred_region
      %s39 = ssub.s32 2048, 2048
      %40 = vsyncadd [#allocation7], %s39
      %s41 = sshll.u32 [#allocation8], 4
      %s42 = int_to_ptr.vmem [resolvable:$true] %s41
      %47 = dma.hbm_to_vmem [thread:$0]  %s2, 2048, %s42, [#allocation7], 128, 128, 8
    $region13: #{gat_forward.7} parent=1 // pred_fallthru
      _
    // Predicated region
    $region14: #{gat_forward.7} parent=1 // pred_check
      _
    $region15: #{gat_forward.7} parent=1 // pred_check_branch
      %49 = sbr.rel (0) target = $region17
    $region16: #{gat_forward.7} parent=1 // pred_region
      %s51 = ssub.s32 16, 16
      %52 = vsyncadd [#allocation10], %s51
      %s54 = sshll.u32 [#allocation9], 4
      %s55 = int_to_ptr.vmem [resolvable:$true] %s54
      %57 = dma.hbm_to_vmem [thread:$0]  %s3, 16, %s55, [#allocation10]
    $region17: #{gat_forward.7} parent=1 // pred_fallthru
      _
    // Predicated region
    $region18: #{gat_forward.7} parent=1 // pred_check
      _
    $region19: #{gat_forward.7} parent=1 // pred_check_branch
      %59 = sbr.rel (0) target = $region21
    $region20: #{gat_forward.7} parent=1 // pred_region
      %s61 = ssub.s32 1024, 1024
      %62 = vsyncadd [#allocation10], %s61
      %s63 = sshll.u32 [#allocation11], 4
      %s64 = int_to_ptr.vmem [resolvable:$true] %s63
      %69 = dma.hbm_to_vmem [thread:$0]  %s4, 1024, %s64, [#allocation10], 64, 64, 4
    $region21: #{gat_forward.7} parent=1 // pred_fallthru
      _
    // Predicated region
    $region22: #{gat_forward.7} parent=1 // pred_check
      _
    $region23: #{gat_forward.7} parent=1 // pred_check_branch
      %71 = sbr.rel (0) target = $region25
    $region24: #{gat_forward.7} parent=1 // pred_region
      %72 = dma.done [#allocation4], 2048
    $region25: #{gat_forward.7} parent=1 // pred_fallthru
      _
    // Predicated region
    $region26: #{gat_forward.7} parent=1 // pred_check
      _
    $region27: #{gat_forward.7} parent=1 // pred_check_branch
      %74 = sbr.rel (0) target = $region29
    $region28: #{gat_forward.7} parent=1 // pred_region
      %75 = dma.done [#allocation7], 16
    $region29: #{gat_forward.7} parent=1 // pred_fallthru
      _
    // Predicated region
    $region30: #{gat_forward.7} parent=1 // pred_check
      _
    $region31: #{gat_forward.7} parent=1 // pred_check_branch
      %77 = sbr.rel (0) target = $region33
    $region32: #{gat_forward.7} parent=1 // pred_region
      %78 = dma.done [#allocation7], 2048
    $region33: #{gat_forward.7} parent=1 // pred_fallthru
      _
    // Predicated region
    $region34: #{gat_forward.7} parent=1 // pred_check
      _
    $region35: #{gat_forward.7} parent=1 // pred_check_branch
      %80 = sbr.rel (0) target = $region37
    $region36: #{gat_forward.7} parent=1 // pred_region
      %81 = dma.done [#allocation10], 16
    $region37: #{gat_forward.7} parent=1 // pred_fallthru
      _
    // Predicated region
    $region38: #{gat_forward.7} parent=1 // pred_check
      _
    $region39: #{gat_forward.7} parent=1 // pred_check_branch
      %83 = sbr.rel (0) target = $region41
    $region40: #{gat_forward.7} parent=1 // pred_region
      %84 = dma.done [#allocation10], 1024
    $region41: #{gat_forward.7} parent=1 // pred_fallthru
      _
    %p85 = scmp.eq.s32.totalorder 0, 0
    // Predicated region
    $region42: #{gat_forward.7} parent=1 // pred_check
      %p86 = pneg %p85
    $region43: #{gat_forward.7} parent=1 // pred_check_branch
      %88 = sbr.rel (%p86) target = $region45
    $region44: #{gat_forward.7} parent=1 // pred_region
      %89 = vst [vmem:[#allocation2] sm:$0xff] 0.0
      %90 = vst [vmem:[#allocation2 + $0x8] sm:$0xff] 0.0
      %91 = vst [vmem:[#allocation2 + $0x10] sm:$0xff] 0.0
      %92 = vst [vmem:[#allocation2 + $0x18] sm:$0xff] 0.0
      %93 = vst [vmem:[#allocation2 + $0x20] sm:$0xff] 0.0
      %94 = vst [vmem:[#allocation2 + $0x28] sm:$0xff] 0.0
      %95 = vst [vmem:[#allocation2 + $0x30] sm:$0xff] 0.0
      %96 = vst [vmem:[#allocation2 + $0x38] sm:$0xff] 0.0
      %97 = vst [vmem:[#allocation2 + $0x40] sm:$0xff] 0.0
      %98 = vst [vmem:[#allocation2 + $0x48] sm:$0xff] 0.0
      %99 = vst [vmem:[#allocation2 + $0x50] sm:$0xff] 0.0
      %100 = vst [vmem:[#allocation2 + $0x58] sm:$0xff] 0.0
      %101 = vst [vmem:[#allocation2 + $0x60] sm:$0xff] 0.0
      %102 = vst [vmem:[#allocation2 + $0x68] sm:$0xff] 0.0
      %103 = vst [vmem:[#allocation2 + $0x70] sm:$0xff] 0.0
      %104 = vst [vmem:[#allocation2 + $0x78] sm:$0xff] 0.0
    $region45: #{gat_forward.7} parent=1 // pred_fallthru
      _
    %v105 = vld [vmem:[#allocation3] sm:$0xff]
    %v106 = vld [vmem:[#allocation3 + $0x8] sm:$0xff]
    %v107 = vld [vmem:[#allocation3 + $0x10] sm:$0xff]
    %v108 = vld [vmem:[#allocation3 + $0x18] sm:$0xff]
    %v109 = vld [vmem:[#allocation3 + $0x20] sm:$0xff]
    %v110 = vld [vmem:[#allocation3 + $0x28] sm:$0xff]
    %v111 = vld [vmem:[#allocation3 + $0x30] sm:$0xff]
    %v112 = vld [vmem:[#allocation3 + $0x38] sm:$0xff]
    %v113 = vld [vmem:[#allocation3 + $0x40] sm:$0xff]
    %v114 = vld [vmem:[#allocation3 + $0x48] sm:$0xff]
    %v115 = vld [vmem:[#allocation3 + $0x50] sm:$0xff]
    %v116 = vld [vmem:[#allocation3 + $0x58] sm:$0xff]
    %v117 = vld [vmem:[#allocation3 + $0x60] sm:$0xff]
    %v118 = vld [vmem:[#allocation3 + $0x68] sm:$0xff]
    %v119 = vld [vmem:[#allocation3 + $0x70] sm:$0xff]
    %v120 = vld [vmem:[#allocation3 + $0x78] sm:$0xff]
    %v121 = vld [vmem:[#allocation6] sm:$0x1]
    %123 = vset.pattern.permute.xlu0 0
    %124 = vperm.xlu0 %123, %v105
    %v125 = vpop.permute.xlu0 %124
    %128 = vset.pattern.permute.xlu0 0
    %129 = vperm.xlu0 %128, %v106
    %v130 = vpop.permute.xlu0 %129
    %133 = vset.pattern.permute.xlu0 0
    %134 = vperm.xlu0 %133, %v107
    %v135 = vpop.permute.xlu0 %134
    %138 = vset.pattern.permute.xlu0 0
    %139 = vperm.xlu0 %138, %v108
    %v140 = vpop.permute.xlu0 %139
    %143 = vset.pattern.permute.xlu0 0
    %144 = vperm.xlu0 %143, %v109
    %v145 = vpop.permute.xlu0 %144
    %148 = vset.pattern.permute.xlu0 0
    %149 = vperm.xlu0 %148, %v110
    %v150 = vpop.permute.xlu0 %149
    %153 = vset.pattern.permute.xlu0 0
    %154 = vperm.xlu0 %153, %v111
    %v155 = vpop.permute.xlu0 %154
    %158 = vset.pattern.permute.xlu0 0
    %159 = vperm.xlu0 %158, %v112
    %v160 = vpop.permute.xlu0 %159
    %163 = vset.pattern.permute.xlu0 0
    %164 = vperm.xlu0 %163, %v113
    %v165 = vpop.permute.xlu0 %164
    %168 = vset.pattern.permute.xlu0 0
    %169 = vperm.xlu0 %168, %v114
    %v170 = vpop.permute.xlu0 %169
    %173 = vset.pattern.permute.xlu0 0
    %174 = vperm.xlu0 %173, %v115
    %v175 = vpop.permute.xlu0 %174
    %178 = vset.pattern.permute.xlu0 0
    %179 = vperm.xlu0 %178, %v116
    %v180 = vpop.permute.xlu0 %179
    %183 = vset.pattern.permute.xlu0 0
    %184 = vperm.xlu0 %183, %v117
    %v185 = vpop.permute.xlu0 %184
    %188 = vset.pattern.permute.xlu0 0
    %189 = vperm.xlu0 %188, %v118
    %v190 = vpop.permute.xlu0 %189
    %193 = vset.pattern.permute.xlu0 0
    %194 = vperm.xlu0 %193, %v119
    %v195 = vpop.permute.xlu0 %194
    %198 = vset.pattern.permute.xlu0 0
    %199 = vperm.xlu0 %198, %v120
    %v200 = vpop.permute.xlu0 %199
    %v203 = vlaneseq
    %v204 = vshrl.u32 %v203, 7
    %v205 = vsub.s32 0, %v204
    %v206 = vrot.slane %v121, %v205
    %v208 = vadd.f32 %v125, %v206
    %v209 = vadd.f32 %v130, %v206
    %v210 = vadd.f32 %v135, %v206
    %v211 = vadd.f32 %v140, %v206
    %v212 = vadd.f32 %v145, %v206
    %v213 = vadd.f32 %v150, %v206
    %v214 = vadd.f32 %v155, %v206
    %v215 = vadd.f32 %v160, %v206
    %v216 = vadd.f32 %v165, %v206
    %v217 = vadd.f32 %v170, %v206
    %v218 = vadd.f32 %v175, %v206
    %v219 = vadd.f32 %v180, %v206
    %v220 = vadd.f32 %v185, %v206
    %v221 = vadd.f32 %v190, %v206
    %v222 = vadd.f32 %v195, %v206
    %v223 = vadd.f32 %v200, %v206
    %v224 = vmul.f32 %v208, 0.2
    %v225 = vmul.f32 %v209, 0.2
    %v226 = vmul.f32 %v210, 0.2
    %v227 = vmul.f32 %v211, 0.2
    %v228 = vmul.f32 %v212, 0.2
    %v229 = vmul.f32 %v213, 0.2
    %v230 = vmul.f32 %v214, 0.2
    %v231 = vmul.f32 %v215, 0.2
    %v232 = vmul.f32 %v216, 0.2
    %v233 = vmul.f32 %v217, 0.2
    %v234 = vmul.f32 %v218, 0.2
    %v235 = vmul.f32 %v219, 0.2
    %v236 = vmul.f32 %v220, 0.2
    %v237 = vmul.f32 %v221, 0.2
    %v238 = vmul.f32 %v222, 0.2
    %v239 = vmul.f32 %v223, 0.2
    %v240 = vmax.f32 %v208, %v224
    %v241 = vmax.f32 %v209, %v225
    %v242 = vmax.f32 %v210, %v226
    %v243 = vmax.f32 %v211, %v227
    %v244 = vmax.f32 %v212, %v228
    %v245 = vmax.f32 %v213, %v229
    %v246 = vmax.f32 %v214, %v230
    %v247 = vmax.f32 %v215, %v231
    %v248 = vmax.f32 %v216, %v232
    %v249 = vmax.f32 %v217, %v233
    %v250 = vmax.f32 %v218, %v234
    %v251 = vmax.f32 %v219, %v235
    %v252 = vmax.f32 %v220, %v236
    %v253 = vmax.f32 %v221, %v237
    %v254 = vmax.f32 %v222, %v238
    %v255 = vmax.f32 %v223, %v239
    %v256 = vld [vmem:[#allocation11] sm:$0xf]
    %v257 = vld [vmem:[#allocation11 + $0x4] sm:$0xf]
    %v258 = vld [vmem:[#allocation11 + $0x8] sm:$0xf]
    %v259 = vld [vmem:[#allocation11 + $0xc] sm:$0xf]
    %v260 = vld [vmem:[#allocation11 + $0x10] sm:$0xf]
    %v261 = vld [vmem:[#allocation11 + $0x14] sm:$0xf]
    %v262 = vld [vmem:[#allocation11 + $0x18] sm:$0xf]
    %v263 = vld [vmem:[#allocation11 + $0x1c] sm:$0xf]
    %v264 = vld [vmem:[#allocation11 + $0x20] sm:$0xf]
    %v265 = vld [vmem:[#allocation11 + $0x24] sm:$0xf]
    %v266 = vld [vmem:[#allocation11 + $0x28] sm:$0xf]
    %v267 = vld [vmem:[#allocation11 + $0x2c] sm:$0xf]
    %v268 = vld [vmem:[#allocation11 + $0x30] sm:$0xf]
    %v269 = vld [vmem:[#allocation11 + $0x34] sm:$0xf]
    %v270 = vld [vmem:[#allocation11 + $0x38] sm:$0xf]
    %v271 = vld [vmem:[#allocation11 + $0x3c] sm:$0xf]
    %v272 = vunpack.c.l.bf16 %v256
    %v273 = vunpack.c.l.bf16 %v257
    %v274 = vunpack.c.l.bf16 %v258
    %v275 = vunpack.c.l.bf16 %v259
    %v276 = vunpack.c.l.bf16 %v260
    %v277 = vunpack.c.l.bf16 %v261
    %v278 = vunpack.c.l.bf16 %v262
    %v279 = vunpack.c.l.bf16 %v263
    %v280 = vunpack.c.l.bf16 %v264
    %v281 = vunpack.c.l.bf16 %v265
    %v282 = vunpack.c.l.bf16 %v266
    %v283 = vunpack.c.l.bf16 %v267
    %v284 = vunpack.c.l.bf16 %v268
    %v285 = vunpack.c.l.bf16 %v269
    %v286 = vunpack.c.l.bf16 %v270
    %v287 = vunpack.c.l.bf16 %v271
    %v288 = vadd.f32 %v240, %v272
    %v289 = vadd.f32 %v241, %v273
    %v290 = vadd.f32 %v242, %v274
    %v291 = vadd.f32 %v243, %v275
    %v292 = vadd.f32 %v244, %v276
    %v293 = vadd.f32 %v245, %v277
    %v294 = vadd.f32 %v246, %v278
    %v295 = vadd.f32 %v247, %v279
    %v296 = vadd.f32 %v248, %v280
    %v297 = vadd.f32 %v249, %v281
    %v298 = vadd.f32 %v250, %v282
    %v299 = vadd.f32 %v251, %v283
    %v300 = vadd.f32 %v252, %v284
    %v301 = vadd.f32 %v253, %v285
    %v302 = vadd.f32 %v254, %v286
    %v303 = vadd.f32 %v255, %v287
    %304 = vmax.xlane.f32.xlu0 %v288
    %v305 = vpop.xlane.xlu0 %304
    %306 = vmax.xlane.f32.xlu0 %v289
    %v307 = vpop.xlane.xlu0 %306
    %308 = vmax.xlane.f32.xlu0 %v290
    %v309 = vpop.xlane.xlu0 %308
    %310 = vmax.xlane.f32.xlu0 %v291
    %v311 = vpop.xlane.xlu0 %310
    %312 = vmax.xlane.f32.xlu0 %v292
    %v313 = vpop.xlane.xlu0 %312
    %314 = vmax.xlane.f32.xlu0 %v293
    %v315 = vpop.xlane.xlu0 %314
    %316 = vmax.xlane.f32.xlu0 %v294
    %v317 = vpop.xlane.xlu0 %316
    %318 = vmax.xlane.f32.xlu0 %v295
    %v319 = vpop.xlane.xlu0 %318
    %320 = vmax.xlane.f32.xlu0 %v296
    %v321 = vpop.xlane.xlu0 %320
    %322 = vmax.xlane.f32.xlu0 %v297
    %v323 = vpop.xlane.xlu0 %322
    %324 = vmax.xlane.f32.xlu0 %v298
    %v325 = vpop.xlane.xlu0 %324
    %326 = vmax.xlane.f32.xlu0 %v299
    %v327 = vpop.xlane.xlu0 %326
    %328 = vmax.xlane.f32.xlu0 %v300
    %v329 = vpop.xlane.xlu0 %328
    %330 = vmax.xlane.f32.xlu0 %v301
    %v331 = vpop.xlane.xlu0 %330
    %332 = vmax.xlane.f32.xlu0 %v302
    %v333 = vpop.xlane.xlu0 %332
    %334 = vmax.xlane.f32.xlu0 %v303
    %v335 = vpop.xlane.xlu0 %334
    %v336 = vsub.f32 %v288, %v305
    %v337 = vsub.f32 %v289, %v307
    %v338 = vsub.f32 %v290, %v309
    %v339 = vsub.f32 %v291, %v311
    %v340 = vsub.f32 %v292, %v313
    %v341 = vsub.f32 %v293, %v315
    %v342 = vsub.f32 %v294, %v317
    %v343 = vsub.f32 %v295, %v319
    %v344 = vsub.f32 %v296, %v321
    %v345 = vsub.f32 %v297, %v323
    %v346 = vsub.f32 %v298, %v325
    %v347 = vsub.f32 %v299, %v327
    %v348 = vsub.f32 %v300, %v329
    %v349 = vsub.f32 %v301, %v331
    %v350 = vsub.f32 %v302, %v333
    %v351 = vsub.f32 %v303, %v335
    %v352 = vmul.f32 %v336, 1.442695
    %v353 = vpow.pop %v352
    %v354 = vmul.f32 %v337, 1.442695
    %v355 = vpow.pop %v354
    %v356 = vmul.f32 %v338, 1.442695
    %v357 = vpow.pop %v356
    %v358 = vmul.f32 %v339, 1.442695
    %v359 = vpow.pop %v358
    %v360 = vmul.f32 %v340, 1.442695
    %v361 = vpow.pop %v360
    %v362 = vmul.f32 %v341, 1.442695
    %v363 = vpow.pop %v362
    %v364 = vmul.f32 %v342, 1.442695
    %v365 = vpow.pop %v364
    %v366 = vmul.f32 %v343, 1.442695
    %v367 = vpow.pop %v366
    %v368 = vmul.f32 %v344, 1.442695
    %v369 = vpow.pop %v368
    %v370 = vmul.f32 %v345, 1.442695
    %v371 = vpow.pop %v370
    %v372 = vmul.f32 %v346, 1.442695
    %v373 = vpow.pop %v372
    %v374 = vmul.f32 %v347, 1.442695
    %v375 = vpow.pop %v374
    %v376 = vmul.f32 %v348, 1.442695
    %v377 = vpow.pop %v376
    %v378 = vmul.f32 %v349, 1.442695
    %v379 = vpow.pop %v378
    %v380 = vmul.f32 %v350, 1.442695
    %v381 = vpow.pop %v380
    %v382 = vmul.f32 %v351, 1.442695
    %v383 = vpow.pop %v382
    %v384 = vld [vmem:[#allocation8] sm:$0xff]
    %v385 = vld [vmem:[#allocation8 + $0x8] sm:$0xff]
    %v386 = vld [vmem:[#allocation8 + $0x10] sm:$0xff]
    %v387 = vld [vmem:[#allocation8 + $0x18] sm:$0xff]
    %v388 = vld [vmem:[#allocation8 + $0x20] sm:$0xff]
    %v389 = vld [vmem:[#allocation8 + $0x28] sm:$0xff]
    %v390 = vld [vmem:[#allocation8 + $0x30] sm:$0xff]
    %v391 = vld [vmem:[#allocation8 + $0x38] sm:$0xff]
    %v392 = vld [vmem:[#allocation8 + $0x40] sm:$0xff]
    %v393 = vld [vmem:[#allocation8 + $0x48] sm:$0xff]
    %v394 = vld [vmem:[#allocation8 + $0x50] sm:$0xff]
    %v395 = vld [vmem:[#allocation8 + $0x58] sm:$0xff]
    %v396 = vld [vmem:[#allocation8 + $0x60] sm:$0xff]
    %v397 = vld [vmem:[#allocation8 + $0x68] sm:$0xff]
    %v398 = vld [vmem:[#allocation8 + $0x70] sm:$0xff]
    %v399 = vld [vmem:[#allocation8 + $0x78] sm:$0xff]
    %400 = vmatprep.subr.mxu0 0.0
    %401 = vmatpush1.msra.mxu0 %v384
    %402 = vmatprep.subr.mxu0 0.0
    %403 = vmatpush1.msra.mxu0 %v385
    %404 = vmatprep.subr.mxu0 0.0
    %405 = vmatpush1.msra.mxu0 %v386
    %406 = vmatprep.subr.mxu0 0.0
    %407 = vmatpush1.msra.mxu0 %v387
    %408 = vmatprep.subr.mxu0 0.0
    %409 = vmatpush1.msra.mxu0 %v388
    %410 = vmatprep.subr.mxu0 0.0
    %411 = vmatpush1.msra.mxu0 %v389
    %412 = vmatprep.subr.mxu0 0.0
    %413 = vmatpush1.msra.mxu0 %v390
    %414 = vmatprep.subr.mxu0 0.0
    %415 = vmatpush1.msra.mxu0 %v391
    %416 = vmatprep.subr.mxu0 0.0
    %417 = vmatpush1.msra.mxu0 %v392
    %418 = vmatprep.subr.mxu0 0.0
    %419 = vmatpush1.msra.mxu0 %v393
    %420 = vmatprep.subr.mxu0 0.0
    %421 = vmatpush1.msra.mxu0 %v394
    %422 = vmatprep.subr.mxu0 0.0
    %423 = vmatpush1.msra.mxu0 %v395
    %424 = vmatprep.subr.mxu0 0.0
    %425 = vmatpush1.msra.mxu0 %v396
    %426 = vmatprep.subr.mxu0 0.0
    %427 = vmatpush1.msra.mxu0 %v397
    %428 = vmatprep.subr.mxu0 0.0
    %429 = vmatpush1.msra.mxu0 %v398
    %430 = vmatprep.subr.mxu0 0.0
    %431 = vmatpush1.msra.mxu0 %v399
    %432 = vmatprep.subr.mxu0 0.0
    %433 = vmatpush1.msra.mxu0 0.0
    %434 = vmatprep.subr.mxu0 0.0
    %435 = vmatpush1.msra.mxu0 0.0
    %436 = vmatprep.subr.mxu0 0.0
    %437 = vmatpush1.msra.mxu0 0.0
    %438 = vmatprep.subr.mxu0 0.0
    %439 = vmatpush1.msra.mxu0 0.0
    %440 = vmatprep.subr.mxu0 0.0
    %441 = vmatpush1.msra.mxu0 0.0
    %442 = vmatprep.subr.mxu0 0.0
    %443 = vmatpush1.msra.mxu0 0.0
    %444 = vmatprep.subr.mxu0 0.0
    %445 = vmatpush1.msra.mxu0 0.0
    %446 = vmatprep.subr.mxu0 0.0
    %447 = vmatpush1.msra.mxu0 0.0
    %448 = vmatprep.subr.mxu0 0.0
    %449 = vmatpush1.msra.mxu0 0.0
    %450 = vmatprep.subr.mxu0 0.0
    %451 = vmatpush1.msra.mxu0 0.0
    %452 = vmatprep.subr.mxu0 0.0
    %453 = vmatpush1.msra.mxu0 0.0
    %454 = vmatprep.subr.mxu0 0.0
    %455 = vmatpush1.msra.mxu0 0.0
    %456 = vmatprep.subr.mxu0 0.0
    %457 = vmatpush1.msra.mxu0 0.0
    %458 = vmatprep.subr.mxu0 0.0
    %459 = vmatpush1.msra.mxu0 0.0
    %460 = vmatprep.subr.mxu0 0.0
    %461 = vmatpush1.msra.mxu0 0.0
    %462 = vmatprep.subr.mxu0 0.0
    %463 = vmatpush1.msra.mxu0 0.0
    %464 = vmatprep.mubr.f32.mxu0 0.0
    %465 = vmatmul.mubr.f32.gmra.mrb[0].mxu0 %v353
    %v466 = vpop.f32.mrb[0].mxu0
    %v467 = vadd.f32 0.0, %v466
    %v468 = vpop.f32.mrb[0].mxu0
    %469 = vmatprep.mubr.f32.mxu0 0.0
    %470 = vmatmul.mubr.f32.gmra.mrb[0].mxu0 %v355
    %v471 = vpop.f32.mrb[0].mxu0
    %v472 = vadd.f32 0.0, %v471
    %v473 = vpop.f32.mrb[0].mxu0
    %474 = vmatprep.mubr.f32.mxu0 0.0
    %475 = vmatmul.mubr.f32.gmra.mrb[0].mxu0 %v357
    %v476 = vpop.f32.mrb[0].mxu0
    %v477 = vadd.f32 0.0, %v476
    %v478 = vpop.f32.mrb[0].mxu0
    %479 = vmatprep.mubr.f32.mxu0 0.0
    %480 = vmatmul.mubr.f32.gmra.mrb[0].mxu0 %v359
    %v481 = vpop.f32.mrb[0].mxu0
    %v482 = vadd.f32 0.0, %v481
    %v483 = vpop.f32.mrb[0].mxu0
    %484 = vmatprep.mubr.f32.mxu0 0.0
    %485 = vmatmul.mubr.f32.gmra.mrb[0].mxu0 %v361
    %v486 = vpop.f32.mrb[0].mxu0
    %v487 = vadd.f32 0.0, %v486
    %v488 = vpop.f32.mrb[0].mxu0
    %489 = vmatprep.mubr.f32.mxu0 0.0
    %490 = vmatmul.mubr.f32.gmra.mrb[0].mxu0 %v363
    %v491 = vpop.f32.mrb[0].mxu0
    %v492 = vadd.f32 0.0, %v491
    %v493 = vpop.f32.mrb[0].mxu0
    %494 = vmatprep.mubr.f32.mxu0 0.0
    %495 = vmatmul.mubr.f32.gmra.mrb[0].mxu0 %v365
    %v496 = vpop.f32.mrb[0].mxu0
    %v497 = vadd.f32 0.0, %v496
    %v498 = vpop.f32.mrb[0].mxu0
    %499 = vmatprep.mubr.f32.mxu0 0.0
    %500 = vmatmul.mubr.f32.gmra.mrb[0].mxu0 %v367
    %v501 = vpop.f32.mrb[0].mxu0
    %v502 = vadd.f32 0.0, %v501
    %v503 = vpop.f32.mrb[0].mxu0
    %504 = vmatprep.mubr.f32.mxu0 0.0
    %505 = vmatmul.mubr.f32.gmra.mrb[0].mxu0 %v369
    %v506 = vpop.f32.mrb[0].mxu0
    %v507 = vadd.f32 0.0, %v506
    %v508 = vpop.f32.mrb[0].mxu0
    %509 = vmatprep.mubr.f32.mxu0 0.0
    %510 = vmatmul.mubr.f32.gmra.mrb[0].mxu0 %v371
    %v511 = vpop.f32.mrb[0].mxu0
    %v512 = vadd.f32 0.0, %v511
    %v513 = vpop.f32.mrb[0].mxu0
    %514 = vmatprep.mubr.f32.mxu0 0.0
    %515 = vmatmul.mubr.f32.gmra.mrb[0].mxu0 %v373
    %v516 = vpop.f32.mrb[0].mxu0
    %v517 = vadd.f32 0.0, %v516
    %v518 = vpop.f32.mrb[0].mxu0
    %519 = vmatprep.mubr.f32.mxu0 0.0
    %520 = vmatmul.mubr.f32.gmra.mrb[0].mxu0 %v375
    %v521 = vpop.f32.mrb[0].mxu0
    %v522 = vadd.f32 0.0, %v521
    %v523 = vpop.f32.mrb[0].mxu0
    %524 = vmatprep.mubr.f32.mxu0 0.0
    %525 = vmatmul.mubr.f32.gmra.mrb[0].mxu0 %v377
    %v526 = vpop.f32.mrb[0].mxu0
    %v527 = vadd.f32 0.0, %v526
    %v528 = vpop.f32.mrb[0].mxu0
    %529 = vmatprep.mubr.f32.mxu0 0.0
    %530 = vmatmul.mubr.f32.gmra.mrb[0].mxu0 %v379
    %v531 = vpop.f32.mrb[0].mxu0
    %v532 = vadd.f32 0.0, %v531
    %v533 = vpop.f32.mrb[0].mxu0
    %534 = vmatprep.mubr.f32.mxu0 0.0
    %535 = vmatmul.mubr.f32.gmra.mrb[0].mxu0 %v381
    %v536 = vpop.f32.mrb[0].mxu0
    %v537 = vadd.f32 0.0, %v536
    %v538 = vpop.f32.mrb[0].mxu0
    %539 = vmatprep.mubr.f32.mxu0 0.0
    %540 = vmatmul.mubr.f32.gmra.mrb[0].mxu0 %v383
    %v541 = vpop.f32.mrb[0].mxu0
    %v542 = vadd.f32 0.0, %v541
    %v543 = vpop.f32.mrb[0].mxu0
    %544 = vdwg.mxu0
    %v545 = vld [vmem:[#allocation2] sm:$0xff]
    %v546 = vld [vmem:[#allocation2 + $0x8] sm:$0xff]
    %v547 = vld [vmem:[#allocation2 + $0x10] sm:$0xff]
    %v548 = vld [vmem:[#allocation2 + $0x18] sm:$0xff]
    %v549 = vld [vmem:[#allocation2 + $0x20] sm:$0xff]
    %v550 = vld [vmem:[#allocation2 + $0x28] sm:$0xff]
    %v551 = vld [vmem:[#allocation2 + $0x30] sm:$0xff]
    %v552 = vld [vmem:[#allocation2 + $0x38] sm:$0xff]
    %v553 = vld [vmem:[#allocation2 + $0x40] sm:$0xff]
    %v554 = vld [vmem:[#allocation2 + $0x48] sm:$0xff]
    %v555 = vld [vmem:[#allocation2 + $0x50] sm:$0xff]
    %v556 = vld [vmem:[#allocation2 + $0x58] sm:$0xff]
    %v557 = vld [vmem:[#allocation2 + $0x60] sm:$0xff]
    %v558 = vld [vmem:[#allocation2 + $0x68] sm:$0xff]
    %v559 = vld [vmem:[#allocation2 + $0x70] sm:$0xff]
    %v560 = vld [vmem:[#allocation2 + $0x78] sm:$0xff]
    %v561 = vrcp.pop %v467
    %v562 = vrcp.pop %v472
    %v563 = vrcp.pop %v477
    %v564 = vrcp.pop %v482
    %v565 = vrcp.pop %v487
    %v566 = vrcp.pop %v492
    %v567 = vrcp.pop %v497
    %v568 = vrcp.pop %v502
    %v569 = vrcp.pop %v507
    %v570 = vrcp.pop %v512
    %v571 = vrcp.pop %v517
    %v572 = vrcp.pop %v522
    %v573 = vrcp.pop %v527
    %v574 = vrcp.pop %v532
    %v575 = vrcp.pop %v537
    %v576 = vrcp.pop %v542
    %578 = vset.pattern.permute.xlu0 127
    %579 = vperm.xlu0 %578, %v561
    %v580 = vpop.permute.xlu0 %579
    %583 = vset.pattern.permute.xlu0 127
    %584 = vperm.xlu0 %583, %v562
    %v585 = vpop.permute.xlu0 %584
    %588 = vset.pattern.permute.xlu0 127
    %589 = vperm.xlu0 %588, %v563
    %v590 = vpop.permute.xlu0 %589
    %593 = vset.pattern.permute.xlu0 127
    %594 = vperm.xlu0 %593, %v564
    %v595 = vpop.permute.xlu0 %594
    %598 = vset.pattern.permute.xlu0 127
    %599 = vperm.xlu0 %598, %v565
    %v600 = vpop.permute.xlu0 %599
    %603 = vset.pattern.permute.xlu0 127
    %604 = vperm.xlu0 %603, %v566
    %v605 = vpop.permute.xlu0 %604
    %608 = vset.pattern.permute.xlu0 127
    %609 = vperm.xlu0 %608, %v567
    %v610 = vpop.permute.xlu0 %609
    %613 = vset.pattern.permute.xlu0 127
    %614 = vperm.xlu0 %613, %v568
    %v615 = vpop.permute.xlu0 %614
    %618 = vset.pattern.permute.xlu0 127
    %619 = vperm.xlu0 %618, %v569
    %v620 = vpop.permute.xlu0 %619
    %623 = vset.pattern.permute.xlu0 127
    %624 = vperm.xlu0 %623, %v570
    %v625 = vpop.permute.xlu0 %624
    %628 = vset.pattern.permute.xlu0 127
    %629 = vperm.xlu0 %628, %v571
    %v630 = vpop.permute.xlu0 %629
    %633 = vset.pattern.permute.xlu0 127
    %634 = vperm.xlu0 %633, %v572
    %v635 = vpop.permute.xlu0 %634
    %638 = vset.pattern.permute.xlu0 127
    %639 = vperm.xlu0 %638, %v573
    %v640 = vpop.permute.xlu0 %639
    %643 = vset.pattern.permute.xlu0 127
    %644 = vperm.xlu0 %643, %v574
    %v645 = vpop.permute.xlu0 %644
    %648 = vset.pattern.permute.xlu0 127
    %649 = vperm.xlu0 %648, %v575
    %v650 = vpop.permute.xlu0 %649
    %653 = vset.pattern.permute.xlu0 127
    %654 = vperm.xlu0 %653, %v576
    %v655 = vpop.permute.xlu0 %654
    %v657 = vmul.f32 %v467, %v580
    %v658 = vmul.f32 %v472, %v585
    %v659 = vmul.f32 %v477, %v590
    %v660 = vmul.f32 %v482, %v595
    %v661 = vmul.f32 %v487, %v600
    %v662 = vmul.f32 %v492, %v605
    %v663 = vmul.f32 %v497, %v610
    %v664 = vmul.f32 %v502, %v615
    %v665 = vmul.f32 %v507, %v620
    %v666 = vmul.f32 %v512, %v625
    %v667 = vmul.f32 %v517, %v630
    %v668 = vmul.f32 %v522, %v635
    %v669 = vmul.f32 %v527, %v640
    %v670 = vmul.f32 %v532, %v645
    %v671 = vmul.f32 %v537, %v650
    %v672 = vmul.f32 %v542, %v655
    %v673 = vadd.f32 %v545, %v657
    %v674 = vadd.f32 %v546, %v658
    %v675 = vadd.f32 %v547, %v659
    %v676 = vadd.f32 %v548, %v660
    %v677 = vadd.f32 %v549, %v661
    %v678 = vadd.f32 %v550, %v662
    %v679 = vadd.f32 %v551, %v663
    %v680 = vadd.f32 %v552, %v664
    %v681 = vadd.f32 %v553, %v665
    %v682 = vadd.f32 %v554, %v666
    %v683 = vadd.f32 %v555, %v667
    %v684 = vadd.f32 %v556, %v668
    %v685 = vadd.f32 %v557, %v669
    %v686 = vadd.f32 %v558, %v670
    %v687 = vadd.f32 %v559, %v671
    %v688 = vadd.f32 %v560, %v672
    %689 = vst [vmem:[#allocation2] sm:$0xff] %v673
    %690 = vst [vmem:[#allocation2 + $0x8] sm:$0xff] %v674
    %691 = vst [vmem:[#allocation2 + $0x10] sm:$0xff] %v675
    %692 = vst [vmem:[#allocation2 + $0x18] sm:$0xff] %v676
    %693 = vst [vmem:[#allocation2 + $0x20] sm:$0xff] %v677
    %694 = vst [vmem:[#allocation2 + $0x28] sm:$0xff] %v678
    %695 = vst [vmem:[#allocation2 + $0x30] sm:$0xff] %v679
    %696 = vst [vmem:[#allocation2 + $0x38] sm:$0xff] %v680
    %697 = vst [vmem:[#allocation2 + $0x40] sm:$0xff] %v681
    %698 = vst [vmem:[#allocation2 + $0x48] sm:$0xff] %v682
    %699 = vst [vmem:[#allocation2 + $0x50] sm:$0xff] %v683
    %700 = vst [vmem:[#allocation2 + $0x58] sm:$0xff] %v684
    %701 = vst [vmem:[#allocation2 + $0x60] sm:$0xff] %v685
    %702 = vst [vmem:[#allocation2 + $0x68] sm:$0xff] %v686
    %703 = vst [vmem:[#allocation2 + $0x70] sm:$0xff] %v687
    %704 = vst [vmem:[#allocation2 + $0x78] sm:$0xff] %v688
    // Predicated region
    $region46: #{gat_forward.7} parent=1 // pred_check
      %p705 = pneg %p85
    $region47: #{gat_forward.7} parent=1 // pred_check_branch
      %707 = sbr.rel (%p705) target = $region49
    $region48: #{gat_forward.7} parent=1 // pred_region
      %v708 = vld [vmem:[#allocation2] sm:$0xff]
      %v709 = vld [vmem:[#allocation2 + $0x8] sm:$0xff]
      %v710 = vld [vmem:[#allocation2 + $0x10] sm:$0xff]
      %v711 = vld [vmem:[#allocation2 + $0x18] sm:$0xff]
      %v712 = vld [vmem:[#allocation2 + $0x20] sm:$0xff]
      %v713 = vld [vmem:[#allocation2 + $0x28] sm:$0xff]
      %v714 = vld [vmem:[#allocation2 + $0x30] sm:$0xff]
      %v715 = vld [vmem:[#allocation2 + $0x38] sm:$0xff]
      %v716 = vld [vmem:[#allocation2 + $0x40] sm:$0xff]
      %v717 = vld [vmem:[#allocation2 + $0x48] sm:$0xff]
      %v718 = vld [vmem:[#allocation2 + $0x50] sm:$0xff]
      %v719 = vld [vmem:[#allocation2 + $0x58] sm:$0xff]
      %v720 = vld [vmem:[#allocation2 + $0x60] sm:$0xff]
      %v721 = vld [vmem:[#allocation2 + $0x68] sm:$0xff]
      %v722 = vld [vmem:[#allocation2 + $0x70] sm:$0xff]
      %v723 = vld [vmem:[#allocation2 + $0x78] sm:$0xff]
      %v724 = vld [vmem:[#allocation9] sm:$0x1]
      %v726 = vlaneseq
      %v727 = vshrl.u32 %v726, 7
      %v728 = vsub.s32 0, %v727
      %v729 = vrot.slane %v724, %v728
      %v731 = vadd.f32 %v708, %v729
      %v732 = vadd.f32 %v709, %v729
      %v733 = vadd.f32 %v710, %v729
      %v734 = vadd.f32 %v711, %v729
      %v735 = vadd.f32 %v712, %v729
      %v736 = vadd.f32 %v713, %v729
      %v737 = vadd.f32 %v714, %v729
      %v738 = vadd.f32 %v715, %v729
      %v739 = vadd.f32 %v716, %v729
      %v740 = vadd.f32 %v717, %v729
      %v741 = vadd.f32 %v718, %v729
      %v742 = vadd.f32 %v719, %v729
      %v743 = vadd.f32 %v720, %v729
      %v744 = vadd.f32 %v721, %v729
      %v745 = vadd.f32 %v722, %v729
      %v746 = vadd.f32 %v723, %v729
      %747 = vst [vmem:[#allocation12] sm:$0xff] %v731
      %748 = vst [vmem:[#allocation12 + $0x8] sm:$0xff] %v732
      %749 = vst [vmem:[#allocation12 + $0x10] sm:$0xff] %v733
      %750 = vst [vmem:[#allocation12 + $0x18] sm:$0xff] %v734
      %751 = vst [vmem:[#allocation12 + $0x20] sm:$0xff] %v735
      %752 = vst [vmem:[#allocation12 + $0x28] sm:$0xff] %v736
      %753 = vst [vmem:[#allocation12 + $0x30] sm:$0xff] %v737
      %754 = vst [vmem:[#allocation12 + $0x38] sm:$0xff] %v738
      %755 = vst [vmem:[#allocation12 + $0x40] sm:$0xff] %v739
      %756 = vst [vmem:[#allocation12 + $0x48] sm:$0xff] %v740
      %757 = vst [vmem:[#allocation12 + $0x50] sm:$0xff] %v741
      %758 = vst [vmem:[#allocation12 + $0x58] sm:$0xff] %v742
      %759 = vst [vmem:[#allocation12 + $0x60] sm:$0xff] %v743
      %760 = vst [vmem:[#allocation12 + $0x68] sm:$0xff] %v744
      %761 = vst [vmem:[#allocation12 + $0x70] sm:$0xff] %v745
      %762 = vst [vmem:[#allocation12 + $0x78] sm:$0xff] %v746
    $region49: #{gat_forward.7} parent=1 // pred_fallthru
      _
    // Predicated region
    $region50: #{gat_forward.7} parent=1 // pred_check
      _
    $region51: #{gat_forward.7} parent=1 // pred_check_branch
      %764 = sbr.rel (0) target = $region53
    $region52: #{gat_forward.7} parent=1 // pred_region
      %s766 = ssub.s32 2048, 2048
      %767 = vsyncadd [#allocation5], %s766
      %s768 = sshll.u32 [#allocation12], 4
      %s769 = int_to_ptr.vmem [resolvable:$true] %s768
      %774 = dma.vmem_to_hbm [thread:$0]  %s769, 2048, %s5, [#allocation5], 128, 128, 8
    $region53: #{gat_forward.7} parent=1 // pred_fallthru
      _
    // Predicated region
    $region54: #{gat_forward.7} parent=1 // pred_check
      _
    $region55: #{gat_forward.7} parent=1 // pred_check_branch
      %776 = sbr.rel (0) target = $region57
    $region56: #{gat_forward.7} parent=1 // pred_region
      %777 = dma.done [#allocation5], 2048
    $region57: #{gat_forward.7} parent=1 // pred_fallthru
      _
    %778 = vsyncpa [#allocation4], 1
    %779 = vsyncpa [#allocation7], 1
    %780 = vsyncpa [#allocation10], 1
    %781 = vsyncpa [#allocation5], 1

</llo_original>
